<compile_context>
chip_gen: v5e
topology: v5e:2x2
jax: 0.10.0
libtpu: 0.0.40
codegen_flags: <defaults>
</compile_context>

<pallas_src>
import jax
import jax.numpy as jnp
from jax.experimental import pallas as pl
from jax.experimental.pallas import tpu as pltpu


# ---------------------------------------------------------------------------
# Glue (plain JAX): im2col patches, BN folding, layout plumbing
# ---------------------------------------------------------------------------
def _round_up(x, m):
    return ((x + m - 1) // m) * m


def _im2col_nhwc(x, kh, kw):
    # x: (N, H, W, C) -> (N, Ho, Wo, kh*kw*C), patch lane order (kh, kw, cin).
    N, H, W, C = x.shape
    Ho, Wo = H - kh + 1, W - kw + 1
    cols = [x[:, i:i + Ho, j:j + Wo, :] for i in range(kh) for j in range(kw)]
    return jnp.stack(cols, axis=3).reshape(N, Ho, Wo, kh * kw * C)


def _fold_bn_t(w, bias, gamma, beta, mean, var, eps=1e-5):
    # w: (Cout, Cin, kh, kw) -> transposed weight (Cout, kh*kw*Cin) with the
    # BN scale folded in; conv bias + BN shift folded into one (Cout, 1) shift.
    cout = w.shape[0]
    scale = gamma * jax.lax.rsqrt(var + eps)                     # (Cout,)
    wmat = (w * scale[:, None, None, None]).transpose(0, 2, 3, 1).reshape(cout, -1)
    shift = (bias - mean) * scale + beta
    return wmat.astype(jnp.float32), shift.reshape(cout, 1).astype(jnp.float32)


# ---------------------------------------------------------------------------
# Fused forward pass
# ---------------------------------------------------------------------------
def forward_pallas(x_nchw, params, *, block_batch=None):
    N, Cin, H, W = x_nchw.shape
    C = params["w1"].shape[0]                 # hid_channels (== out_channels)
    KH1, KW1, KH2, KW2 = 20, 8, 10, 4

    Ho1, Wo1 = H - KH1 + 1, W - KW1 + 1
    Wop = Wo1 // 3                            # MaxPool2d((1,3)), floor mode
    Ho2, Wo2 = Ho1 - KH2 + 1, Wop - KW2 + 1
    K1 = KH1 * KW1 * Cin

    S = Ho1 * Wop                             # pooled spatial elems / sample
    Sp = _round_up(S, 128)                    # lane-aligned per-sample stride
    max_off = (KH2 - 1) * Wop + (KW2 - 1)     # largest conv2 lane shift
    Tpad = _round_up(max(max_off, 1), 128)    # tail pad so shifted reads stay in-bounds

    # ---- batch block: as large as a conservative VMEM budget allows --------
    # (one big grid step is best on single-TC v5e/v6e; the budget also keeps
    #  the per-step footprint safe on v7x's 64 MiB VMEM / 32 MiB scoped).
    if block_batch is None:
        bytes_per_sample = (3 * Sp * K1 * 2 * 2      # p1 block (bf16, double-buffered)
                            + Sp * C * 4 * 2         # output block (f32, double-buffered)
                            + Sp * C * 2             # h scratch (bf16)
                            + Sp * C * 4)            # f32 accumulator scratch
        budget = 24 * 1024 * 1024
        B = max(1, min(N, budget // max(bytes_per_sample, 1)))
    else:
        B = max(1, min(block_batch, N))
    Npad = _round_up(N, B)
    grid = Npad // B
    Lout = B * Sp                              # lanes per grid step

    # ---- stage-1 transposed im2col (wrapper glue) ---------------------------
    # Final layout: (3, K1, Npad*Sp); leading axis = pool position j, lanes per
    # sample ordered (ho, wp) with per-sample stride Sp.  Only the W columns
    # that survive the floor pool are kept; pads are zero.
    x = jnp.transpose(x_nchw, (0, 2, 3, 1))                       # NCHW -> NHWC
    pat = _im2col_nhwc(x, KH1, KW1)                               # (N,Ho1,Wo1,K1)
    pat = pat[:, :, :3 * Wop, :]                                  # drop pooled-away W cols
    pat = pat.reshape(N, Ho1, Wop, 3, K1)                         # wo = 3*wp + j
    pat = pat.transpose(3, 4, 0, 1, 2).reshape(3, K1, N, S)       # (j, k, n, ho*Wop+wp)
    pat = jnp.pad(pat, ((0, 0), (0, 0), (0, Npad - N), (0, Sp - S)))
    p1t = pat.reshape(3, K1, Npad * Sp).astype(jnp.bfloat16)      # bf16 halves HBM reads

    # ---- fold eval-mode BN + conv bias into weights / shifts ----------------
    w1t, shift1 = _fold_bn_t(params["w1"], params["b1"], params["g1"],
                             params["be1"], params["m1"], params["v1"])
    w2t, shift2 = _fold_bn_t(params["w2"], params["b2"], params["g2"],
                             params["be2"], params["m2"], params["v2"])
    w1t = w1t.astype(jnp.bfloat16)                                # (C, K1)
    # conv2 weight as (KH2*KW2, Cout, Cin) so each tap is a leading-dim index.
    w2r = w2t.reshape(C, KH2 * KW2, C).transpose(1, 0, 2).astype(jnp.bfloat16)

    def kernel(p1_ref, w1_ref, sh1_ref, w2_ref, sh2_ref, o_ref, h_scr, acc_scr):
        w1 = w1_ref[...]
        # ---- stage 1: conv1 (BN scale folded) as 3 lane-dense MXU matmuls,
        #      one per pool position; MaxPool((1,3)) is a running slab max ----
        acc_scr[...] = jnp.dot(w1, p1_ref[0], preferred_element_type=jnp.float32)
        acc_scr[...] = jnp.maximum(
            acc_scr[...], jnp.dot(w1, p1_ref[1], preferred_element_type=jnp.float32))
        acc_scr[...] = jnp.maximum(
            acc_scr[...], jnp.dot(w1, p1_ref[2], preferred_element_type=jnp.float32))
        # Per-channel shift + ReLU commute with the max -> apply once, in bf16
        # for the stage-2 MXU.  h lanes per sample: ho*Wop + wp, stride Sp.
        h_scr[:, pl.ds(0, Lout)] = jnp.maximum(
            acc_scr[...] + sh1_ref[...], 0.0).astype(jnp.bfloat16)
        h_scr[:, pl.ds(Lout, Tpad)] = jnp.zeros((C, Tpad), jnp.bfloat16)

        # ---- stage 2: conv2 as KH2*KW2 shifted lane-dense matmuls, f32 acc,
        #      no im2col scratch.  The static lane shift kh*Wop+kw never
        #      crosses a sample's Sp-lane region for valid output positions. --
        acc_scr[...] = jnp.broadcast_to(sh2_ref[...], (C, Lout))
        for kh in range(KH2):
            for kw in range(KW2):
                off = kh * Wop + kw
                acc_scr[...] += jnp.dot(w2_ref[kh * KW2 + kw],
                                        h_scr[:, pl.ds(off, Lout)],
                                        preferred_element_type=jnp.float32)
        # Single contiguous lane-dense store.
        o_ref[...] = jnp.maximum(acc_scr[...], 0.0)

    out = pl.pallas_call(
        kernel,
        out_shape=jax.ShapeDtypeStruct((C, Npad * Sp), jnp.float32),
        grid=(grid,),
        in_specs=[
            pl.BlockSpec((3, K1, Lout), lambda i: (0, 0, i)),     # conv1 patches^T
            pl.BlockSpec((C, K1), lambda i: (0, 0)),              # conv1 weight^T (BN-scaled)
            pl.BlockSpec((C, 1), lambda i: (0, 0)),               # conv1 shift
            pl.BlockSpec((KH2 * KW2, C, C), lambda i: (0, 0, 0)),  # conv2 weight taps
            pl.BlockSpec((C, 1), lambda i: (0, 0)),               # conv2 shift
        ],
        out_specs=pl.BlockSpec((C, Lout), lambda i: (0, i)),
        scratch_shapes=[
            pltpu.VMEM((C, Lout + Tpad), jnp.bfloat16),   # pooled intermediate h
            pltpu.VMEM((C, Lout), jnp.float32),           # shared f32 accumulator
        ],
        compiler_params=pltpu.CompilerParams(
            dimension_semantics=("parallel",)),
    )(p1t, w1t, shift1, w2r, shift2)

    # Slice valid positions and flatten exactly like PyTorch (N,C,H,W)->(N,-1).
    y2 = out.reshape(C, Npad, Sp).transpose(1, 0, 2)[:N, :, :S]   # (N, C, Ho1*Wop)
    y2 = y2.reshape(N, C, Ho1, Wop)[:, :, :Ho2, :Wo2]
    return y2.reshape(N, -1)


# ---------------------------------------------------------------------------
# Pure-JAX reference (for correctness check)
# ---------------------------------------------------------------------------
def _reference_forward(x, p):
    def conv2d(x, w, b):
        y = jax.lax.conv_general_dilated(
            x, w, window_strides=(1, 1), padding="VALID",
            dimension_numbers=("NCHW", "OIHW", "NCHW"),
            precision=jax.lax.Precision.HIGHEST)
        return y + b[None, :, None, None]

    def bn(x, g, be, m, v, eps=1e-5):
        inv = g / jnp.sqrt(v + eps)
        return (x - m[None, :, None, None]) * inv[None, :, None, None] \
            + be[None, :, None, None]

    y = jax.nn.relu(bn(conv2d(x, p["w1"], p["b1"]),
                       p["g1"], p["be1"], p["m1"], p["v1"]))
    N, C, H, W = y.shape
    Wp = W // 3                                  # MaxPool2d((1,3)), floor mode
    y = y[:, :, :, :Wp * 3].reshape(N, C, H, Wp, 3).max(axis=-1)
    y = jax.nn.relu(bn(conv2d(y, p["w2"], p["b2"]),
                       p["g2"], p["be2"], p["m2"], p["v2"]))
    return y.reshape(N, -1)


# ---------------------------------------------------------------------------
def _init_params(key, in_channels, hid_channels):
    ks = jax.random.split(key, 12)
    C = hid_channels
    return {
        "w1": jax.random.normal(ks[0], (C, in_channels, 20, 8), jnp.float32) * 0.05,
        "b1": jax.random.normal(ks[1], (C,), jnp.float32) * 0.05,
        "g1": 1.0 + 0.1 * jax.random.normal(ks[2], (C,), jnp.float32),
        "be1": 0.1 * jax.random.normal(ks[3], (C,), jnp.float32),
        "m1": 0.1 * jax.random.normal(ks[4], (C,), jnp.float32),
        "v1": jax.random.uniform(ks[5], (C,), jnp.float32, 0.5, 1.5),
        "w2": jax.random.normal(ks[6], (C, C, 10, 4), jnp.float32) * 0.05,
        "b2": jax.random.normal(ks[7], (C,), jnp.float32) * 0.05,
        "g2": 1.0 + 0.1 * jax.random.normal(ks[8], (C,), jnp.float32),
        "be2": 0.1 * jax.random.normal(ks[9], (C,), jnp.float32),
        "m2": 0.1 * jax.random.normal(ks[10], (C,), jnp.float32),
        "v2": jax.random.uniform(ks[11], (C,), jnp.float32, 0.5, 1.5),
    }


if __name__ == "__main__":
    key = jax.random.PRNGKey(0)
    k_x, k_p = jax.random.split(key)

    in_channels, hid_channels, out_channels = 1, 8, 8   # hid == out (module requirement)
    # Small input consistent with the kernel sizes: H >= 29, W >= 19.
    x = jax.random.normal(k_x, (2, in_channels, 32, 20), jnp.float32)   # NCHW
    params = _init_params(k_p, in_channels, hid_channels)

    out = jax.jit(forward_pallas)(x, params)
    out = jax.block_until_ready(out)

    ref = _reference_forward(x, params)
    assert out.shape == ref.shape, (out.shape, ref.shape)
    # bf16 MXU operands (both stages) vs an f32-HIGHEST reference: accept small
    # rounding error, but any layout / ordering bug would be O(1) off and fail
    # both the absolute and the normalized check below by a wide margin.
    max_err = float(jnp.max(jnp.abs(out - ref)))
    rel_err = float(jnp.linalg.norm(out - ref) / (jnp.linalg.norm(ref) + 1e-12))
    assert jnp.allclose(out, ref, rtol=3e-2, atol=3e-2), (max_err, rel_err)
    assert rel_err < 2e-2, (max_err, rel_err)

    print("KERNEL_OK")
</pallas_src>

<mosaic_0001>
module attributes {stable_mosaic.version = 11 : i64} {
  func.func @kernel(%arg0: i32, %arg1: memref<3x160x256xbf16, #tpu.memory_space<vmem>>, %arg2: memref<8x160xbf16, #tpu.memory_space<vmem>>, %arg3: memref<8x1xf32, #tpu.memory_space<vmem>>, %arg4: memref<40x8x8xbf16, #tpu.memory_space<vmem>>, %arg5: memref<8x1xf32, #tpu.memory_space<vmem>>, %arg6: memref<8x256xf32, #tpu.memory_space<vmem>>, %arg7: memref<8x384xbf16, #tpu.memory_space<vmem>>, %arg8: memref<8x256xf32, #tpu.memory_space<vmem>>) attributes {dimension_semantics = [#tpu.dimension_semantics<parallel>], iteration_bounds = array<i64: 1>, scalar_prefetch = 0 : i64, scratch_operands = 2 : i64, tpu.core_type = #tpu.core_type<tc>, window_params = [{transform_indices = @transform_0, window_bounds = array<i64: 3, 160, 256>}, {pipeline_mode = #tpu.pipeline_mode<synchronous>, transform_indices = @transform_1, window_bounds = array<i64: 8, 160>}, {pipeline_mode = #tpu.pipeline_mode<synchronous>, transform_indices = @transform_2, window_bounds = array<i64: 8, 1>}, {pipeline_mode = #tpu.pipeline_mode<synchronous>, transform_indices = @transform_3, window_bounds = array<i64: 40, 8, 8>}, {pipeline_mode = #tpu.pipeline_mode<synchronous>, transform_indices = @transform_4, window_bounds = array<i64: 8, 1>}, {transform_indices = @transform_5, window_bounds = array<i64: 8, 256>}]} {
    %c0 = arith.constant 0 : index
    %c0_0 = arith.constant 0 : index
    %0 = vector.load %arg2[%c0, %c0_0] : memref<8x160xbf16, #tpu.memory_space<vmem>>, vector<8x160xbf16>
    %c0_1 = arith.constant 0 : index
    %c0_2 = arith.constant 0 : index
    %c0_3 = arith.constant 0 : index
    %1 = vector.load %arg1[%c0_1, %c0_2, %c0_3] : memref<3x160x256xbf16, #tpu.memory_space<vmem>>, vector<1x160x256xbf16>
    %2 = vector.shape_cast %1 : vector<1x160x256xbf16> to vector<160x256xbf16>
    %cst = arith.constant dense<0.000000e+00> : vector<8x256xf32>
    %3 = tpu.matmul %0, %2, %cst {dimension_numbers = #tpu.dot_dimension_numbers<[1], [0], [0], [1], [0, 0, 1, 1], [], []>} : vector<8x160xbf16>, vector<160x256xbf16>, vector<8x256xf32> -> vector<8x256xf32>
    %c0_4 = arith.constant 0 : index
    %c0_5 = arith.constant 0 : index
    %4 = vector.load %arg8[%c0_4, %c0_5] : memref<8x256xf32, #tpu.memory_space<vmem>>, vector<8x256xf32>
    tpu.vector_store %arg8[%c0_4, %c0_5], %3 {strides = array<i32>} : memref<8x256xf32, #tpu.memory_space<vmem>>, vector<8x256xf32>,
    %c0_6 = arith.constant 0 : index
    %c0_7 = arith.constant 0 : index
    %5 = vector.load %arg8[%c0_6, %c0_7] : memref<8x256xf32, #tpu.memory_space<vmem>>, vector<8x256xf32>
    %c1 = arith.constant 1 : index
    %c0_8 = arith.constant 0 : index
    %c0_9 = arith.constant 0 : index
    %6 = vector.load %arg1[%c1, %c0_8, %c0_9] : memref<3x160x256xbf16, #tpu.memory_space<vmem>>, vector<1x160x256xbf16>
    %7 = vector.shape_cast %6 : vector<1x160x256xbf16> to vector<160x256xbf16>
    %cst_10 = arith.constant dense<0.000000e+00> : vector<8x256xf32>
    %8 = tpu.matmul %0, %7, %cst_10 {dimension_numbers = #tpu.dot_dimension_numbers<[1], [0], [0], [1], [0, 0, 1, 1], [], []>} : vector<8x160xbf16>, vector<160x256xbf16>, vector<8x256xf32> -> vector<8x256xf32>
    %9 = arith.maximumf %5, %8 : vector<8x256xf32>
    %c0_11 = arith.constant 0 : index
    %c0_12 = arith.constant 0 : index
    %10 = vector.load %arg8[%c0_11, %c0_12] : memref<8x256xf32, #tpu.memory_space<vmem>>, vector<8x256xf32>
    tpu.vector_store %arg8[%c0_11, %c0_12], %9 {strides = array<i32>} : memref<8x256xf32, #tpu.memory_space<vmem>>, vector<8x256xf32>,
    %c0_13 = arith.constant 0 : index
    %c0_14 = arith.constant 0 : index
    %11 = vector.load %arg8[%c0_13, %c0_14] : memref<8x256xf32, #tpu.memory_space<vmem>>, vector<8x256xf32>
    %c2 = arith.constant 2 : index
    %c0_15 = arith.constant 0 : index
    %c0_16 = arith.constant 0 : index
    %12 = vector.load %arg1[%c2, %c0_15, %c0_16] : memref<3x160x256xbf16, #tpu.memory_space<vmem>>, vector<1x160x256xbf16>
    %13 = vector.shape_cast %12 : vector<1x160x256xbf16> to vector<160x256xbf16>
    %cst_17 = arith.constant dense<0.000000e+00> : vector<8x256xf32>
    %14 = tpu.matmul %0, %13, %cst_17 {dimension_numbers = #tpu.dot_dimension_numbers<[1], [0], [0], [1], [0, 0, 1, 1], [], []>} : vector<8x160xbf16>, vector<160x256xbf16>, vector<8x256xf32> -> vector<8x256xf32>
    %15 = arith.maximumf %11, %14 : vector<8x256xf32>
    %c0_18 = arith.constant 0 : index
    %c0_19 = arith.constant 0 : index
    %16 = vector.load %arg8[%c0_18, %c0_19] : memref<8x256xf32, #tpu.memory_space<vmem>>, vector<8x256xf32>
    tpu.vector_store %arg8[%c0_18, %c0_19], %15 {strides = array<i32>} : memref<8x256xf32, #tpu.memory_space<vmem>>, vector<8x256xf32>,
    %c0_20 = arith.constant 0 : index
    %c0_21 = arith.constant 0 : index
    %17 = vector.load %arg8[%c0_20, %c0_21] : memref<8x256xf32, #tpu.memory_space<vmem>>, vector<8x256xf32>
    %c0_22 = arith.constant 0 : index
    %c0_23 = arith.constant 0 : index
    %18 = vector.load %arg3[%c0_22, %c0_23] : memref<8x1xf32, #tpu.memory_space<vmem>>, vector<8x1xf32>
    %19 = vector.broadcast %18 : vector<8x1xf32> to vector<8x256xf32>
    %20 = arith.addf %17, %19 : vector<8x256xf32>
    %cst_24 = arith.constant 0.000000e+00 : f32
    %21 = vector.broadcast %cst_24 : f32 to vector<8x256xf32>
    %22 = arith.maximumf %20, %21 : vector<8x256xf32>
    %23 = arith.truncf %22 : vector<8x256xf32> to vector<8x256xbf16>
    %c0_25 = arith.constant 0 : index
    %c0_26 = arith.constant 0 : index
    %24 = vector.load %arg7[%c0_25, %c0_26] : memref<8x384xbf16, #tpu.memory_space<vmem>>, vector<8x256xbf16>
    tpu.vector_store %arg7[%c0_25, %c0_26], %23 {strides = array<i32>} : memref<8x384xbf16, #tpu.memory_space<vmem>>, vector<8x256xbf16>,
    %cst_27 = arith.constant 0.000000e+00 : bf16
    %25 = vector.broadcast %cst_27 : bf16 to vector<8x128xbf16>
    %c0_28 = arith.constant 0 : index
    %c256 = arith.constant 256 : index
    %26 = vector.load %arg7[%c0_28, %c256] : memref<8x384xbf16, #tpu.memory_space<vmem>>, vector<8x128xbf16>
    tpu.vector_store %arg7[%c0_28, %c256], %25 {strides = array<i32>} : memref<8x384xbf16, #tpu.memory_space<vmem>>, vector<8x128xbf16>,
    %c0_29 = arith.constant 0 : index
    %c0_30 = arith.constant 0 : index
    %27 = vector.load %arg5[%c0_29, %c0_30] : memref<8x1xf32, #tpu.memory_space<vmem>>, vector<8x1xf32>
    %28 = vector.shape_cast %27 : vector<8x1xf32> to vector<8x1xf32>
    %29 = vector.broadcast %28 : vector<8x1xf32> to vector<8x256xf32>
    %c0_31 = arith.constant 0 : index
    %c0_32 = arith.constant 0 : index
    %30 = vector.load %arg8[%c0_31, %c0_32] : memref<8x256xf32, #tpu.memory_space<vmem>>, vector<8x256xf32>
    tpu.vector_store %arg8[%c0_31, %c0_32], %29 {strides = array<i32>} : memref<8x256xf32, #tpu.memory_space<vmem>>, vector<8x256xf32>,
    %c0_33 = arith.constant 0 : index
    %c0_34 = arith.constant 0 : index
    %31 = vector.load %arg8[%c0_33, %c0_34] : memref<8x256xf32, #tpu.memory_space<vmem>>, vector<8x256xf32>
    %c0_35 = arith.constant 0 : index
    %c0_36 = arith.constant 0 : index
    %c0_37 = arith.constant 0 : index
    %32 = vector.load %arg4[%c0_35, %c0_36, %c0_37] : memref<40x8x8xbf16, #tpu.memory_space<vmem>>, vector<1x8x8xbf16>
    %33 = vector.shape_cast %32 : vector<1x8x8xbf16> to vector<8x8xbf16>
    %c0_38 = arith.constant 0 : index
    %c0_39 = arith.constant 0 : index
    %34 = vector.load %arg7[%c0_38, %c0_39] : memref<8x384xbf16, #tpu.memory_space<vmem>>, vector<8x256xbf16>
    %cst_40 = arith.constant dense<0.000000e+00> : vector<8x256xf32>
    %35 = tpu.matmul %33, %34, %cst_40 {dimension_numbers = #tpu.dot_dimension_numbers<[1], [0], [0], [1], [0, 0, 1, 1], [], []>} : vector<8x8xbf16>, vector<8x256xbf16>, vector<8x256xf32> -> vector<8x256xf32>
    %36 = arith.addf %31, %35 : vector<8x256xf32>
    %c0_41 = arith.constant 0 : index
    %c0_42 = arith.constant 0 : index
    %37 = vector.load %arg8[%c0_41, %c0_42] : memref<8x256xf32, #tpu.memory_space<vmem>>, vector<8x256xf32>
    tpu.vector_store %arg8[%c0_41, %c0_42], %36 {strides = array<i32>} : memref<8x256xf32, #tpu.memory_space<vmem>>, vector<8x256xf32>,
    %c0_43 = arith.constant 0 : index
    %c0_44 = arith.constant 0 : index
    %38 = vector.load %arg8[%c0_43, %c0_44] : memref<8x256xf32, #tpu.memory_space<vmem>>, vector<8x256xf32>
    %c1_45 = arith.constant 1 : index
    %c0_46 = arith.constant 0 : index
    %c0_47 = arith.constant 0 : index
    %39 = vector.load %arg4[%c1_45, %c0_46, %c0_47] : memref<40x8x8xbf16, #tpu.memory_space<vmem>>, vector<1x8x8xbf16>
    %40 = vector.shape_cast %39 : vector<1x8x8xbf16> to vector<8x8xbf16>
    %c0_48 = arith.constant 0 : index
    %c1_49 = arith.constant 1 : index
    %41 = vector.load %arg7[%c0_48, %c1_49] : memref<8x384xbf16, #tpu.memory_space<vmem>>, vector<8x256xbf16>
    %cst_50 = arith.constant dense<0.000000e+00> : vector<8x256xf32>
    %42 = tpu.matmul %40, %41, %cst_50 {dimension_numbers = #tpu.dot_dimension_numbers<[1], [0], [0], [1], [0, 0, 1, 1], [], []>} : vector<8x8xbf16>, vector<8x256xbf16>, vector<8x256xf32> -> vector<8x256xf32>
    %43 = arith.addf %38, %42 : vector<8x256xf32>
    %c0_51 = arith.constant 0 : index
    %c0_52 = arith.constant 0 : index
    %44 = vector.load %arg8[%c0_51, %c0_52] : memref<8x256xf32, #tpu.memory_space<vmem>>, vector<8x256xf32>
    tpu.vector_store %arg8[%c0_51, %c0_52], %43 {strides = array<i32>} : memref<8x256xf32, #tpu.memory_space<vmem>>, vector<8x256xf32>,
    %c0_53 = arith.constant 0 : index
    %c0_54 = arith.constant 0 : index
    %45 = vector.load %arg8[%c0_53, %c0_54] : memref<8x256xf32, #tpu.memory_space<vmem>>, vector<8x256xf32>
    %c2_55 = arith.constant 2 : index
    %c0_56 = arith.constant 0 : index
    %c0_57 = arith.constant 0 : index
    %46 = vector.load %arg4[%c2_55, %c0_56, %c0_57] : memref<40x8x8xbf16, #tpu.memory_space<vmem>>, vector<1x8x8xbf16>
    %47 = vector.shape_cast %46 : vector<1x8x8xbf16> to vector<8x8xbf16>
    %c0_58 = arith.constant 0 : index
    %c2_59 = arith.constant 2 : index
    %48 = vector.load %arg7[%c0_58, %c2_59] : memref<8x384xbf16, #tpu.memory_space<vmem>>, vector<8x256xbf16>
    %cst_60 = arith.constant dense<0.000000e+00> : vector<8x256xf32>
    %49 = tpu.matmul %47, %48, %cst_60 {dimension_numbers = #tpu.dot_dimension_numbers<[1], [0], [0], [1], [0, 0, 1, 1], [], []>} : vector<8x8xbf16>, vector<8x256xbf16>, vector<8x256xf32> -> vector<8x256xf32>
    %50 = arith.addf %45, %49 : vector<8x256xf32>
    %c0_61 = arith.constant 0 : index
    %c0_62 = arith.constant 0 : index
    %51 = vector.load %arg8[%c0_61, %c0_62] : memref<8x256xf32, #tpu.memory_space<vmem>>, vector<8x256xf32>
    tpu.vector_store %arg8[%c0_61, %c0_62], %50 {strides = array<i32>} : memref<8x256xf32, #tpu.memory_space<vmem>>, vector<8x256xf32>,
    %c0_63 = arith.constant 0 : index
    %c0_64 = arith.constant 0 : index
    %52 = vector.load %arg8[%c0_63, %c0_64] : memref<8x256xf32, #tpu.memory_space<vmem>>, vector<8x256xf32>
    %c3 = arith.constant 3 : index
    %c0_65 = arith.constant 0 : index
    %c0_66 = arith.constant 0 : index
    %53 = vector.load %arg4[%c3, %c0_65, %c0_66] : memref<40x8x8xbf16, #tpu.memory_space<vmem>>, vector<1x8x8xbf16>
    %54 = vector.shape_cast %53 : vector<1x8x8xbf16> to vector<8x8xbf16>
    %c0_67 = arith.constant 0 : index
    %c3_68 = arith.constant 3 : index
    %55 = vector.load %arg7[%c0_67, %c3_68] : memref<8x384xbf16, #tpu.memory_space<vmem>>, vector<8x256xbf16>
    %cst_69 = arith.constant dense<0.000000e+00> : vector<8x256xf32>
    %56 = tpu.matmul %54, %55, %cst_69 {dimension_numbers = #tpu.dot_dimension_numbers<[1], [0], [0], [1], [0, 0, 1, 1], [], []>} : vector<8x8xbf16>, vector<8x256xbf16>, vector<8x256xf32> -> vector<8x256xf32>
    %57 = arith.addf %52, %56 : vector<8x256xf32>
    %c0_70 = arith.constant 0 : index
    %c0_71 = arith.constant 0 : index
    %58 = vector.load %arg8[%c0_70, %c0_71] : memref<8x256xf32, #tpu.memory_space<vmem>>, vector<8x256xf32>
    tpu.vector_store %arg8[%c0_70, %c0_71], %57 {strides = array<i32>} : memref<8x256xf32, #tpu.memory_space<vmem>>, vector<8x256xf32>,
    %c0_72 = arith.constant 0 : index
    %c0_73 = arith.constant 0 : index
    %59 = vector.load %arg8[%c0_72, %c0_73] : memref<8x256xf32, #tpu.memory_space<vmem>>, vector<8x256xf32>
    %c4 = arith.constant 4 : index
    %c0_74 = arith.constant 0 : index
    %c0_75 = arith.constant 0 : index
    %60 = vector.load %arg4[%c4, %c0_74, %c0_75] : memref<40x8x8xbf16, #tpu.memory_space<vmem>>, vector<1x8x8xbf16>
    %61 = vector.shape_cast %60 : vector<1x8x8xbf16> to vector<8x8xbf16>
    %c0_76 = arith.constant 0 : index
    %c4_77 = arith.constant 4 : index
    %62 = vector.load %arg7[%c0_76, %c4_77] : memref<8x384xbf16, #tpu.memory_space<vmem>>, vector<8x256xbf16>
    %cst_78 = arith.constant dense<0.000000e+00> : vector<8x256xf32>
    %63 = tpu.matmul %61, %62, %cst_78 {dimension_numbers = #tpu.dot_dimension_numbers<[1], [0], [0], [1], [0, 0, 1, 1], [], []>} : vector<8x8xbf16>, vector<8x256xbf16>, vector<8x256xf32> -> vector<8x256xf32>
    %64 = arith.addf %59, %63 : vector<8x256xf32>
    %c0_79 = arith.constant 0 : index
    %c0_80 = arith.constant 0 : index
    %65 = vector.load %arg8[%c0_79, %c0_80] : memref<8x256xf32, #tpu.memory_space<vmem>>, vector<8x256xf32>
    tpu.vector_store %arg8[%c0_79, %c0_80], %64 {strides = array<i32>} : memref<8x256xf32, #tpu.memory_space<vmem>>, vector<8x256xf32>,
    %c0_81 = arith.constant 0 : index
    %c0_82 = arith.constant 0 : index
    %66 = vector.load %arg8[%c0_81, %c0_82] : memref<8x256xf32, #tpu.memory_space<vmem>>, vector<8x256xf32>
    %c5 = arith.constant 5 : index
    %c0_83 = arith.constant 0 : index
    %c0_84 = arith.constant 0 : index
    %67 = vector.load %arg4[%c5, %c0_83, %c0_84] : memref<40x8x8xbf16, #tpu.memory_space<vmem>>, vector<1x8x8xbf16>
    %68 = vector.shape_cast %67 : vector<1x8x8xbf16> to vector<8x8xbf16>
    %c0_85 = arith.constant 0 : index
    %c5_86 = arith.constant 5 : index
    %69 = vector.load %arg7[%c0_85, %c5_86] : memref<8x384xbf16, #tpu.memory_space<vmem>>, vector<8x256xbf16>
    %cst_87 = arith.constant dense<0.000000e+00> : vector<8x256xf32>
    %70 = tpu.matmul %68, %69, %cst_87 {dimension_numbers = #tpu.dot_dimension_numbers<[1], [0], [0], [1], [0, 0, 1, 1], [], []>} : vector<8x8xbf16>, vector<8x256xbf16>, vector<8x256xf32> -> vector<8x256xf32>
    %71 = arith.addf %66, %70 : vector<8x256xf32>
    %c0_88 = arith.constant 0 : index
    %c0_89 = arith.constant 0 : index
    %72 = vector.load %arg8[%c0_88, %c0_89] : memref<8x256xf32, #tpu.memory_space<vmem>>, vector<8x256xf32>
    tpu.vector_store %arg8[%c0_88, %c0_89], %71 {strides = array<i32>} : memref<8x256xf32, #tpu.memory_space<vmem>>, vector<8x256xf32>,
    %c0_90 = arith.constant 0 : index
    %c0_91 = arith.constant 0 : index
    %73 = vector.load %arg8[%c0_90, %c0_91] : memref<8x256xf32, #tpu.memory_space<vmem>>, vector<8x256xf32>
    %c6 = arith.constant 6 : index
    %c0_92 = arith.constant 0 : index
    %c0_93 = arith.constant 0 : index
    %74 = vector.load %arg4[%c6, %c0_92, %c0_93] : memref<40x8x8xbf16, #tpu.memory_space<vmem>>, vector<1x8x8xbf16>
    %75 = vector.shape_cast %74 : vector<1x8x8xbf16> to vector<8x8xbf16>
    %c0_94 = arith.constant 0 : index
    %c6_95 = arith.constant 6 : index
    %76 = vector.load %arg7[%c0_94, %c6_95] : memref<8x384xbf16, #tpu.memory_space<vmem>>, vector<8x256xbf16>
    %cst_96 = arith.constant dense<0.000000e+00> : vector<8x256xf32>
    %77 = tpu.matmul %75, %76, %cst_96 {dimension_numbers = #tpu.dot_dimension_numbers<[1], [0], [0], [1], [0, 0, 1, 1], [], []>} : vector<8x8xbf16>, vector<8x256xbf16>, vector<8x256xf32> -> vector<8x256xf32>
    %78 = arith.addf %73, %77 : vector<8x256xf32>
    %c0_97 = arith.constant 0 : index
    %c0_98 = arith.constant 0 : index
    %79 = vector.load %arg8[%c0_97, %c0_98] : memref<8x256xf32, #tpu.memory_space<vmem>>, vector<8x256xf32>
    tpu.vector_store %arg8[%c0_97, %c0_98], %78 {strides = array<i32>} : memref<8x256xf32, #tpu.memory_space<vmem>>, vector<8x256xf32>,
    %c0_99 = arith.constant 0 : index
    %c0_100 = arith.constant 0 : index
    %80 = vector.load %arg8[%c0_99, %c0_100] : memref<8x256xf32, #tpu.memory_space<vmem>>, vector<8x256xf32>
    %c7 = arith.constant 7 : index
    %c0_101 = arith.constant 0 : index
    %c0_102 = arith.constant 0 : index
    %81 = vector.load %arg4[%c7, %c0_101, %c0_102] : memref<40x8x8xbf16, #tpu.memory_space<vmem>>, vector<1x8x8xbf16>
    %82 = vector.shape_cast %81 : vector<1x8x8xbf16> to vector<8x8xbf16>
    %c0_103 = arith.constant 0 : index
    %c7_104 = arith.constant 7 : index
    %83 = vector.load %arg7[%c0_103, %c7_104] : memref<8x384xbf16, #tpu.memory_space<vmem>>, vector<8x256xbf16>
    %cst_105 = arith.constant dense<0.000000e+00> : vector<8x256xf32>
    %84 = tpu.matmul %82, %83, %cst_105 {dimension_numbers = #tpu.dot_dimension_numbers<[1], [0], [0], [1], [0, 0, 1, 1], [], []>} : vector<8x8xbf16>, vector<8x256xbf16>, vector<8x256xf32> -> vector<8x256xf32>
    %85 = arith.addf %80, %84 : vector<8x256xf32>
    %c0_106 = arith.constant 0 : index
    %c0_107 = arith.constant 0 : index
    %86 = vector.load %arg8[%c0_106, %c0_107] : memref<8x256xf32, #tpu.memory_space<vmem>>, vector<8x256xf32>
    tpu.vector_store %arg8[%c0_106, %c0_107], %85 {strides = array<i32>} : memref<8x256xf32, #tpu.memory_space<vmem>>, vector<8x256xf32>,
    %c0_108 = arith.constant 0 : index
    %c0_109 = arith.constant 0 : index
    %87 = vector.load %arg8[%c0_108, %c0_109] : memref<8x256xf32, #tpu.memory_space<vmem>>, vector<8x256xf32>
    %c8 = arith.constant 8 : index
    %c0_110 = arith.constant 0 : index
    %c0_111 = arith.constant 0 : index
    %88 = vector.load %arg4[%c8, %c0_110, %c0_111] : memref<40x8x8xbf16, #tpu.memory_space<vmem>>, vector<1x8x8xbf16>
    %89 = vector.shape_cast %88 : vector<1x8x8xbf16> to vector<8x8xbf16>
    %c0_112 = arith.constant 0 : index
    %c8_113 = arith.constant 8 : index
    %90 = vector.load %arg7[%c0_112, %c8_113] : memref<8x384xbf16, #tpu.memory_space<vmem>>, vector<8x256xbf16>
    %cst_114 = arith.constant dense<0.000000e+00> : vector<8x256xf32>
    %91 = tpu.matmul %89, %90, %cst_114 {dimension_numbers = #tpu.dot_dimension_numbers<[1], [0], [0], [1], [0, 0, 1, 1], [], []>} : vector<8x8xbf16>, vector<8x256xbf16>, vector<8x256xf32> -> vector<8x256xf32>
    %92 = arith.addf %87, %91 : vector<8x256xf32>
    %c0_115 = arith.constant 0 : index
    %c0_116 = arith.constant 0 : index
    %93 = vector.load %arg8[%c0_115, %c0_116] : memref<8x256xf32, #tpu.memory_space<vmem>>, vector<8x256xf32>
    tpu.vector_store %arg8[%c0_115, %c0_116], %92 {strides = array<i32>} : memref<8x256xf32, #tpu.memory_space<vmem>>, vector<8x256xf32>,
    %c0_117 = arith.constant 0 : index
    %c0_118 = arith.constant 0 : index
    %94 = vector.load %arg8[%c0_117, %c0_118] : memref<8x256xf32, #tpu.memory_space<vmem>>, vector<8x256xf32>
    %c9 = arith.constant 9 : index
    %c0_119 = arith.constant 0 : index
    %c0_120 = arith.constant 0 : index
    %95 = vector.load %arg4[%c9, %c0_119, %c0_120] : memref<40x8x8xbf16, #tpu.memory_space<vmem>>, vector<1x8x8xbf16>
    %96 = vector.shape_cast %95 : vector<1x8x8xbf16> to vector<8x8xbf16>
    %c0_121 = arith.constant 0 : index
    %c9_122 = arith.constant 9 : index
    %97 = vector.load %arg7[%c0_121, %c9_122] : memref<8x384xbf16, #tpu.memory_space<vmem>>, vector<8x256xbf16>
    %cst_123 = arith.constant dense<0.000000e+00> : vector<8x256xf32>
    %98 = tpu.matmul %96, %97, %cst_123 {dimension_numbers = #tpu.dot_dimension_numbers<[1], [0], [0], [1], [0, 0, 1, 1], [], []>} : vector<8x8xbf16>, vector<8x256xbf16>, vector<8x256xf32> -> vector<8x256xf32>
    %99 = arith.addf %94, %98 : vector<8x256xf32>
    %c0_124 = arith.constant 0 : index
    %c0_125 = arith.constant 0 : index
    %100 = vector.load %arg8[%c0_124, %c0_125] : memref<8x256xf32, #tpu.memory_space<vmem>>, vector<8x256xf32>
    tpu.vector_store %arg8[%c0_124, %c0_125], %99 {strides = array<i32>} : memref<8x256xf32, #tpu.memory_space<vmem>>, vector<8x256xf32>,
    %c0_126 = arith.constant 0 : index
    %c0_127 = arith.constant 0 : index
    %101 = vector.load %arg8[%c0_126, %c0_127] : memref<8x256xf32, #tpu.memory_space<vmem>>, vector<8x256xf32>
    %c10 = arith.constant 10 : index
    %c0_128 = arith.constant 0 : index
    %c0_129 = arith.constant 0 : index
    %102 = vector.load %arg4[%c10, %c0_128, %c0_129] : memref<40x8x8xbf16, #tpu.memory_space<vmem>>, vector<1x8x8xbf16>
    %103 = vector.shape_cast %102 : vector<1x8x8xbf16> to vector<8x8xbf16>
    %c0_130 = arith.constant 0 : index
    %c10_131 = arith.constant 10 : index
    %104 = vector.load %arg7[%c0_130, %c10_131] : memref<8x384xbf16, #tpu.memory_space<vmem>>, vector<8x256xbf16>
    %cst_132 = arith.constant dense<0.000000e+00> : vector<8x256xf32>
    %105 = tpu.matmul %103, %104, %cst_132 {dimension_numbers = #tpu.dot_dimension_numbers<[1], [0], [0], [1], [0, 0, 1, 1], [], []>} : vector<8x8xbf16>, vector<8x256xbf16>, vector<8x256xf32> -> vector<8x256xf32>
    %106 = arith.addf %101, %105 : vector<8x256xf32>
    %c0_133 = arith.constant 0 : index
    %c0_134 = arith.constant 0 : index
    %107 = vector.load %arg8[%c0_133, %c0_134] : memref<8x256xf32, #tpu.memory_space<vmem>>, vector<8x256xf32>
    tpu.vector_store %arg8[%c0_133, %c0_134], %106 {strides = array<i32>} : memref<8x256xf32, #tpu.memory_space<vmem>>, vector<8x256xf32>,
    %c0_135 = arith.constant 0 : index
    %c0_136 = arith.constant 0 : index
    %108 = vector.load %arg8[%c0_135, %c0_136] : memref<8x256xf32, #tpu.memory_space<vmem>>, vector<8x256xf32>
    %c11 = arith.constant 11 : index
    %c0_137 = arith.constant 0 : index
    %c0_138 = arith.constant 0 : index
    %109 = vector.load %arg4[%c11, %c0_137, %c0_138] : memref<40x8x8xbf16, #tpu.memory_space<vmem>>, vector<1x8x8xbf16>
    %110 = vector.shape_cast %109 : vector<1x8x8xbf16> to vector<8x8xbf16>
    %c0_139 = arith.constant 0 : index
    %c11_140 = arith.constant 11 : index
    %111 = vector.load %arg7[%c0_139, %c11_140] : memref<8x384xbf16, #tpu.memory_space<vmem>>, vector<8x256xbf16>
    %cst_141 = arith.constant dense<0.000000e+00> : vector<8x256xf32>
    %112 = tpu.matmul %110, %111, %cst_141 {dimension_numbers = #tpu.dot_dimension_numbers<[1], [0], [0], [1], [0, 0, 1, 1], [], []>} : vector<8x8xbf16>, vector<8x256xbf16>, vector<8x256xf32> -> vector<8x256xf32>
    %113 = arith.addf %108, %112 : vector<8x256xf32>
    %c0_142 = arith.constant 0 : index
    %c0_143 = arith.constant 0 : index
    %114 = vector.load %arg8[%c0_142, %c0_143] : memref<8x256xf32, #tpu.memory_space<vmem>>, vector<8x256xf32>
    tpu.vector_store %arg8[%c0_142, %c0_143], %113 {strides = array<i32>} : memref<8x256xf32, #tpu.memory_space<vmem>>, vector<8x256xf32>,
    %c0_144 = arith.constant 0 : index
    %c0_145 = arith.constant 0 : index
    %115 = vector.load %arg8[%c0_144, %c0_145] : memref<8x256xf32, #tpu.memory_space<vmem>>, vector<8x256xf32>
    %c12 = arith.constant 12 : index
    %c0_146 = arith.constant 0 : index
    %c0_147 = arith.constant 0 : index
    %116 = vector.load %arg4[%c12, %c0_146, %c0_147] : memref<40x8x8xbf16, #tpu.memory_space<vmem>>, vector<1x8x8xbf16>
    %117 = vector.shape_cast %116 : vector<1x8x8xbf16> to vector<8x8xbf16>
    %c0_148 = arith.constant 0 : index
    %c12_149 = arith.constant 12 : index
    %118 = vector.load %arg7[%c0_148, %c12_149] : memref<8x384xbf16, #tpu.memory_space<vmem>>, vector<8x256xbf16>
    %cst_150 = arith.constant dense<0.000000e+00> : vector<8x256xf32>
    %119 = tpu.matmul %117, %118, %cst_150 {dimension_numbers = #tpu.dot_dimension_numbers<[1], [0], [0], [1], [0, 0, 1, 1], [], []>} : vector<8x8xbf16>, vector<8x256xbf16>, vector<8x256xf32> -> vector<8x256xf32>
    %120 = arith.addf %115, %119 : vector<8x256xf32>
    %c0_151 = arith.constant 0 : index
    %c0_152 = arith.constant 0 : index
    %121 = vector.load %arg8[%c0_151, %c0_152] : memref<8x256xf32, #tpu.memory_space<vmem>>, vector<8x256xf32>
    tpu.vector_store %arg8[%c0_151, %c0_152], %120 {strides = array<i32>} : memref<8x256xf32, #tpu.memory_space<vmem>>, vector<8x256xf32>,
    %c0_153 = arith.constant 0 : index
    %c0_154 = arith.constant 0 : index
    %122 = vector.load %arg8[%c0_153, %c0_154] : memref<8x256xf32, #tpu.memory_space<vmem>>, vector<8x256xf32>
    %c13 = arith.constant 13 : index
    %c0_155 = arith.constant 0 : index
    %c0_156 = arith.constant 0 : index
    %123 = vector.load %arg4[%c13, %c0_155, %c0_156] : memref<40x8x8xbf16, #tpu.memory_space<vmem>>, vector<1x8x8xbf16>
    %124 = vector.shape_cast %123 : vector<1x8x8xbf16> to vector<8x8xbf16>
    %c0_157 = arith.constant 0 : index
    %c13_158 = arith.constant 13 : index
    %125 = vector.load %arg7[%c0_157, %c13_158] : memref<8x384xbf16, #tpu.memory_space<vmem>>, vector<8x256xbf16>
    %cst_159 = arith.constant dense<0.000000e+00> : vector<8x256xf32>
    %126 = tpu.matmul %124, %125, %cst_159 {dimension_numbers = #tpu.dot_dimension_numbers<[1], [0], [0], [1], [0, 0, 1, 1], [], []>} : vector<8x8xbf16>, vector<8x256xbf16>, vector<8x256xf32> -> vector<8x256xf32>
    %127 = arith.addf %122, %126 : vector<8x256xf32>
    %c0_160 = arith.constant 0 : index
    %c0_161 = arith.constant 0 : index
    %128 = vector.load %arg8[%c0_160, %c0_161] : memref<8x256xf32, #tpu.memory_space<vmem>>, vector<8x256xf32>
    tpu.vector_store %arg8[%c0_160, %c0_161], %127 {strides = array<i32>} : memref<8x256xf32, #tpu.memory_space<vmem>>, vector<8x256xf32>,
    %c0_162 = arith.constant 0 : index
    %c0_163 = arith.constant 0 : index
    %129 = vector.load %arg8[%c0_162, %c0_163] : memref<8x256xf32, #tpu.memory_space<vmem>>, vector<8x256xf32>
    %c14 = arith.constant 14 : index
    %c0_164 = arith.constant 0 : index
    %c0_165 = arith.constant 0 : index
    %130 = vector.load %arg4[%c14, %c0_164, %c0_165] : memref<40x8x8xbf16, #tpu.memory_space<vmem>>, vector<1x8x8xbf16>
    %131 = vector.shape_cast %130 : vector<1x8x8xbf16> to vector<8x8xbf16>
    %c0_166 = arith.constant 0 : index
    %c14_167 = arith.constant 14 : index
    %132 = vector.load %arg7[%c0_166, %c14_167] : memref<8x384xbf16, #tpu.memory_space<vmem>>, vector<8x256xbf16>
    %cst_168 = arith.constant dense<0.000000e+00> : vector<8x256xf32>
    %133 = tpu.matmul %131, %132, %cst_168 {dimension_numbers = #tpu.dot_dimension_numbers<[1], [0], [0], [1], [0, 0, 1, 1], [], []>} : vector<8x8xbf16>, vector<8x256xbf16>, vector<8x256xf32> -> vector<8x256xf32>
    %134 = arith.addf %129, %133 : vector<8x256xf32>
    %c0_169 = arith.constant 0 : index
    %c0_170 = arith.constant 0 : index
    %135 = vector.load %arg8[%c0_169, %c0_170] : memref<8x256xf32, #tpu.memory_space<vmem>>, vector<8x256xf32>
    tpu.vector_store %arg8[%c0_169, %c0_170], %134 {strides = array<i32>} : memref<8x256xf32, #tpu.memory_space<vmem>>, vector<8x256xf32>,
    %c0_171 = arith.constant 0 : index
    %c0_172 = arith.constant 0 : index
    %136 = vector.load %arg8[%c0_171, %c0_172] : memref<8x256xf32, #tpu.memory_space<vmem>>, vector<8x256xf32>
    %c15 = arith.constant 15 : index
    %c0_173 = arith.constant 0 : index
    %c0_174 = arith.constant 0 : index
    %137 = vector.load %arg4[%c15, %c0_173, %c0_174] : memref<40x8x8xbf16, #tpu.memory_space<vmem>>, vector<1x8x8xbf16>
    %138 = vector.shape_cast %137 : vector<1x8x8xbf16> to vector<8x8xbf16>
    %c0_175 = arith.constant 0 : index
    %c15_176 = arith.constant 15 : index
    %139 = vector.load %arg7[%c0_175, %c15_176] : memref<8x384xbf16, #tpu.memory_space<vmem>>, vector<8x256xbf16>
    %cst_177 = arith.constant dense<0.000000e+00> : vector<8x256xf32>
    %140 = tpu.matmul %138, %139, %cst_177 {dimension_numbers = #tpu.dot_dimension_numbers<[1], [0], [0], [1], [0, 0, 1, 1], [], []>} : vector<8x8xbf16>, vector<8x256xbf16>, vector<8x256xf32> -> vector<8x256xf32>
    %141 = arith.addf %136, %140 : vector<8x256xf32>
    %c0_178 = arith.constant 0 : index
    %c0_179 = arith.constant 0 : index
    %142 = vector.load %arg8[%c0_178, %c0_179] : memref<8x256xf32, #tpu.memory_space<vmem>>, vector<8x256xf32>
    tpu.vector_store %arg8[%c0_178, %c0_179], %141 {strides = array<i32>} : memref<8x256xf32, #tpu.memory_space<vmem>>, vector<8x256xf32>,
    %c0_180 = arith.constant 0 : index
    %c0_181 = arith.constant 0 : index
    %143 = vector.load %arg8[%c0_180, %c0_181] : memref<8x256xf32, #tpu.memory_space<vmem>>, vector<8x256xf32>
    %c16 = arith.constant 16 : index
    %c0_182 = arith.constant 0 : index
    %c0_183 = arith.constant 0 : index
    %144 = vector.load %arg4[%c16, %c0_182, %c0_183] : memref<40x8x8xbf16, #tpu.memory_space<vmem>>, vector<1x8x8xbf16>
    %145 = vector.shape_cast %144 : vector<1x8x8xbf16> to vector<8x8xbf16>
    %c0_184 = arith.constant 0 : index
    %c16_185 = arith.constant 16 : index
    %146 = vector.load %arg7[%c0_184, %c16_185] : memref<8x384xbf16, #tpu.memory_space<vmem>>, vector<8x256xbf16>
    %cst_186 = arith.constant dense<0.000000e+00> : vector<8x256xf32>
    %147 = tpu.matmul %145, %146, %cst_186 {dimension_numbers = #tpu.dot_dimension_numbers<[1], [0], [0], [1], [0, 0, 1, 1], [], []>} : vector<8x8xbf16>, vector<8x256xbf16>, vector<8x256xf32> -> vector<8x256xf32>
    %148 = arith.addf %143, %147 : vector<8x256xf32>
    %c0_187 = arith.constant 0 : index
    %c0_188 = arith.constant 0 : index
    %149 = vector.load %arg8[%c0_187, %c0_188] : memref<8x256xf32, #tpu.memory_space<vmem>>, vector<8x256xf32>
    tpu.vector_store %arg8[%c0_187, %c0_188], %148 {strides = array<i32>} : memref<8x256xf32, #tpu.memory_space<vmem>>, vector<8x256xf32>,
    %c0_189 = arith.constant 0 : index
    %c0_190 = arith.constant 0 : index
    %150 = vector.load %arg8[%c0_189, %c0_190] : memref<8x256xf32, #tpu.memory_space<vmem>>, vector<8x256xf32>
    %c17 = arith.constant 17 : index
    %c0_191 = arith.constant 0 : index
    %c0_192 = arith.constant 0 : index
    %151 = vector.load %arg4[%c17, %c0_191, %c0_192] : memref<40x8x8xbf16, #tpu.memory_space<vmem>>, vector<1x8x8xbf16>
    %152 = vector.shape_cast %151 : vector<1x8x8xbf16> to vector<8x8xbf16>
    %c0_193 = arith.constant 0 : index
    %c17_194 = arith.constant 17 : index
    %153 = vector.load %arg7[%c0_193, %c17_194] : memref<8x384xbf16, #tpu.memory_space<vmem>>, vector<8x256xbf16>
    %cst_195 = arith.constant dense<0.000000e+00> : vector<8x256xf32>
    %154 = tpu.matmul %152, %153, %cst_195 {dimension_numbers = #tpu.dot_dimension_numbers<[1], [0], [0], [1], [0, 0, 1, 1], [], []>} : vector<8x8xbf16>, vector<8x256xbf16>, vector<8x256xf32> -> vector<8x256xf32>
    %155 = arith.addf %150, %154 : vector<8x256xf32>
    %c0_196 = arith.constant 0 : index
    %c0_197 = arith.constant 0 : index
    %156 = vector.load %arg8[%c0_196, %c0_197] : memref<8x256xf32, #tpu.memory_space<vmem>>, vector<8x256xf32>
    tpu.vector_store %arg8[%c0_196, %c0_197], %155 {strides = array<i32>} : memref<8x256xf32, #tpu.memory_space<vmem>>, vector<8x256xf32>,
    %c0_198 = arith.constant 0 : index
    %c0_199 = arith.constant 0 : index
    %157 = vector.load %arg8[%c0_198, %c0_199] : memref<8x256xf32, #tpu.memory_space<vmem>>, vector<8x256xf32>
    %c18 = arith.constant 18 : index
    %c0_200 = arith.constant 0 : index
    %c0_201 = arith.constant 0 : index
    %158 = vector.load %arg4[%c18, %c0_200, %c0_201] : memref<40x8x8xbf16, #tpu.memory_space<vmem>>, vector<1x8x8xbf16>
    %159 = vector.shape_cast %158 : vector<1x8x8xbf16> to vector<8x8xbf16>
    %c0_202 = arith.constant 0 : index
    %c18_203 = arith.constant 18 : index
    %160 = vector.load %arg7[%c0_202, %c18_203] : memref<8x384xbf16, #tpu.memory_space<vmem>>, vector<8x256xbf16>
    %cst_204 = arith.constant dense<0.000000e+00> : vector<8x256xf32>
    %161 = tpu.matmul %159, %160, %cst_204 {dimension_numbers = #tpu.dot_dimension_numbers<[1], [0], [0], [1], [0, 0, 1, 1], [], []>} : vector<8x8xbf16>, vector<8x256xbf16>, vector<8x256xf32> -> vector<8x256xf32>
    %162 = arith.addf %157, %161 : vector<8x256xf32>
    %c0_205 = arith.constant 0 : index
    %c0_206 = arith.constant 0 : index
    %163 = vector.load %arg8[%c0_205, %c0_206] : memref<8x256xf32, #tpu.memory_space<vmem>>, vector<8x256xf32>
    tpu.vector_store %arg8[%c0_205, %c0_206], %162 {strides = array<i32>} : memref<8x256xf32, #tpu.memory_space<vmem>>, vector<8x256xf32>,
    %c0_207 = arith.constant 0 : index
    %c0_208 = arith.constant 0 : index
    %164 = vector.load %arg8[%c0_207, %c0_208] : memref<8x256xf32, #tpu.memory_space<vmem>>, vector<8x256xf32>
    %c19 = arith.constant 19 : index
    %c0_209 = arith.constant 0 : index
    %c0_210 = arith.constant 0 : index
    %165 = vector.load %arg4[%c19, %c0_209, %c0_210] : memref<40x8x8xbf16, #tpu.memory_space<vmem>>, vector<1x8x8xbf16>
    %166 = vector.shape_cast %165 : vector<1x8x8xbf16> to vector<8x8xbf16>
    %c0_211 = arith.constant 0 : index
    %c19_212 = arith.constant 19 : index
    %167 = vector.load %arg7[%c0_211, %c19_212] : memref<8x384xbf16, #tpu.memory_space<vmem>>, vector<8x256xbf16>
    %cst_213 = arith.constant dense<0.000000e+00> : vector<8x256xf32>
    %168 = tpu.matmul %166, %167, %cst_213 {dimension_numbers = #tpu.dot_dimension_numbers<[1], [0], [0], [1], [0, 0, 1, 1], [], []>} : vector<8x8xbf16>, vector<8x256xbf16>, vector<8x256xf32> -> vector<8x256xf32>
    %169 = arith.addf %164, %168 : vector<8x256xf32>
    %c0_214 = arith.constant 0 : index
    %c0_215 = arith.constant 0 : index
    %170 = vector.load %arg8[%c0_214, %c0_215] : memref<8x256xf32, #tpu.memory_space<vmem>>, vector<8x256xf32>
    tpu.vector_store %arg8[%c0_214, %c0_215], %169 {strides = array<i32>} : memref<8x256xf32, #tpu.memory_space<vmem>>, vector<8x256xf32>,
    %c0_216 = arith.constant 0 : index
    %c0_217 = arith.constant 0 : index
    %171 = vector.load %arg8[%c0_216, %c0_217] : memref<8x256xf32, #tpu.memory_space<vmem>>, vector<8x256xf32>
    %c20 = arith.constant 20 : index
    %c0_218 = arith.constant 0 : index
    %c0_219 = arith.constant 0 : index
    %172 = vector.load %arg4[%c20, %c0_218, %c0_219] : memref<40x8x8xbf16, #tpu.memory_space<vmem>>, vector<1x8x8xbf16>
    %173 = vector.shape_cast %172 : vector<1x8x8xbf16> to vector<8x8xbf16>
    %c0_220 = arith.constant 0 : index
    %c20_221 = arith.constant 20 : index
    %174 = vector.load %arg7[%c0_220, %c20_221] : memref<8x384xbf16, #tpu.memory_space<vmem>>, vector<8x256xbf16>
    %cst_222 = arith.constant dense<0.000000e+00> : vector<8x256xf32>
    %175 = tpu.matmul %173, %174, %cst_222 {dimension_numbers = #tpu.dot_dimension_numbers<[1], [0], [0], [1], [0, 0, 1, 1], [], []>} : vector<8x8xbf16>, vector<8x256xbf16>, vector<8x256xf32> -> vector<8x256xf32>
    %176 = arith.addf %171, %175 : vector<8x256xf32>
    %c0_223 = arith.constant 0 : index
    %c0_224 = arith.constant 0 : index
    %177 = vector.load %arg8[%c0_223, %c0_224] : memref<8x256xf32, #tpu.memory_space<vmem>>, vector<8x256xf32>
    tpu.vector_store %arg8[%c0_223, %c0_224], %176 {strides = array<i32>} : memref<8x256xf32, #tpu.memory_space<vmem>>, vector<8x256xf32>,
    %c0_225 = arith.constant 0 : index
    %c0_226 = arith.constant 0 : index
    %178 = vector.load %arg8[%c0_225, %c0_226] : memref<8x256xf32, #tpu.memory_space<vmem>>, vector<8x256xf32>
    %c21 = arith.constant 21 : index
    %c0_227 = arith.constant 0 : index
    %c0_228 = arith.constant 0 : index
    %179 = vector.load %arg4[%c21, %c0_227, %c0_228] : memref<40x8x8xbf16, #tpu.memory_space<vmem>>, vector<1x8x8xbf16>
    %180 = vector.shape_cast %179 : vector<1x8x8xbf16> to vector<8x8xbf16>
    %c0_229 = arith.constant 0 : index
    %c21_230 = arith.constant 21 : index
    %181 = vector.load %arg7[%c0_229, %c21_230] : memref<8x384xbf16, #tpu.memory_space<vmem>>, vector<8x256xbf16>
    %cst_231 = arith.constant dense<0.000000e+00> : vector<8x256xf32>
    %182 = tpu.matmul %180, %181, %cst_231 {dimension_numbers = #tpu.dot_dimension_numbers<[1], [0], [0], [1], [0, 0, 1, 1], [], []>} : vector<8x8xbf16>, vector<8x256xbf16>, vector<8x256xf32> -> vector<8x256xf32>
    %183 = arith.addf %178, %182 : vector<8x256xf32>
    %c0_232 = arith.constant 0 : index
    %c0_233 = arith.constant 0 : index
    %184 = vector.load %arg8[%c0_232, %c0_233] : memref<8x256xf32, #tpu.memory_space<vmem>>, vector<8x256xf32>
    tpu.vector_store %arg8[%c0_232, %c0_233], %183 {strides = array<i32>} : memref<8x256xf32, #tpu.memory_space<vmem>>, vector<8x256xf32>,
    %c0_234 = arith.constant 0 : index
    %c0_235 = arith.constant 0 : index
    %185 = vector.load %arg8[%c0_234, %c0_235] : memref<8x256xf32, #tpu.memory_space<vmem>>, vector<8x256xf32>
    %c22 = arith.constant 22 : index
    %c0_236 = arith.constant 0 : index
    %c0_237 = arith.constant 0 : index
    %186 = vector.load %arg4[%c22, %c0_236, %c0_237] : memref<40x8x8xbf16, #tpu.memory_space<vmem>>, vector<1x8x8xbf16>
    %187 = vector.shape_cast %186 : vector<1x8x8xbf16> to vector<8x8xbf16>
    %c0_238 = arith.constant 0 : index
    %c22_239 = arith.constant 22 : index
    %188 = vector.load %arg7[%c0_238, %c22_239] : memref<8x384xbf16, #tpu.memory_space<vmem>>, vector<8x256xbf16>
    %cst_240 = arith.constant dense<0.000000e+00> : vector<8x256xf32>
    %189 = tpu.matmul %187, %188, %cst_240 {dimension_numbers = #tpu.dot_dimension_numbers<[1], [0], [0], [1], [0, 0, 1, 1], [], []>} : vector<8x8xbf16>, vector<8x256xbf16>, vector<8x256xf32> -> vector<8x256xf32>
    %190 = arith.addf %185, %189 : vector<8x256xf32>
    %c0_241 = arith.constant 0 : index
    %c0_242 = arith.constant 0 : index
    %191 = vector.load %arg8[%c0_241, %c0_242] : memref<8x256xf32, #tpu.memory_space<vmem>>, vector<8x256xf32>
    tpu.vector_store %arg8[%c0_241, %c0_242], %190 {strides = array<i32>} : memref<8x256xf32, #tpu.memory_space<vmem>>, vector<8x256xf32>,
    %c0_243 = arith.constant 0 : index
    %c0_244 = arith.constant 0 : index
    %192 = vector.load %arg8[%c0_243, %c0_244] : memref<8x256xf32, #tpu.memory_space<vmem>>, vector<8x256xf32>
    %c23 = arith.constant 23 : index
    %c0_245 = arith.constant 0 : index
    %c0_246 = arith.constant 0 : index
    %193 = vector.load %arg4[%c23, %c0_245, %c0_246] : memref<40x8x8xbf16, #tpu.memory_space<vmem>>, vector<1x8x8xbf16>
    %194 = vector.shape_cast %193 : vector<1x8x8xbf16> to vector<8x8xbf16>
    %c0_247 = arith.constant 0 : index
    %c23_248 = arith.constant 23 : index
    %195 = vector.load %arg7[%c0_247, %c23_248] : memref<8x384xbf16, #tpu.memory_space<vmem>>, vector<8x256xbf16>
    %cst_249 = arith.constant dense<0.000000e+00> : vector<8x256xf32>
    %196 = tpu.matmul %194, %195, %cst_249 {dimension_numbers = #tpu.dot_dimension_numbers<[1], [0], [0], [1], [0, 0, 1, 1], [], []>} : vector<8x8xbf16>, vector<8x256xbf16>, vector<8x256xf32> -> vector<8x256xf32>
    %197 = arith.addf %192, %196 : vector<8x256xf32>
    %c0_250 = arith.constant 0 : index
    %c0_251 = arith.constant 0 : index
    %198 = vector.load %arg8[%c0_250, %c0_251] : memref<8x256xf32, #tpu.memory_space<vmem>>, vector<8x256xf32>
    tpu.vector_store %arg8[%c0_250, %c0_251], %197 {strides = array<i32>} : memref<8x256xf32, #tpu.memory_space<vmem>>, vector<8x256xf32>,
    %c0_252 = arith.constant 0 : index
    %c0_253 = arith.constant 0 : index
    %199 = vector.load %arg8[%c0_252, %c0_253] : memref<8x256xf32, #tpu.memory_space<vmem>>, vector<8x256xf32>
    %c24 = arith.constant 24 : index
    %c0_254 = arith.constant 0 : index
    %c0_255 = arith.constant 0 : index
    %200 = vector.load %arg4[%c24, %c0_254, %c0_255] : memref<40x8x8xbf16, #tpu.memory_space<vmem>>, vector<1x8x8xbf16>
    %201 = vector.shape_cast %200 : vector<1x8x8xbf16> to vector<8x8xbf16>
    %c0_256 = arith.constant 0 : index
    %c24_257 = arith.constant 24 : index
    %202 = vector.load %arg7[%c0_256, %c24_257] : memref<8x384xbf16, #tpu.memory_space<vmem>>, vector<8x256xbf16>
    %cst_258 = arith.constant dense<0.000000e+00> : vector<8x256xf32>
    %203 = tpu.matmul %201, %202, %cst_258 {dimension_numbers = #tpu.dot_dimension_numbers<[1], [0], [0], [1], [0, 0, 1, 1], [], []>} : vector<8x8xbf16>, vector<8x256xbf16>, vector<8x256xf32> -> vector<8x256xf32>
    %204 = arith.addf %199, %203 : vector<8x256xf32>
    %c0_259 = arith.constant 0 : index
    %c0_260 = arith.constant 0 : index
    %205 = vector.load %arg8[%c0_259, %c0_260] : memref<8x256xf32, #tpu.memory_space<vmem>>, vector<8x256xf32>
    tpu.vector_store %arg8[%c0_259, %c0_260], %204 {strides = array<i32>} : memref<8x256xf32, #tpu.memory_space<vmem>>, vector<8x256xf32>,
    %c0_261 = arith.constant 0 : index
    %c0_262 = arith.constant 0 : index
    %206 = vector.load %arg8[%c0_261, %c0_262] : memref<8x256xf32, #tpu.memory_space<vmem>>, vector<8x256xf32>
    %c25 = arith.constant 25 : index
    %c0_263 = arith.constant 0 : index
    %c0_264 = arith.constant 0 : index
    %207 = vector.load %arg4[%c25, %c0_263, %c0_264] : memref<40x8x8xbf16, #tpu.memory_space<vmem>>, vector<1x8x8xbf16>
    %208 = vector.shape_cast %207 : vector<1x8x8xbf16> to vector<8x8xbf16>
    %c0_265 = arith.constant 0 : index
    %c25_266 = arith.constant 25 : index
    %209 = vector.load %arg7[%c0_265, %c25_266] : memref<8x384xbf16, #tpu.memory_space<vmem>>, vector<8x256xbf16>
    %cst_267 = arith.constant dense<0.000000e+00> : vector<8x256xf32>
    %210 = tpu.matmul %208, %209, %cst_267 {dimension_numbers = #tpu.dot_dimension_numbers<[1], [0], [0], [1], [0, 0, 1, 1], [], []>} : vector<8x8xbf16>, vector<8x256xbf16>, vector<8x256xf32> -> vector<8x256xf32>
    %211 = arith.addf %206, %210 : vector<8x256xf32>
    %c0_268 = arith.constant 0 : index
    %c0_269 = arith.constant 0 : index
    %212 = vector.load %arg8[%c0_268, %c0_269] : memref<8x256xf32, #tpu.memory_space<vmem>>, vector<8x256xf32>
    tpu.vector_store %arg8[%c0_268, %c0_269], %211 {strides = array<i32>} : memref<8x256xf32, #tpu.memory_space<vmem>>, vector<8x256xf32>,
    %c0_270 = arith.constant 0 : index
    %c0_271 = arith.constant 0 : index
    %213 = vector.load %arg8[%c0_270, %c0_271] : memref<8x256xf32, #tpu.memory_space<vmem>>, vector<8x256xf32>
    %c26 = arith.constant 26 : index
    %c0_272 = arith.constant 0 : index
    %c0_273 = arith.constant 0 : index
    %214 = vector.load %arg4[%c26, %c0_272, %c0_273] : memref<40x8x8xbf16, #tpu.memory_space<vmem>>, vector<1x8x8xbf16>
    %215 = vector.shape_cast %214 : vector<1x8x8xbf16> to vector<8x8xbf16>
    %c0_274 = arith.constant 0 : index
    %c26_275 = arith.constant 26 : index
    %216 = vector.load %arg7[%c0_274, %c26_275] : memref<8x384xbf16, #tpu.memory_space<vmem>>, vector<8x256xbf16>
    %cst_276 = arith.constant dense<0.000000e+00> : vector<8x256xf32>
    %217 = tpu.matmul %215, %216, %cst_276 {dimension_numbers = #tpu.dot_dimension_numbers<[1], [0], [0], [1], [0, 0, 1, 1], [], []>} : vector<8x8xbf16>, vector<8x256xbf16>, vector<8x256xf32> -> vector<8x256xf32>
    %218 = arith.addf %213, %217 : vector<8x256xf32>
    %c0_277 = arith.constant 0 : index
    %c0_278 = arith.constant 0 : index
    %219 = vector.load %arg8[%c0_277, %c0_278] : memref<8x256xf32, #tpu.memory_space<vmem>>, vector<8x256xf32>
    tpu.vector_store %arg8[%c0_277, %c0_278], %218 {strides = array<i32>} : memref<8x256xf32, #tpu.memory_space<vmem>>, vector<8x256xf32>,
    %c0_279 = arith.constant 0 : index
    %c0_280 = arith.constant 0 : index
    %220 = vector.load %arg8[%c0_279, %c0_280] : memref<8x256xf32, #tpu.memory_space<vmem>>, vector<8x256xf32>
    %c27 = arith.constant 27 : index
    %c0_281 = arith.constant 0 : index
    %c0_282 = arith.constant 0 : index
    %221 = vector.load %arg4[%c27, %c0_281, %c0_282] : memref<40x8x8xbf16, #tpu.memory_space<vmem>>, vector<1x8x8xbf16>
    %222 = vector.shape_cast %221 : vector<1x8x8xbf16> to vector<8x8xbf16>
    %c0_283 = arith.constant 0 : index
    %c27_284 = arith.constant 27 : index
    %223 = vector.load %arg7[%c0_283, %c27_284] : memref<8x384xbf16, #tpu.memory_space<vmem>>, vector<8x256xbf16>
    %cst_285 = arith.constant dense<0.000000e+00> : vector<8x256xf32>
    %224 = tpu.matmul %222, %223, %cst_285 {dimension_numbers = #tpu.dot_dimension_numbers<[1], [0], [0], [1], [0, 0, 1, 1], [], []>} : vector<8x8xbf16>, vector<8x256xbf16>, vector<8x256xf32> -> vector<8x256xf32>
    %225 = arith.addf %220, %224 : vector<8x256xf32>
    %c0_286 = arith.constant 0 : index
    %c0_287 = arith.constant 0 : index
    %226 = vector.load %arg8[%c0_286, %c0_287] : memref<8x256xf32, #tpu.memory_space<vmem>>, vector<8x256xf32>
    tpu.vector_store %arg8[%c0_286, %c0_287], %225 {strides = array<i32>} : memref<8x256xf32, #tpu.memory_space<vmem>>, vector<8x256xf32>,
    %c0_288 = arith.constant 0 : index
    %c0_289 = arith.constant 0 : index
    %227 = vector.load %arg8[%c0_288, %c0_289] : memref<8x256xf32, #tpu.memory_space<vmem>>, vector<8x256xf32>
    %c28 = arith.constant 28 : index
    %c0_290 = arith.constant 0 : index
    %c0_291 = arith.constant 0 : index
    %228 = vector.load %arg4[%c28, %c0_290, %c0_291] : memref<40x8x8xbf16, #tpu.memory_space<vmem>>, vector<1x8x8xbf16>
    %229 = vector.shape_cast %228 : vector<1x8x8xbf16> to vector<8x8xbf16>
    %c0_292 = arith.constant 0 : index
    %c28_293 = arith.constant 28 : index
    %230 = vector.load %arg7[%c0_292, %c28_293] : memref<8x384xbf16, #tpu.memory_space<vmem>>, vector<8x256xbf16>
    %cst_294 = arith.constant dense<0.000000e+00> : vector<8x256xf32>
    %231 = tpu.matmul %229, %230, %cst_294 {dimension_numbers = #tpu.dot_dimension_numbers<[1], [0], [0], [1], [0, 0, 1, 1], [], []>} : vector<8x8xbf16>, vector<8x256xbf16>, vector<8x256xf32> -> vector<8x256xf32>
    %232 = arith.addf %227, %231 : vector<8x256xf32>
    %c0_295 = arith.constant 0 : index
    %c0_296 = arith.constant 0 : index
    %233 = vector.load %arg8[%c0_295, %c0_296] : memref<8x256xf32, #tpu.memory_space<vmem>>, vector<8x256xf32>
    tpu.vector_store %arg8[%c0_295, %c0_296], %232 {strides = array<i32>} : memref<8x256xf32, #tpu.memory_space<vmem>>, vector<8x256xf32>,
    %c0_297 = arith.constant 0 : index
    %c0_298 = arith.constant 0 : index
    %234 = vector.load %arg8[%c0_297, %c0_298] : memref<8x256xf32, #tpu.memory_space<vmem>>, vector<8x256xf32>
    %c29 = arith.constant 29 : index
    %c0_299 = arith.constant 0 : index
    %c0_300 = arith.constant 0 : index
    %235 = vector.load %arg4[%c29, %c0_299, %c0_300] : memref<40x8x8xbf16, #tpu.memory_space<vmem>>, vector<1x8x8xbf16>
    %236 = vector.shape_cast %235 : vector<1x8x8xbf16> to vector<8x8xbf16>
    %c0_301 = arith.constant 0 : index
    %c29_302 = arith.constant 29 : index
    %237 = vector.load %arg7[%c0_301, %c29_302] : memref<8x384xbf16, #tpu.memory_space<vmem>>, vector<8x256xbf16>
    %cst_303 = arith.constant dense<0.000000e+00> : vector<8x256xf32>
    %238 = tpu.matmul %236, %237, %cst_303 {dimension_numbers = #tpu.dot_dimension_numbers<[1], [0], [0], [1], [0, 0, 1, 1], [], []>} : vector<8x8xbf16>, vector<8x256xbf16>, vector<8x256xf32> -> vector<8x256xf32>
    %239 = arith.addf %234, %238 : vector<8x256xf32>
    %c0_304 = arith.constant 0 : index
    %c0_305 = arith.constant 0 : index
    %240 = vector.load %arg8[%c0_304, %c0_305] : memref<8x256xf32, #tpu.memory_space<vmem>>, vector<8x256xf32>
    tpu.vector_store %arg8[%c0_304, %c0_305], %239 {strides = array<i32>} : memref<8x256xf32, #tpu.memory_space<vmem>>, vector<8x256xf32>,
    %c0_306 = arith.constant 0 : index
    %c0_307 = arith.constant 0 : index
    %241 = vector.load %arg8[%c0_306, %c0_307] : memref<8x256xf32, #tpu.memory_space<vmem>>, vector<8x256xf32>
    %c30 = arith.constant 30 : index
    %c0_308 = arith.constant 0 : index
    %c0_309 = arith.constant 0 : index
    %242 = vector.load %arg4[%c30, %c0_308, %c0_309] : memref<40x8x8xbf16, #tpu.memory_space<vmem>>, vector<1x8x8xbf16>
    %243 = vector.shape_cast %242 : vector<1x8x8xbf16> to vector<8x8xbf16>
    %c0_310 = arith.constant 0 : index
    %c30_311 = arith.constant 30 : index
    %244 = vector.load %arg7[%c0_310, %c30_311] : memref<8x384xbf16, #tpu.memory_space<vmem>>, vector<8x256xbf16>
    %cst_312 = arith.constant dense<0.000000e+00> : vector<8x256xf32>
    %245 = tpu.matmul %243, %244, %cst_312 {dimension_numbers = #tpu.dot_dimension_numbers<[1], [0], [0], [1], [0, 0, 1, 1], [], []>} : vector<8x8xbf16>, vector<8x256xbf16>, vector<8x256xf32> -> vector<8x256xf32>
    %246 = arith.addf %241, %245 : vector<8x256xf32>
    %c0_313 = arith.constant 0 : index
    %c0_314 = arith.constant 0 : index
    %247 = vector.load %arg8[%c0_313, %c0_314] : memref<8x256xf32, #tpu.memory_space<vmem>>, vector<8x256xf32>
    tpu.vector_store %arg8[%c0_313, %c0_314], %246 {strides = array<i32>} : memref<8x256xf32, #tpu.memory_space<vmem>>, vector<8x256xf32>,
    %c0_315 = arith.constant 0 : index
    %c0_316 = arith.constant 0 : index
    %248 = vector.load %arg8[%c0_315, %c0_316] : memref<8x256xf32, #tpu.memory_space<vmem>>, vector<8x256xf32>
    %c31 = arith.constant 31 : index
    %c0_317 = arith.constant 0 : index
    %c0_318 = arith.constant 0 : index
    %249 = vector.load %arg4[%c31, %c0_317, %c0_318] : memref<40x8x8xbf16, #tpu.memory_space<vmem>>, vector<1x8x8xbf16>
    %250 = vector.shape_cast %249 : vector<1x8x8xbf16> to vector<8x8xbf16>
    %c0_319 = arith.constant 0 : index
    %c31_320 = arith.constant 31 : index
    %251 = vector.load %arg7[%c0_319, %c31_320] : memref<8x384xbf16, #tpu.memory_space<vmem>>, vector<8x256xbf16>
    %cst_321 = arith.constant dense<0.000000e+00> : vector<8x256xf32>
    %252 = tpu.matmul %250, %251, %cst_321 {dimension_numbers = #tpu.dot_dimension_numbers<[1], [0], [0], [1], [0, 0, 1, 1], [], []>} : vector<8x8xbf16>, vector<8x256xbf16>, vector<8x256xf32> -> vector<8x256xf32>
    %253 = arith.addf %248, %252 : vector<8x256xf32>
    %c0_322 = arith.constant 0 : index
    %c0_323 = arith.constant 0 : index
    %254 = vector.load %arg8[%c0_322, %c0_323] : memref<8x256xf32, #tpu.memory_space<vmem>>, vector<8x256xf32>
    tpu.vector_store %arg8[%c0_322, %c0_323], %253 {strides = array<i32>} : memref<8x256xf32, #tpu.memory_space<vmem>>, vector<8x256xf32>,
    %c0_324 = arith.constant 0 : index
    %c0_325 = arith.constant 0 : index
    %255 = vector.load %arg8[%c0_324, %c0_325] : memref<8x256xf32, #tpu.memory_space<vmem>>, vector<8x256xf32>
    %c32 = arith.constant 32 : index
    %c0_326 = arith.constant 0 : index
    %c0_327 = arith.constant 0 : index
    %256 = vector.load %arg4[%c32, %c0_326, %c0_327] : memref<40x8x8xbf16, #tpu.memory_space<vmem>>, vector<1x8x8xbf16>
    %257 = vector.shape_cast %256 : vector<1x8x8xbf16> to vector<8x8xbf16>
    %c0_328 = arith.constant 0 : index
    %c32_329 = arith.constant 32 : index
    %258 = vector.load %arg7[%c0_328, %c32_329] : memref<8x384xbf16, #tpu.memory_space<vmem>>, vector<8x256xbf16>
    %cst_330 = arith.constant dense<0.000000e+00> : vector<8x256xf32>
    %259 = tpu.matmul %257, %258, %cst_330 {dimension_numbers = #tpu.dot_dimension_numbers<[1], [0], [0], [1], [0, 0, 1, 1], [], []>} : vector<8x8xbf16>, vector<8x256xbf16>, vector<8x256xf32> -> vector<8x256xf32>
    %260 = arith.addf %255, %259 : vector<8x256xf32>
    %c0_331 = arith.constant 0 : index
    %c0_332 = arith.constant 0 : index
    %261 = vector.load %arg8[%c0_331, %c0_332] : memref<8x256xf32, #tpu.memory_space<vmem>>, vector<8x256xf32>
    tpu.vector_store %arg8[%c0_331, %c0_332], %260 {strides = array<i32>} : memref<8x256xf32, #tpu.memory_space<vmem>>, vector<8x256xf32>,
    %c0_333 = arith.constant 0 : index
    %c0_334 = arith.constant 0 : index
    %262 = vector.load %arg8[%c0_333, %c0_334] : memref<8x256xf32, #tpu.memory_space<vmem>>, vector<8x256xf32>
    %c33 = arith.constant 33 : index
    %c0_335 = arith.constant 0 : index
    %c0_336 = arith.constant 0 : index
    %263 = vector.load %arg4[%c33, %c0_335, %c0_336] : memref<40x8x8xbf16, #tpu.memory_space<vmem>>, vector<1x8x8xbf16>
    %264 = vector.shape_cast %263 : vector<1x8x8xbf16> to vector<8x8xbf16>
    %c0_337 = arith.constant 0 : index
    %c33_338 = arith.constant 33 : index
    %265 = vector.load %arg7[%c0_337, %c33_338] : memref<8x384xbf16, #tpu.memory_space<vmem>>, vector<8x256xbf16>
    %cst_339 = arith.constant dense<0.000000e+00> : vector<8x256xf32>
    %266 = tpu.matmul %264, %265, %cst_339 {dimension_numbers = #tpu.dot_dimension_numbers<[1], [0], [0], [1], [0, 0, 1, 1], [], []>} : vector<8x8xbf16>, vector<8x256xbf16>, vector<8x256xf32> -> vector<8x256xf32>
    %267 = arith.addf %262, %266 : vector<8x256xf32>
    %c0_340 = arith.constant 0 : index
    %c0_341 = arith.constant 0 : index
    %268 = vector.load %arg8[%c0_340, %c0_341] : memref<8x256xf32, #tpu.memory_space<vmem>>, vector<8x256xf32>
    tpu.vector_store %arg8[%c0_340, %c0_341], %267 {strides = array<i32>} : memref<8x256xf32, #tpu.memory_space<vmem>>, vector<8x256xf32>,
    %c0_342 = arith.constant 0 : index
    %c0_343 = arith.constant 0 : index
    %269 = vector.load %arg8[%c0_342, %c0_343] : memref<8x256xf32, #tpu.memory_space<vmem>>, vector<8x256xf32>
    %c34 = arith.constant 34 : index
    %c0_344 = arith.constant 0 : index
    %c0_345 = arith.constant 0 : index
    %270 = vector.load %arg4[%c34, %c0_344, %c0_345] : memref<40x8x8xbf16, #tpu.memory_space<vmem>>, vector<1x8x8xbf16>
    %271 = vector.shape_cast %270 : vector<1x8x8xbf16> to vector<8x8xbf16>
    %c0_346 = arith.constant 0 : index
    %c34_347 = arith.constant 34 : index
    %272 = vector.load %arg7[%c0_346, %c34_347] : memref<8x384xbf16, #tpu.memory_space<vmem>>, vector<8x256xbf16>
    %cst_348 = arith.constant dense<0.000000e+00> : vector<8x256xf32>
    %273 = tpu.matmul %271, %272, %cst_348 {dimension_numbers = #tpu.dot_dimension_numbers<[1], [0], [0], [1], [0, 0, 1, 1], [], []>} : vector<8x8xbf16>, vector<8x256xbf16>, vector<8x256xf32> -> vector<8x256xf32>
    %274 = arith.addf %269, %273 : vector<8x256xf32>
    %c0_349 = arith.constant 0 : index
    %c0_350 = arith.constant 0 : index
    %275 = vector.load %arg8[%c0_349, %c0_350] : memref<8x256xf32, #tpu.memory_space<vmem>>, vector<8x256xf32>
    tpu.vector_store %arg8[%c0_349, %c0_350], %274 {strides = array<i32>} : memref<8x256xf32, #tpu.memory_space<vmem>>, vector<8x256xf32>,
    %c0_351 = arith.constant 0 : index
    %c0_352 = arith.constant 0 : index
    %276 = vector.load %arg8[%c0_351, %c0_352] : memref<8x256xf32, #tpu.memory_space<vmem>>, vector<8x256xf32>
    %c35 = arith.constant 35 : index
    %c0_353 = arith.constant 0 : index
    %c0_354 = arith.constant 0 : index
    %277 = vector.load %arg4[%c35, %c0_353, %c0_354] : memref<40x8x8xbf16, #tpu.memory_space<vmem>>, vector<1x8x8xbf16>
    %278 = vector.shape_cast %277 : vector<1x8x8xbf16> to vector<8x8xbf16>
    %c0_355 = arith.constant 0 : index
    %c35_356 = arith.constant 35 : index
    %279 = vector.load %arg7[%c0_355, %c35_356] : memref<8x384xbf16, #tpu.memory_space<vmem>>, vector<8x256xbf16>
    %cst_357 = arith.constant dense<0.000000e+00> : vector<8x256xf32>
    %280 = tpu.matmul %278, %279, %cst_357 {dimension_numbers = #tpu.dot_dimension_numbers<[1], [0], [0], [1], [0, 0, 1, 1], [], []>} : vector<8x8xbf16>, vector<8x256xbf16>, vector<8x256xf32> -> vector<8x256xf32>
    %281 = arith.addf %276, %280 : vector<8x256xf32>
    %c0_358 = arith.constant 0 : index
    %c0_359 = arith.constant 0 : index
    %282 = vector.load %arg8[%c0_358, %c0_359] : memref<8x256xf32, #tpu.memory_space<vmem>>, vector<8x256xf32>
    tpu.vector_store %arg8[%c0_358, %c0_359], %281 {strides = array<i32>} : memref<8x256xf32, #tpu.memory_space<vmem>>, vector<8x256xf32>,
    %c0_360 = arith.constant 0 : index
    %c0_361 = arith.constant 0 : index
    %283 = vector.load %arg8[%c0_360, %c0_361] : memref<8x256xf32, #tpu.memory_space<vmem>>, vector<8x256xf32>
    %c36 = arith.constant 36 : index
    %c0_362 = arith.constant 0 : index
    %c0_363 = arith.constant 0 : index
    %284 = vector.load %arg4[%c36, %c0_362, %c0_363] : memref<40x8x8xbf16, #tpu.memory_space<vmem>>, vector<1x8x8xbf16>
    %285 = vector.shape_cast %284 : vector<1x8x8xbf16> to vector<8x8xbf16>
    %c0_364 = arith.constant 0 : index
    %c36_365 = arith.constant 36 : index
    %286 = vector.load %arg7[%c0_364, %c36_365] : memref<8x384xbf16, #tpu.memory_space<vmem>>, vector<8x256xbf16>
    %cst_366 = arith.constant dense<0.000000e+00> : vector<8x256xf32>
    %287 = tpu.matmul %285, %286, %cst_366 {dimension_numbers = #tpu.dot_dimension_numbers<[1], [0], [0], [1], [0, 0, 1, 1], [], []>} : vector<8x8xbf16>, vector<8x256xbf16>, vector<8x256xf32> -> vector<8x256xf32>
    %288 = arith.addf %283, %287 : vector<8x256xf32>
    %c0_367 = arith.constant 0 : index
    %c0_368 = arith.constant 0 : index
    %289 = vector.load %arg8[%c0_367, %c0_368] : memref<8x256xf32, #tpu.memory_space<vmem>>, vector<8x256xf32>
    tpu.vector_store %arg8[%c0_367, %c0_368], %288 {strides = array<i32>} : memref<8x256xf32, #tpu.memory_space<vmem>>, vector<8x256xf32>,
    %c0_369 = arith.constant 0 : index
    %c0_370 = arith.constant 0 : index
    %290 = vector.load %arg8[%c0_369, %c0_370] : memref<8x256xf32, #tpu.memory_space<vmem>>, vector<8x256xf32>
    %c37 = arith.constant 37 : index
    %c0_371 = arith.constant 0 : index
    %c0_372 = arith.constant 0 : index
    %291 = vector.load %arg4[%c37, %c0_371, %c0_372] : memref<40x8x8xbf16, #tpu.memory_space<vmem>>, vector<1x8x8xbf16>
    %292 = vector.shape_cast %291 : vector<1x8x8xbf16> to vector<8x8xbf16>
    %c0_373 = arith.constant 0 : index
    %c37_374 = arith.constant 37 : index
    %293 = vector.load %arg7[%c0_373, %c37_374] : memref<8x384xbf16, #tpu.memory_space<vmem>>, vector<8x256xbf16>
    %cst_375 = arith.constant dense<0.000000e+00> : vector<8x256xf32>
    %294 = tpu.matmul %292, %293, %cst_375 {dimension_numbers = #tpu.dot_dimension_numbers<[1], [0], [0], [1], [0, 0, 1, 1], [], []>} : vector<8x8xbf16>, vector<8x256xbf16>, vector<8x256xf32> -> vector<8x256xf32>
    %295 = arith.addf %290, %294 : vector<8x256xf32>
    %c0_376 = arith.constant 0 : index
    %c0_377 = arith.constant 0 : index
    %296 = vector.load %arg8[%c0_376, %c0_377] : memref<8x256xf32, #tpu.memory_space<vmem>>, vector<8x256xf32>
    tpu.vector_store %arg8[%c0_376, %c0_377], %295 {strides = array<i32>} : memref<8x256xf32, #tpu.memory_space<vmem>>, vector<8x256xf32>,
    %c0_378 = arith.constant 0 : index
    %c0_379 = arith.constant 0 : index
    %297 = vector.load %arg8[%c0_378, %c0_379] : memref<8x256xf32, #tpu.memory_space<vmem>>, vector<8x256xf32>
    %c38 = arith.constant 38 : index
    %c0_380 = arith.constant 0 : index
    %c0_381 = arith.constant 0 : index
    %298 = vector.load %arg4[%c38, %c0_380, %c0_381] : memref<40x8x8xbf16, #tpu.memory_space<vmem>>, vector<1x8x8xbf16>
    %299 = vector.shape_cast %298 : vector<1x8x8xbf16> to vector<8x8xbf16>
    %c0_382 = arith.constant 0 : index
    %c38_383 = arith.constant 38 : index
    %300 = vector.load %arg7[%c0_382, %c38_383] : memref<8x384xbf16, #tpu.memory_space<vmem>>, vector<8x256xbf16>
    %cst_384 = arith.constant dense<0.000000e+00> : vector<8x256xf32>
    %301 = tpu.matmul %299, %300, %cst_384 {dimension_numbers = #tpu.dot_dimension_numbers<[1], [0], [0], [1], [0, 0, 1, 1], [], []>} : vector<8x8xbf16>, vector<8x256xbf16>, vector<8x256xf32> -> vector<8x256xf32>
    %302 = arith.addf %297, %301 : vector<8x256xf32>
    %c0_385 = arith.constant 0 : index
    %c0_386 = arith.constant 0 : index
    %303 = vector.load %arg8[%c0_385, %c0_386] : memref<8x256xf32, #tpu.memory_space<vmem>>, vector<8x256xf32>
    tpu.vector_store %arg8[%c0_385, %c0_386], %302 {strides = array<i32>} : memref<8x256xf32, #tpu.memory_space<vmem>>, vector<8x256xf32>,
    %c0_387 = arith.constant 0 : index
    %c0_388 = arith.constant 0 : index
    %304 = vector.load %arg8[%c0_387, %c0_388] : memref<8x256xf32, #tpu.memory_space<vmem>>, vector<8x256xf32>
    %c39 = arith.constant 39 : index
    %c0_389 = arith.constant 0 : index
    %c0_390 = arith.constant 0 : index
    %305 = vector.load %arg4[%c39, %c0_389, %c0_390] : memref<40x8x8xbf16, #tpu.memory_space<vmem>>, vector<1x8x8xbf16>
    %306 = vector.shape_cast %305 : vector<1x8x8xbf16> to vector<8x8xbf16>
    %c0_391 = arith.constant 0 : index
    %c39_392 = arith.constant 39 : index
    %307 = vector.load %arg7[%c0_391, %c39_392] : memref<8x384xbf16, #tpu.memory_space<vmem>>, vector<8x256xbf16>
    %cst_393 = arith.constant dense<0.000000e+00> : vector<8x256xf32>
    %308 = tpu.matmul %306, %307, %cst_393 {dimension_numbers = #tpu.dot_dimension_numbers<[1], [0], [0], [1], [0, 0, 1, 1], [], []>} : vector<8x8xbf16>, vector<8x256xbf16>, vector<8x256xf32> -> vector<8x256xf32>
    %309 = arith.addf %304, %308 : vector<8x256xf32>
    %c0_394 = arith.constant 0 : index
    %c0_395 = arith.constant 0 : index
    %310 = vector.load %arg8[%c0_394, %c0_395] : memref<8x256xf32, #tpu.memory_space<vmem>>, vector<8x256xf32>
    tpu.vector_store %arg8[%c0_394, %c0_395], %309 {strides = array<i32>} : memref<8x256xf32, #tpu.memory_space<vmem>>, vector<8x256xf32>,
    %c0_396 = arith.constant 0 : index
    %c0_397 = arith.constant 0 : index
    %311 = vector.load %arg8[%c0_396, %c0_397] : memref<8x256xf32, #tpu.memory_space<vmem>>, vector<8x256xf32>
    %cst_398 = arith.constant 0.000000e+00 : f32
    %312 = vector.broadcast %cst_398 : f32 to vector<8x256xf32>
    %313 = arith.maximumf %311, %312 : vector<8x256xf32>
    %c0_399 = arith.constant 0 : index
    %c0_400 = arith.constant 0 : index
    %314 = vector.load %arg6[%c0_399, %c0_400] : memref<8x256xf32, #tpu.memory_space<vmem>>, vector<8x256xf32>
    tpu.vector_store %arg6[%c0_399, %c0_400], %313 {strides = array<i32>} : memref<8x256xf32, #tpu.memory_space<vmem>>, vector<8x256xf32>,
    return
  }
  func.func @transform_0(%arg0: i32) -> (i32, i32, i32) {
    %c0_i32 = arith.constant 0 : i32
    %c0_i32_0 = arith.constant 0 : i32
    %c0_i32_1 = arith.constant 0 : i32
    return %c0_i32, %c0_i32_0, %arg0 : i32, i32, i32
  }
  func.func @transform_1(%arg0: i32) -> (i32, i32) {
    %c0_i32 = arith.constant 0 : i32
    %c0_i32_0 = arith.constant 0 : i32
    %c0_i32_1 = arith.constant 0 : i32
    return %c0_i32, %c0_i32_0 : i32, i32
  }
  func.func @transform_2(%arg0: i32) -> (i32, i32) {
    %c0_i32 = arith.constant 0 : i32
    %c0_i32_0 = arith.constant 0 : i32
    %c0_i32_1 = arith.constant 0 : i32
    return %c0_i32, %c0_i32_0 : i32, i32
  }
  func.func @transform_3(%arg0: i32) -> (i32, i32, i32) {
    %c0_i32 = arith.constant 0 : i32
    %c0_i32_0 = arith.constant 0 : i32
    %c0_i32_1 = arith.constant 0 : i32
    %c0_i32_2 = arith.constant 0 : i32
    return %c0_i32, %c0_i32_0, %c0_i32_1 : i32, i32, i32
  }
  func.func @transform_4(%arg0: i32) -> (i32, i32) {
    %c0_i32 = arith.constant 0 : i32
    %c0_i32_0 = arith.constant 0 : i32
    %c0_i32_1 = arith.constant 0 : i32
    return %c0_i32, %c0_i32_0 : i32, i32
  }
  func.func @transform_5(%arg0: i32) -> (i32, i32) {
    %c0_i32 = arith.constant 0 : i32
    %c0_i32_0 = arith.constant 0 : i32
    return %c0_i32, %arg0 : i32, i32
  }
}

</mosaic_0001>

<llo_original>
// kernel: forward_pallas.1
$region0: #{forward_pallas.1}
  #allocation0 [shape = 'u32[]', space=smem, size = 0x4, offset = 0x4, fixed_abs, tag = 'smem constant byte address 0x4 - core index']
  #allocation1 [shape = 'u32[72,128]{1,0:T(1,128)}', space=vmem, size = 0x9000, scoped, tag = 'internal scratch']
  #allocation2 [shape = 'bf16[8,384]{1,0:T(8,128)(2,1)}', space=vmem, size = 0x1800, scoped, tag = 'scratch operand']
  #allocation3 [shape = 'f32[8,256]{1,0:T(8,128)}', space=vmem, size = 0x2000, scoped, tag = 'scratch operand']
  %s0 = inlined_call_operand.vmem [shape: bf16[3,160,256], index: 0, kind: input, shape index: {}]
  %s1 = inlined_call_operand.vmem [shape: bf16[8,160], index: 1, kind: input, shape index: {}]
  %s2 = inlined_call_operand.vmem [shape: f32[8,1], index: 2, kind: input, shape index: {}]
  %s3 = inlined_call_operand.vmem [shape: bf16[40,8,8], index: 3, kind: input, shape index: {}]
  %s4 = inlined_call_operand.vmem [shape: f32[8,1], index: 4, kind: input, shape index: {}]
  %s5 = inlined_call_operand.vmem [shape: f32[8,256], index: 5, kind: output, shape index: {}]
  %s6 = sld [smem:[#allocation0]]
  $region30: #{forward_pallas.1} parent=0
    _
  %s8 = ssub.s32 1, %s6
  %s9 = scalar_select 0, %s8, %s6
  // Predicated region
  $region2: #{forward_pallas.1} parent=0 // pred_check
    _
  $region3: #{forward_pallas.1} parent=0 // pred_check_branch
    %11 = sbr.rel (0) target = $region5
  $region4: #{forward_pallas.1} parent=0 // pred_region
    _
  $region5: #{forward_pallas.1} parent=0 // pred_fallthru
    _
  // Predicated region
  $region6: #{forward_pallas.1} parent=0 // pred_check
    _
  $region7: #{forward_pallas.1} parent=0 // pred_check_branch
    %13 = sbr.rel (0) target = $region9
  $region8: #{forward_pallas.1} parent=0 // pred_region
    _
  $region9: #{forward_pallas.1} parent=0 // pred_fallthru
    _
  // Predicated region
  $region10: #{forward_pallas.1} parent=0 // pred_check
    _
  $region11: #{forward_pallas.1} parent=0 // pred_check_branch
    %15 = sbr.rel (0) target = $region13
  $region12: #{forward_pallas.1} parent=0 // pred_region
    _
  $region13: #{forward_pallas.1} parent=0 // pred_fallthru
    _
  // Predicated region
  $region14: #{forward_pallas.1} parent=0 // pred_check
    _
  $region15: #{forward_pallas.1} parent=0 // pred_check_branch
    %17 = sbr.rel (0) target = $region17
  $region16: #{forward_pallas.1} parent=0 // pred_region
    _
  $region17: #{forward_pallas.1} parent=0 // pred_fallthru
    _
  // Predicated region
  $region18: #{forward_pallas.1} parent=0 // pred_check
    _
  $region19: #{forward_pallas.1} parent=0 // pred_check_branch
    %19 = sbr.rel (0) target = $region21
  $region20: #{forward_pallas.1} parent=0 // pred_region
    _
  $region21: #{forward_pallas.1} parent=0 // pred_fallthru
    _
  %v21 = vld [vmem:[%s1] sm:$0xff]
  %v22 = vld [vmem:[%s0] sm:$0xff]
  %v23 = vld [vmem:[%s0 + $0x8] sm:$0xff]
  %v24 = vld [vmem:[%s0 + $0x10] sm:$0xff]
  %v25 = vld [vmem:[%s0 + $0x18] sm:$0xff]
  %v26 = vld [vmem:[%s0 + $0x20] sm:$0xff]
  %v27 = vld [vmem:[%s0 + $0x28] sm:$0xff]
  %v28 = vld [vmem:[%s0 + $0x30] sm:$0xff]
  %v29 = vld [vmem:[%s0 + $0x38] sm:$0xff]
  %v30 = vld [vmem:[%s0 + $0x40] sm:$0xff]
  %v31 = vld [vmem:[%s0 + $0x48] sm:$0xff]
  %v32 = vld [vmem:[%s0 + $0x50] sm:$0xff]
  %v33 = vld [vmem:[%s0 + $0x58] sm:$0xff]
  %v34 = vld [vmem:[%s0 + $0x60] sm:$0xff]
  %v35 = vld [vmem:[%s0 + $0x68] sm:$0xff]
  %v36 = vld [vmem:[%s0 + $0x70] sm:$0xff]
  %v37 = vld [vmem:[%s0 + $0x78] sm:$0xff]
  %v38 = vld [vmem:[%s0 + $0x80] sm:$0xff]
  %v39 = vld [vmem:[%s0 + $0x88] sm:$0xff]
  %v40 = vld [vmem:[%s0 + $0x90] sm:$0xff]
  %v41 = vld [vmem:[%s0 + $0x98] sm:$0xff]
  %v43 = vunpack.c.l.b16 %v21
  %v44 = vunpack.c.h.b16 %v21
  %v45 = vpack.c.b16 %v43, %v43
  %v46 = vpack.c.b16 %v44, %v44
  %v68 = vunpack.c.l.b16 %v22
  %v69 = vunpack.c.h.b16 %v22
  %v70 = vunpack.c.l.b16 %v23
  %v71 = vunpack.c.h.b16 %v23
  %v72 = vunpack.c.l.b16 %v24
  %v73 = vunpack.c.h.b16 %v24
  %v74 = vunpack.c.l.b16 %v25
  %v75 = vunpack.c.h.b16 %v25
  %v76 = vunpack.c.l.b16 %v26
  %v77 = vunpack.c.h.b16 %v26
  %v78 = vunpack.c.l.b16 %v27
  %v79 = vunpack.c.h.b16 %v27
  %v80 = vunpack.c.l.b16 %v28
  %v81 = vunpack.c.h.b16 %v28
  %v82 = vunpack.c.l.b16 %v29
  %v83 = vunpack.c.h.b16 %v29
  %v84 = vunpack.c.l.b16 %v30
  %v85 = vunpack.c.h.b16 %v30
  %v86 = vunpack.c.l.b16 %v31
  %v87 = vunpack.c.h.b16 %v31
  %v88 = vunpack.c.l.b16 %v32
  %v89 = vunpack.c.h.b16 %v32
  %v90 = vunpack.c.l.b16 %v33
  %v91 = vunpack.c.h.b16 %v33
  %v92 = vunpack.c.l.b16 %v34
  %v93 = vunpack.c.h.b16 %v34
  %v94 = vunpack.c.l.b16 %v35
  %v95 = vunpack.c.h.b16 %v35
  %v96 = vunpack.c.l.b16 %v36
  %v97 = vunpack.c.h.b16 %v36
  %v98 = vunpack.c.l.b16 %v37
  %v99 = vunpack.c.h.b16 %v37
  %v100 = vunpack.c.l.b16 %v38
  %v101 = vunpack.c.h.b16 %v38
  %v102 = vunpack.c.l.b16 %v39
  %v103 = vunpack.c.h.b16 %v39
  %v104 = vunpack.c.l.b16 %v40
  %v105 = vunpack.c.h.b16 %v40
  %v106 = vunpack.c.l.b16 %v41
  %v107 = vunpack.c.h.b16 %v41
  %v108 = vpack.c.b16 %v70, %v68
  %v109 = vpack.c.b16 %v71, %v69
  %v110 = vpack.c.b16 %v74, %v72
  %v111 = vpack.c.b16 %v75, %v73
  %v112 = vpack.c.b16 %v78, %v76
  %v113 = vpack.c.b16 %v79, %v77
  %v114 = vpack.c.b16 %v82, %v80
  %v115 = vpack.c.b16 %v83, %v81
  %v116 = vpack.c.b16 %v86, %v84
  %v117 = vpack.c.b16 %v87, %v85
  %v118 = vpack.c.b16 %v90, %v88
  %v119 = vpack.c.b16 %v91, %v89
  %v120 = vpack.c.b16 %v94, %v92
  %v121 = vpack.c.b16 %v95, %v93
  %v122 = vpack.c.b16 %v98, %v96
  %v123 = vpack.c.b16 %v99, %v97
  %v124 = vpack.c.b16 %v102, %v100
  %v125 = vpack.c.b16 %v103, %v101
  %v126 = vpack.c.b16 %v106, %v104
  %v127 = vpack.c.b16 %v107, %v105
  %vm148 = vcmask 261120
  %v150 = vsel %vm148, %v46, 0
  %152 = vmatpush.bf16.msra.mxu0 %v122
  %153 = vmatpush.bf16.msra.mxu0 %v120
  %154 = vmatpush.bf16.msra.mxu0 %v118
  %155 = vmatpush.bf16.msra.mxu0 %v116
  %156 = vmatpush.bf16.msra.mxu0 %v114
  %157 = vmatpush.bf16.msra.mxu0 %v112
  %158 = vmatpush.bf16.msra.mxu0 %v110
  %159 = vmatpush.bf16.msra.mxu0 %v108
  %160 = vmatmul.bf16.gmra.mxu0 %v45
  %v161 = vpop.f32.mrf.mxu0
  %v162 = vadd.f32 0.0, %v161
  %v163 = vpop.f32.mrf.mxu0
  %164 = vdwg.mxu0
  %165 = vmatpush.bf16.msra.mxu0 0
  %166 = vmatpush.bf16.msra.mxu0 0
  %167 = vmatpush.bf16.msra.mxu0 0
  %168 = vmatpush.bf16.msra.mxu0 0
  %169 = vmatpush.bf16.msra.mxu0 0
  %170 = vmatpush.bf16.msra.mxu0 0
  %171 = vmatpush.bf16.msra.mxu0 %v126
  %172 = vmatpush.bf16.msra.mxu0 %v124
  %173 = vmatmul.bf16.gmra.mxu0 %v150
  %v174 = vpop.f32.mrf.mxu0
  %v175 = vadd.f32 %v162, %v174
  %v176 = vpop.f32.mrf.mxu0
  %177 = vdwg.mxu0
  %178 = vmatpush.bf16.msra.mxu0 %v123
  %179 = vmatpush.bf16.msra.mxu0 %v121
  %180 = vmatpush.bf16.msra.mxu0 %v119
  %181 = vmatpush.bf16.msra.mxu0 %v117
  %182 = vmatpush.bf16.msra.mxu0 %v115
  %183 = vmatpush.bf16.msra.mxu0 %v113
  %184 = vmatpush.bf16.msra.mxu0 %v111
  %185 = vmatpush.bf16.msra.mxu0 %v109
  %186 = vmatmul.bf16.gmra.mxu0 %v45
  %v187 = vpop.f32.mrf.mxu0
  %v188 = vadd.f32 0.0, %v187
  %v189 = vpop.f32.mrf.mxu0
  %190 = vdwg.mxu0
  %191 = vmatpush.bf16.msra.mxu0 0
  %192 = vmatpush.bf16.msra.mxu0 0
  %193 = vmatpush.bf16.msra.mxu0 0
  %194 = vmatpush.bf16.msra.mxu0 0
  %195 = vmatpush.bf16.msra.mxu0 0
  %196 = vmatpush.bf16.msra.mxu0 0
  %197 = vmatpush.bf16.msra.mxu0 %v127
  %198 = vmatpush.bf16.msra.mxu0 %v125
  %199 = vmatmul.bf16.gmra.mxu0 %v150
  %v200 = vpop.f32.mrf.mxu0
  %v201 = vadd.f32 %v188, %v200
  %v202 = vpop.f32.mrf.mxu0
  %203 = vdwg.mxu0
  %204 = vst [vmem:[#allocation3] sm:$0xff] %v175
  %205 = vst [vmem:[#allocation3 + $0x8] sm:$0xff] %v201
  %v206 = vld [vmem:[#allocation3] sm:$0xff]
  %v207 = vld [vmem:[#allocation3 + $0x8] sm:$0xff]
  %s208 = scalar_lea.vmem %s0, 160
  %v209 = vld [vmem:[%s208] sm:$0xff]
  %v210 = vld [vmem:[%s208 + $0x8] sm:$0xff]
  %v211 = vld [vmem:[%s208 + $0x10] sm:$0xff]
  %v212 = vld [vmem:[%s208 + $0x18] sm:$0xff]
  %v213 = vld [vmem:[%s208 + $0x20] sm:$0xff]
  %v214 = vld [vmem:[%s208 + $0x28] sm:$0xff]
  %v215 = vld [vmem:[%s208 + $0x30] sm:$0xff]
  %v216 = vld [vmem:[%s208 + $0x38] sm:$0xff]
  %v217 = vld [vmem:[%s208 + $0x40] sm:$0xff]
  %v218 = vld [vmem:[%s208 + $0x48] sm:$0xff]
  %v219 = vld [vmem:[%s208 + $0x50] sm:$0xff]
  %v220 = vld [vmem:[%s208 + $0x58] sm:$0xff]
  %v221 = vld [vmem:[%s208 + $0x60] sm:$0xff]
  %v222 = vld [vmem:[%s208 + $0x68] sm:$0xff]
  %v223 = vld [vmem:[%s208 + $0x70] sm:$0xff]
  %v224 = vld [vmem:[%s208 + $0x78] sm:$0xff]
  %v225 = vld [vmem:[%s208 + $0x80] sm:$0xff]
  %v226 = vld [vmem:[%s208 + $0x88] sm:$0xff]
  %v227 = vld [vmem:[%s208 + $0x90] sm:$0xff]
  %v228 = vld [vmem:[%s208 + $0x98] sm:$0xff]
  %v249 = vunpack.c.l.b16 %v209
  %v250 = vunpack.c.h.b16 %v209
  %v251 = vunpack.c.l.b16 %v210
  %v252 = vunpack.c.h.b16 %v210
  %v253 = vunpack.c.l.b16 %v211
  %v254 = vunpack.c.h.b16 %v211
  %v255 = vunpack.c.l.b16 %v212
  %v256 = vunpack.c.h.b16 %v212
  %v257 = vunpack.c.l.b16 %v213
  %v258 = vunpack.c.h.b16 %v213
  %v259 = vunpack.c.l.b16 %v214
  %v260 = vunpack.c.h.b16 %v214
  %v261 = vunpack.c.l.b16 %v215
  %v262 = vunpack.c.h.b16 %v215
  %v263 = vunpack.c.l.b16 %v216
  %v264 = vunpack.c.h.b16 %v216
  %v265 = vunpack.c.l.b16 %v217
  %v266 = vunpack.c.h.b16 %v217
  %v267 = vunpack.c.l.b16 %v218
  %v268 = vunpack.c.h.b16 %v218
  %v269 = vunpack.c.l.b16 %v219
  %v270 = vunpack.c.h.b16 %v219
  %v271 = vunpack.c.l.b16 %v220
  %v272 = vunpack.c.h.b16 %v220
  %v273 = vunpack.c.l.b16 %v221
  %v274 = vunpack.c.h.b16 %v221
  %v275 = vunpack.c.l.b16 %v222
  %v276 = vunpack.c.h.b16 %v222
  %v277 = vunpack.c.l.b16 %v223
  %v278 = vunpack.c.h.b16 %v223
  %v279 = vunpack.c.l.b16 %v224
  %v280 = vunpack.c.h.b16 %v224
  %v281 = vunpack.c.l.b16 %v225
  %v282 = vunpack.c.h.b16 %v225
  %v283 = vunpack.c.l.b16 %v226
  %v284 = vunpack.c.h.b16 %v226
  %v285 = vunpack.c.l.b16 %v227
  %v286 = vunpack.c.h.b16 %v227
  %v287 = vunpack.c.l.b16 %v228
  %v288 = vunpack.c.h.b16 %v228
  %v289 = vpack.c.b16 %v251, %v249
  %v290 = vpack.c.b16 %v252, %v250
  %v291 = vpack.c.b16 %v255, %v253
  %v292 = vpack.c.b16 %v256, %v254
  %v293 = vpack.c.b16 %v259, %v257
  %v294 = vpack.c.b16 %v260, %v258
  %v295 = vpack.c.b16 %v263, %v261
  %v296 = vpack.c.b16 %v264, %v262
  %v297 = vpack.c.b16 %v267, %v265
  %v298 = vpack.c.b16 %v268, %v266
  %v299 = vpack.c.b16 %v271, %v269
  %v300 = vpack.c.b16 %v272, %v270
  %v301 = vpack.c.b16 %v275, %v273
  %v302 = vpack.c.b16 %v276, %v274
  %v303 = vpack.c.b16 %v279, %v277
  %v304 = vpack.c.b16 %v280, %v278
  %v305 = vpack.c.b16 %v283, %v281
  %v306 = vpack.c.b16 %v284, %v282
  %v307 = vpack.c.b16 %v287, %v285
  %v308 = vpack.c.b16 %v288, %v286
  %329 = vmatpush.bf16.msra.mxu0 %v303
  %330 = vmatpush.bf16.msra.mxu0 %v301
  %331 = vmatpush.bf16.msra.mxu0 %v299
  %332 = vmatpush.bf16.msra.mxu0 %v297
  %333 = vmatpush.bf16.msra.mxu0 %v295
  %334 = vmatpush.bf16.msra.mxu0 %v293
  %335 = vmatpush.bf16.msra.mxu0 %v291
  %336 = vmatpush.bf16.msra.mxu0 %v289
  %337 = vmatmul.bf16.gmra.mxu0 %v45
  %v338 = vpop.f32.mrf.mxu0
  %v339 = vadd.f32 0.0, %v338
  %v340 = vpop.f32.mrf.mxu0
  %341 = vdwg.mxu0
  %342 = vmatpush.bf16.msra.mxu0 0
  %343 = vmatpush.bf16.msra.mxu0 0
  %344 = vmatpush.bf16.msra.mxu0 0
  %345 = vmatpush.bf16.msra.mxu0 0
  %346 = vmatpush.bf16.msra.mxu0 0
  %347 = vmatpush.bf16.msra.mxu0 0
  %348 = vmatpush.bf16.msra.mxu0 %v307
  %349 = vmatpush.bf16.msra.mxu0 %v305
  %350 = vmatmul.bf16.gmra.mxu0 %v150
  %v351 = vpop.f32.mrf.mxu0
  %v352 = vadd.f32 %v339, %v351
  %v353 = vpop.f32.mrf.mxu0
  %354 = vdwg.mxu0
  %355 = vmatpush.bf16.msra.mxu0 %v304
  %356 = vmatpush.bf16.msra.mxu0 %v302
  %357 = vmatpush.bf16.msra.mxu0 %v300
  %358 = vmatpush.bf16.msra.mxu0 %v298
  %359 = vmatpush.bf16.msra.mxu0 %v296
  %360 = vmatpush.bf16.msra.mxu0 %v294
  %361 = vmatpush.bf16.msra.mxu0 %v292
  %362 = vmatpush.bf16.msra.mxu0 %v290
  %363 = vmatmul.bf16.gmra.mxu0 %v45
  %v364 = vpop.f32.mrf.mxu0
  %v365 = vadd.f32 0.0, %v364
  %v366 = vpop.f32.mrf.mxu0
  %367 = vdwg.mxu0
  %368 = vmatpush.bf16.msra.mxu0 0
  %369 = vmatpush.bf16.msra.mxu0 0
  %370 = vmatpush.bf16.msra.mxu0 0
  %371 = vmatpush.bf16.msra.mxu0 0
  %372 = vmatpush.bf16.msra.mxu0 0
  %373 = vmatpush.bf16.msra.mxu0 0
  %374 = vmatpush.bf16.msra.mxu0 %v308
  %375 = vmatpush.bf16.msra.mxu0 %v306
  %376 = vmatmul.bf16.gmra.mxu0 %v150
  %v377 = vpop.f32.mrf.mxu0
  %v378 = vadd.f32 %v365, %v377
  %v379 = vpop.f32.mrf.mxu0
  %380 = vdwg.mxu0
  %v381 = vmax.f32 %v206, %v352
  %v382 = vmax.f32 %v207, %v378
  %383 = vst [vmem:[#allocation3] sm:$0xff] %v381
  %384 = vst [vmem:[#allocation3 + $0x8] sm:$0xff] %v382
  %v385 = vld [vmem:[#allocation3] sm:$0xff]
  %v386 = vld [vmem:[#allocation3 + $0x8] sm:$0xff]
  %s387 = scalar_lea.vmem %s0, 320
  %v388 = vld [vmem:[%s387] sm:$0xff]
  %v389 = vld [vmem:[%s387 + $0x8] sm:$0xff]
  %v390 = vld [vmem:[%s387 + $0x10] sm:$0xff]
  %v391 = vld [vmem:[%s387 + $0x18] sm:$0xff]
  %v392 = vld [vmem:[%s387 + $0x20] sm:$0xff]
  %v393 = vld [vmem:[%s387 + $0x28] sm:$0xff]
  %v394 = vld [vmem:[%s387 + $0x30] sm:$0xff]
  %v395 = vld [vmem:[%s387 + $0x38] sm:$0xff]
  %v396 = vld [vmem:[%s387 + $0x40] sm:$0xff]
  %v397 = vld [vmem:[%s387 + $0x48] sm:$0xff]
  %v398 = vld [vmem:[%s387 + $0x50] sm:$0xff]
  %v399 = vld [vmem:[%s387 + $0x58] sm:$0xff]
  %v400 = vld [vmem:[%s387 + $0x60] sm:$0xff]
  %v401 = vld [vmem:[%s387 + $0x68] sm:$0xff]
  %v402 = vld [vmem:[%s387 + $0x70] sm:$0xff]
  %v403 = vld [vmem:[%s387 + $0x78] sm:$0xff]
  %v404 = vld [vmem:[%s387 + $0x80] sm:$0xff]
  %v405 = vld [vmem:[%s387 + $0x88] sm:$0xff]
  %v406 = vld [vmem:[%s387 + $0x90] sm:$0xff]
  %v407 = vld [vmem:[%s387 + $0x98] sm:$0xff]
  %v428 = vunpack.c.l.b16 %v388
  %v429 = vunpack.c.h.b16 %v388
  %v430 = vunpack.c.l.b16 %v389
  %v431 = vunpack.c.h.b16 %v389
  %v432 = vunpack.c.l.b16 %v390
  %v433 = vunpack.c.h.b16 %v390
  %v434 = vunpack.c.l.b16 %v391
  %v435 = vunpack.c.h.b16 %v391
  %v436 = vunpack.c.l.b16 %v392
  %v437 = vunpack.c.h.b16 %v392
  %v438 = vunpack.c.l.b16 %v393
  %v439 = vunpack.c.h.b16 %v393
  %v440 = vunpack.c.l.b16 %v394
  %v441 = vunpack.c.h.b16 %v394
  %v442 = vunpack.c.l.b16 %v395
  %v443 = vunpack.c.h.b16 %v395
  %v444 = vunpack.c.l.b16 %v396
  %v445 = vunpack.c.h.b16 %v396
  %v446 = vunpack.c.l.b16 %v397
  %v447 = vunpack.c.h.b16 %v397
  %v448 = vunpack.c.l.b16 %v398
  %v449 = vunpack.c.h.b16 %v398
  %v450 = vunpack.c.l.b16 %v399
  %v451 = vunpack.c.h.b16 %v399
  %v452 = vunpack.c.l.b16 %v400
  %v453 = vunpack.c.h.b16 %v400
  %v454 = vunpack.c.l.b16 %v401
  %v455 = vunpack.c.h.b16 %v401
  %v456 = vunpack.c.l.b16 %v402
  %v457 = vunpack.c.h.b16 %v402
  %v458 = vunpack.c.l.b16 %v403
  %v459 = vunpack.c.h.b16 %v403
  %v460 = vunpack.c.l.b16 %v404
  %v461 = vunpack.c.h.b16 %v404
  %v462 = vunpack.c.l.b16 %v405
  %v463 = vunpack.c.h.b16 %v405
  %v464 = vunpack.c.l.b16 %v406
  %v465 = vunpack.c.h.b16 %v406
  %v466 = vunpack.c.l.b16 %v407
  %v467 = vunpack.c.h.b16 %v407
  %v468 = vpack.c.b16 %v430, %v428
  %v469 = vpack.c.b16 %v431, %v429
  %v470 = vpack.c.b16 %v434, %v432
  %v471 = vpack.c.b16 %v435, %v433
  %v472 = vpack.c.b16 %v438, %v436
  %v473 = vpack.c.b16 %v439, %v437
  %v474 = vpack.c.b16 %v442, %v440
  %v475 = vpack.c.b16 %v443, %v441
  %v476 = vpack.c.b16 %v446, %v444
  %v477 = vpack.c.b16 %v447, %v445
  %v478 = vpack.c.b16 %v450, %v448
  %v479 = vpack.c.b16 %v451, %v449
  %v480 = vpack.c.b16 %v454, %v452
  %v481 = vpack.c.b16 %v455, %v453
  %v482 = vpack.c.b16 %v458, %v456
  %v483 = vpack.c.b16 %v459, %v457
  %v484 = vpack.c.b16 %v462, %v460
  %v485 = vpack.c.b16 %v463, %v461
  %v486 = vpack.c.b16 %v466, %v464
  %v487 = vpack.c.b16 %v467, %v465
  %508 = vmatpush.bf16.msra.mxu0 %v482
  %509 = vmatpush.bf16.msra.mxu0 %v480
  %510 = vmatpush.bf16.msra.mxu0 %v478
  %511 = vmatpush.bf16.msra.mxu0 %v476
  %512 = vmatpush.bf16.msra.mxu0 %v474
  %513 = vmatpush.bf16.msra.mxu0 %v472
  %514 = vmatpush.bf16.msra.mxu0 %v470
  %515 = vmatpush.bf16.msra.mxu0 %v468
  %516 = vmatmul.bf16.gmra.mxu0 %v45
  %v517 = vpop.f32.mrf.mxu0
  %v518 = vadd.f32 0.0, %v517
  %v519 = vpop.f32.mrf.mxu0
  %520 = vdwg.mxu0
  %521 = vmatpush.bf16.msra.mxu0 0
  %522 = vmatpush.bf16.msra.mxu0 0
  %523 = vmatpush.bf16.msra.mxu0 0
  %524 = vmatpush.bf16.msra.mxu0 0
  %525 = vmatpush.bf16.msra.mxu0 0
  %526 = vmatpush.bf16.msra.mxu0 0
  %527 = vmatpush.bf16.msra.mxu0 %v486
  %528 = vmatpush.bf16.msra.mxu0 %v484
  %529 = vmatmul.bf16.gmra.mxu0 %v150
  %v530 = vpop.f32.mrf.mxu0
  %v531 = vadd.f32 %v518, %v530
  %v532 = vpop.f32.mrf.mxu0
  %533 = vdwg.mxu0
  %534 = vmatpush.bf16.msra.mxu0 %v483
  %535 = vmatpush.bf16.msra.mxu0 %v481
  %536 = vmatpush.bf16.msra.mxu0 %v479
  %537 = vmatpush.bf16.msra.mxu0 %v477
  %538 = vmatpush.bf16.msra.mxu0 %v475
  %539 = vmatpush.bf16.msra.mxu0 %v473
  %540 = vmatpush.bf16.msra.mxu0 %v471
  %541 = vmatpush.bf16.msra.mxu0 %v469
  %542 = vmatmul.bf16.gmra.mxu0 %v45
  %v543 = vpop.f32.mrf.mxu0
  %v544 = vadd.f32 0.0, %v543
  %v545 = vpop.f32.mrf.mxu0
  %546 = vdwg.mxu0
  %547 = vmatpush.bf16.msra.mxu0 0
  %548 = vmatpush.bf16.msra.mxu0 0
  %549 = vmatpush.bf16.msra.mxu0 0
  %550 = vmatpush.bf16.msra.mxu0 0
  %551 = vmatpush.bf16.msra.mxu0 0
  %552 = vmatpush.bf16.msra.mxu0 0
  %553 = vmatpush.bf16.msra.mxu0 %v487
  %554 = vmatpush.bf16.msra.mxu0 %v485
  %555 = vmatmul.bf16.gmra.mxu0 %v150
  %v556 = vpop.f32.mrf.mxu0
  %v557 = vadd.f32 %v544, %v556
  %v558 = vpop.f32.mrf.mxu0
  %559 = vdwg.mxu0
  %v560 = vmax.f32 %v385, %v531
  %v561 = vmax.f32 %v386, %v557
  %562 = vst [vmem:[#allocation3] sm:$0xff] %v560
  %563 = vst [vmem:[#allocation3 + $0x8] sm:$0xff] %v561
  %v564 = vld [vmem:[#allocation3] sm:$0xff]
  %v565 = vld [vmem:[#allocation3 + $0x8] sm:$0xff]
  %v566 = vld [vmem:[%s2] sm:$0xff]
  %568 = vset.pattern.permute.xlu0 0
  %569 = vperm.xlu0 %568, %v566
  %v570 = vpop.permute.xlu0 %569
  %v572 = vadd.f32 %v564, %v570
  %v573 = vadd.f32 %v565, %v570
  %v574 = vmax.f32 %v572, 0.0
  %v575 = vmax.f32 %v573, 0.0
  %v576 = vpack.c.bf16 %v575, %v574
  %577 = vst [vmem:[#allocation2] sm:$0xff] %v576
  %578 = vst [vmem:[#allocation2 + $0x8] sm:$0xf] 0
  %v579 = vld [vmem:[%s4] sm:$0xff]
  %581 = vset.pattern.permute.xlu0 0
  %582 = vperm.xlu0 %581, %v579
  %v583 = vpop.permute.xlu0 %582
  %585 = vst [vmem:[#allocation3] sm:$0xff] %v583
  %586 = vst [vmem:[#allocation3 + $0x8] sm:$0xff] %v583
  %v587 = vld [vmem:[#allocation3] sm:$0xff]
  %v588 = vld [vmem:[#allocation3 + $0x8] sm:$0xff]
  %v589 = vld [vmem:[%s3] sm:$0xf]
  %v590 = vld [vmem:[#allocation2] sm:$0xff]
  %v592 = vunpack.c.l.b16 %v590
  %v593 = vunpack.c.h.b16 %v590
  %v594 = vpack.c.b16 %v592, %v592
  %v595 = vpack.c.b16 %v593, %v593
  %vm596 = vcmask 64512
  %v598 = vsel %vm596, %v589, 0
  %vm600 = vcmask 1043456
  %v602 = vsel %vm600, %v594, 0
  %v605 = vsel %vm600, %v595, 0
  %607 = vmatpush.bf16.msra.mxu0 0
  %608 = vmatpush.bf16.msra.mxu0 0
  %609 = vmatpush.bf16.msra.mxu0 0
  %610 = vmatpush.bf16.msra.mxu0 0
  %611 = vmatpush.bf16.msra.mxu0 0
  %612 = vmatpush.bf16.msra.mxu0 0
  %613 = vmatpush.bf16.msra.mxu0 0
  %614 = vmatpush.bf16.msra.mxu0 %v602
  %615 = vmatmul.bf16.gmra.mxu0 %v598
  %v616 = vpop.f32.mrf.mxu0
  %v617 = vadd.f32 0.0, %v616
  %v618 = vpop.f32.mrf.mxu0
  %619 = vdwg.mxu0
  %620 = vmatpush.bf16.msra.mxu0 0
  %621 = vmatpush.bf16.msra.mxu0 0
  %622 = vmatpush.bf16.msra.mxu0 0
  %623 = vmatpush.bf16.msra.mxu0 0
  %624 = vmatpush.bf16.msra.mxu0 0
  %625 = vmatpush.bf16.msra.mxu0 0
  %626 = vmatpush.bf16.msra.mxu0 0
  %627 = vmatpush.bf16.msra.mxu0 %v605
  %628 = vmatmul.bf16.gmra.mxu0 %v598
  %v629 = vpop.f32.mrf.mxu0
  %v630 = vadd.f32 0.0, %v629
  %v631 = vpop.f32.mrf.mxu0
  %632 = vdwg.mxu0
  %v633 = vadd.f32 %v587, %v617
  %v634 = vadd.f32 %v588, %v630
  %635 = vst [vmem:[#allocation3] sm:$0xff] %v633
  %636 = vst [vmem:[#allocation3 + $0x8] sm:$0xff] %v634
  %v637 = vld [vmem:[#allocation3] sm:$0xff]
  %v638 = vld [vmem:[#allocation3 + $0x8] sm:$0xff]
  %s639 = scalar_lea.vmem %s3, 4
  %v640 = vld [vmem:[%s639] sm:$0xf]
  %v641 = vld [vmem:[#allocation2] sm:$0xff]
  %v642 = vld [vmem:[#allocation2 + $0x8] sm:$0xf]
  %v645 = vunpack.c.l.b16 %v641
  %v646 = vunpack.c.h.b16 %v641
  %v647 = vunpack.c.l.b16 %v642
  %v648 = vpack.c.b16 %v645, %v645
  %v649 = vpack.c.b16 %v646, %v646
  %v650 = vpack.c.b16 %v647, %v647
  %651 = vrot.lane.b32.xlu0 %v648, 127
  %v652 = vpop.permute.xlu0 %651
  %653 = vrot.lane.b32.xlu0 %v649, 127
  %v654 = vpop.permute.xlu0 %653
  %655 = vrot.lane.b32.xlu0 %v650, 127
  %v656 = vpop.permute.xlu0 %655
  %vm657 = vcmask 1039360
  %v658 = vsel %vm657, %v652, %v654
  %v659 = vsel %vm657, %v654, %v656
  %v661 = vsel %vm596, %v640, 0
  %v664 = vsel %vm600, %v658, 0
  %v667 = vsel %vm600, %v659, 0
  %669 = vmatpush.bf16.msra.mxu0 0
  %670 = vmatpush.bf16.msra.mxu0 0
  %671 = vmatpush.bf16.msra.mxu0 0
  %672 = vmatpush.bf16.msra.mxu0 0
  %673 = vmatpush.bf16.msra.mxu0 0
  %674 = vmatpush.bf16.msra.mxu0 0
  %675 = vmatpush.bf16.msra.mxu0 0
  %676 = vmatpush.bf16.msra.mxu0 %v664
  %677 = vmatmul.bf16.gmra.mxu0 %v661
  %v678 = vpop.f32.mrf.mxu0
  %v679 = vadd.f32 0.0, %v678
  %v680 = vpop.f32.mrf.mxu0
  %681 = vdwg.mxu0
  %682 = vmatpush.bf16.msra.mxu0 0
  %683 = vmatpush.bf16.msra.mxu0 0
  %684 = vmatpush.bf16.msra.mxu0 0
  %685 = vmatpush.bf16.msra.mxu0 0
  %686 = vmatpush.bf16.msra.mxu0 0
  %687 = vmatpush.bf16.msra.mxu0 0
  %688 = vmatpush.bf16.msra.mxu0 0
  %689 = vmatpush.bf16.msra.mxu0 %v667
  %690 = vmatmul.bf16.gmra.mxu0 %v661
  %v691 = vpop.f32.mrf.mxu0
  %v692 = vadd.f32 0.0, %v691
  %v693 = vpop.f32.mrf.mxu0
  %694 = vdwg.mxu0
  %v695 = vadd.f32 %v637, %v679
  %v696 = vadd.f32 %v638, %v692
  %697 = vst [vmem:[#allocation3] sm:$0xff] %v695
  %698 = vst [vmem:[#allocation3 + $0x8] sm:$0xff] %v696
  %v699 = vld [vmem:[#allocation3] sm:$0xff]
  %v700 = vld [vmem:[#allocation3 + $0x8] sm:$0xff]
  %s701 = scalar_lea.vmem %s3, 8
  %v702 = vld [vmem:[%s701] sm:$0xf]
  %v703 = vld [vmem:[#allocation2] sm:$0xff]
  %v704 = vld [vmem:[#allocation2 + $0x8] sm:$0xf]
  %v707 = vunpack.c.l.b16 %v703
  %v708 = vunpack.c.h.b16 %v703
  %v709 = vunpack.c.l.b16 %v704
  %v710 = vpack.c.b16 %v707, %v707
  %v711 = vpack.c.b16 %v708, %v708
  %v712 = vpack.c.b16 %v709, %v709
  %713 = vrot.lane.b32.xlu0 %v710, 126
  %v714 = vpop.permute.xlu0 %713
  %715 = vrot.lane.b32.xlu0 %v711, 126
  %v716 = vpop.permute.xlu0 %715
  %717 = vrot.lane.b32.xlu0 %v712, 126
  %v718 = vpop.permute.xlu0 %717
  %vm719 = vcmask 1031168
  %v720 = vsel %vm719, %v714, %v716
  %v721 = vsel %vm719, %v716, %v718
  %v723 = vsel %vm596, %v702, 0
  %v726 = vsel %vm600, %v720, 0
  %v729 = vsel %vm600, %v721, 0
  %731 = vmatpush.bf16.msra.mxu0 0
  %732 = vmatpush.bf16.msra.mxu0 0
  %733 = vmatpush.bf16.msra.mxu0 0
  %734 = vmatpush.bf16.msra.mxu0 0
  %735 = vmatpush.bf16.msra.mxu0 0
  %736 = vmatpush.bf16.msra.mxu0 0
  %737 = vmatpush.bf16.msra.mxu0 0
  %738 = vmatpush.bf16.msra.mxu0 %v726
  %739 = vmatmul.bf16.gmra.mxu0 %v723
  %v740 = vpop.f32.mrf.mxu0
  %v741 = vadd.f32 0.0, %v740
  %v742 = vpop.f32.mrf.mxu0
  %743 = vdwg.mxu0
  %744 = vmatpush.bf16.msra.mxu0 0
  %745 = vmatpush.bf16.msra.mxu0 0
  %746 = vmatpush.bf16.msra.mxu0 0
  %747 = vmatpush.bf16.msra.mxu0 0
  %748 = vmatpush.bf16.msra.mxu0 0
  %749 = vmatpush.bf16.msra.mxu0 0
  %750 = vmatpush.bf16.msra.mxu0 0
  %751 = vmatpush.bf16.msra.mxu0 %v729
  %752 = vmatmul.bf16.gmra.mxu0 %v723
  %v753 = vpop.f32.mrf.mxu0
  %v754 = vadd.f32 0.0, %v753
  %v755 = vpop.f32.mrf.mxu0
  %756 = vdwg.mxu0
  %v757 = vadd.f32 %v699, %v741
  %v758 = vadd.f32 %v700, %v754
  %759 = vst [vmem:[#allocation3] sm:$0xff] %v757
  %760 = vst [vmem:[#allocation3 + $0x8] sm:$0xff] %v758
  %v761 = vld [vmem:[#allocation3] sm:$0xff]
  %v762 = vld [vmem:[#allocation3 + $0x8] sm:$0xff]
  %s763 = scalar_lea.vmem %s3, 12
  %v764 = vld [vmem:[%s763] sm:$0xf]
  %v765 = vld [vmem:[#allocation2] sm:$0xff]
  %v766 = vld [vmem:[#allocation2 + $0x8] sm:$0xf]
  %v769 = vunpack.c.l.b16 %v765
  %v770 = vunpack.c.h.b16 %v765
  %v771 = vunpack.c.l.b16 %v766
  %v772 = vpack.c.b16 %v769, %v769
  %v773 = vpack.c.b16 %v770, %v770
  %v774 = vpack.c.b16 %v771, %v771
  %775 = vrot.lane.b32.xlu0 %v772, 125
  %v776 = vpop.permute.xlu0 %775
  %777 = vrot.lane.b32.xlu0 %v773, 125
  %v778 = vpop.permute.xlu0 %777
  %779 = vrot.lane.b32.xlu0 %v774, 125
  %v780 = vpop.permute.xlu0 %779
  %vm781 = vcmask 1022976
  %v782 = vsel %vm781, %v776, %v778
  %v783 = vsel %vm781, %v778, %v780
  %v785 = vsel %vm596, %v764, 0
  %v788 = vsel %vm600, %v782, 0
  %v791 = vsel %vm600, %v783, 0
  %793 = vmatpush.bf16.msra.mxu0 0
  %794 = vmatpush.bf16.msra.mxu0 0
  %795 = vmatpush.bf16.msra.mxu0 0
  %796 = vmatpush.bf16.msra.mxu0 0
  %797 = vmatpush.bf16.msra.mxu0 0
  %798 = vmatpush.bf16.msra.mxu0 0
  %799 = vmatpush.bf16.msra.mxu0 0
  %800 = vmatpush.bf16.msra.mxu0 %v788
  %801 = vmatmul.bf16.gmra.mxu0 %v785
  %v802 = vpop.f32.mrf.mxu0
  %v803 = vadd.f32 0.0, %v802
  %v804 = vpop.f32.mrf.mxu0
  %805 = vdwg.mxu0
  %806 = vmatpush.bf16.msra.mxu0 0
  %807 = vmatpush.bf16.msra.mxu0 0
  %808 = vmatpush.bf16.msra.mxu0 0
  %809 = vmatpush.bf16.msra.mxu0 0
  %810 = vmatpush.bf16.msra.mxu0 0
  %811 = vmatpush.bf16.msra.mxu0 0
  %812 = vmatpush.bf16.msra.mxu0 0
  %813 = vmatpush.bf16.msra.mxu0 %v791
  %814 = vmatmul.bf16.gmra.mxu0 %v785
  %v815 = vpop.f32.mrf.mxu0
  %v816 = vadd.f32 0.0, %v815
  %v817 = vpop.f32.mrf.mxu0
  %818 = vdwg.mxu0
  %v819 = vadd.f32 %v761, %v803
  %v820 = vadd.f32 %v762, %v816
  %821 = vst [vmem:[#allocation3] sm:$0xff] %v819
  %822 = vst [vmem:[#allocation3 + $0x8] sm:$0xff] %v820
  %v823 = vld [vmem:[#allocation3] sm:$0xff]
  %v824 = vld [vmem:[#allocation3 + $0x8] sm:$0xff]
  %s825 = scalar_lea.vmem %s3, 16
  %v826 = vld [vmem:[%s825] sm:$0xf]
  %v827 = vld [vmem:[#allocation2] sm:$0xff]
  %v828 = vld [vmem:[#allocation2 + $0x8] sm:$0xf]
  %v831 = vunpack.c.l.b16 %v827
  %v832 = vunpack.c.h.b16 %v827
  %v833 = vunpack.c.l.b16 %v828
  %v834 = vpack.c.b16 %v831, %v831
  %v835 = vpack.c.b16 %v832, %v832
  %v836 = vpack.c.b16 %v833, %v833
  %837 = vrot.lane.b32.xlu0 %v834, 124
  %v838 = vpop.permute.xlu0 %837
  %839 = vrot.lane.b32.xlu0 %v835, 124
  %v840 = vpop.permute.xlu0 %839
  %841 = vrot.lane.b32.xlu0 %v836, 124
  %v842 = vpop.permute.xlu0 %841
  %vm843 = vcmask 1014784
  %v844 = vsel %vm843, %v838, %v840
  %v845 = vsel %vm843, %v840, %v842
  %v847 = vsel %vm596, %v826, 0
  %v850 = vsel %vm600, %v844, 0
  %v853 = vsel %vm600, %v845, 0
  %855 = vmatpush.bf16.msra.mxu0 0
  %856 = vmatpush.bf16.msra.mxu0 0
  %857 = vmatpush.bf16.msra.mxu0 0
  %858 = vmatpush.bf16.msra.mxu0 0
  %859 = vmatpush.bf16.msra.mxu0 0
  %860 = vmatpush.bf16.msra.mxu0 0
  %861 = vmatpush.bf16.msra.mxu0 0
  %862 = vmatpush.bf16.msra.mxu0 %v850
  %863 = vmatmul.bf16.gmra.mxu0 %v847
  %v864 = vpop.f32.mrf.mxu0
  %v865 = vadd.f32 0.0, %v864
  %v866 = vpop.f32.mrf.mxu0
  %867 = vdwg.mxu0
  %868 = vmatpush.bf16.msra.mxu0 0
  %869 = vmatpush.bf16.msra.mxu0 0
  %870 = vmatpush.bf16.msra.mxu0 0
  %871 = vmatpush.bf16.msra.mxu0 0
  %872 = vmatpush.bf16.msra.mxu0 0
  %873 = vmatpush.bf16.msra.mxu0 0
  %874 = vmatpush.bf16.msra.mxu0 0
  %875 = vmatpush.bf16.msra.mxu0 %v853
  %876 = vmatmul.bf16.gmra.mxu0 %v847
  %v877 = vpop.f32.mrf.mxu0
  %v878 = vadd.f32 0.0, %v877
  %v879 = vpop.f32.mrf.mxu0
  %880 = vdwg.mxu0
  %v881 = vadd.f32 %v823, %v865
  %v882 = vadd.f32 %v824, %v878
  %883 = vst [vmem:[#allocation3] sm:$0xff] %v881
  %884 = vst [vmem:[#allocation3 + $0x8] sm:$0xff] %v882
  %v885 = vld [vmem:[#allocation3] sm:$0xff]
  %v886 = vld [vmem:[#allocation3 + $0x8] sm:$0xff]
  %s887 = scalar_lea.vmem %s3, 20
  %v888 = vld [vmem:[%s887] sm:$0xf]
  %v889 = vld [vmem:[#allocation2] sm:$0xff]
  %v890 = vld [vmem:[#allocation2 + $0x8] sm:$0xf]
  %v893 = vunpack.c.l.b16 %v889
  %v894 = vunpack.c.h.b16 %v889
  %v895 = vunpack.c.l.b16 %v890
  %v896 = vpack.c.b16 %v893, %v893
  %v897 = vpack.c.b16 %v894, %v894
  %v898 = vpack.c.b16 %v895, %v895
  %899 = vrot.lane.b32.xlu0 %v896, 123
  %v900 = vpop.permute.xlu0 %899
  %901 = vrot.lane.b32.xlu0 %v897, 123
  %v902 = vpop.permute.xlu0 %901
  %903 = vrot.lane.b32.xlu0 %v898, 123
  %v904 = vpop.permute.xlu0 %903
  %vm905 = vcmask 1006592
  %v906 = vsel %vm905, %v900, %v902
  %v907 = vsel %vm905, %v902, %v904
  %v909 = vsel %vm596, %v888, 0
  %v912 = vsel %vm600, %v906, 0
  %v915 = vsel %vm600, %v907, 0
  %917 = vmatpush.bf16.msra.mxu0 0
  %918 = vmatpush.bf16.msra.mxu0 0
  %919 = vmatpush.bf16.msra.mxu0 0
  %920 = vmatpush.bf16.msra.mxu0 0
  %921 = vmatpush.bf16.msra.mxu0 0
  %922 = vmatpush.bf16.msra.mxu0 0
  %923 = vmatpush.bf16.msra.mxu0 0
  %924 = vmatpush.bf16.msra.mxu0 %v912
  %925 = vmatmul.bf16.gmra.mxu0 %v909
  %v926 = vpop.f32.mrf.mxu0
  %v927 = vadd.f32 0.0, %v926
  %v928 = vpop.f32.mrf.mxu0
  %929 = vdwg.mxu0
  %930 = vmatpush.bf16.msra.mxu0 0
  %931 = vmatpush.bf16.msra.mxu0 0
  %932 = vmatpush.bf16.msra.mxu0 0
  %933 = vmatpush.bf16.msra.mxu0 0
  %934 = vmatpush.bf16.msra.mxu0 0
  %935 = vmatpush.bf16.msra.mxu0 0
  %936 = vmatpush.bf16.msra.mxu0 0
  %937 = vmatpush.bf16.msra.mxu0 %v915
  %938 = vmatmul.bf16.gmra.mxu0 %v909
  %v939 = vpop.f32.mrf.mxu0
  %v940 = vadd.f32 0.0, %v939
  %v941 = vpop.f32.mrf.mxu0
  %942 = vdwg.mxu0
  %v943 = vadd.f32 %v885, %v927
  %v944 = vadd.f32 %v886, %v940
  %945 = vst [vmem:[#allocation3] sm:$0xff] %v943
  %946 = vst [vmem:[#allocation3 + $0x8] sm:$0xff] %v944
  %v947 = vld [vmem:[#allocation3] sm:$0xff]
  %v948 = vld [vmem:[#allocation3 + $0x8] sm:$0xff]
  %s949 = scalar_lea.vmem %s3, 24
  %v950 = vld [vmem:[%s949] sm:$0xf]
  %v951 = vld [vmem:[#allocation2] sm:$0xff]
  %v952 = vld [vmem:[#allocation2 + $0x8] sm:$0xf]
  %v955 = vunpack.c.l.b16 %v951
  %v956 = vunpack.c.h.b16 %v951
  %v957 = vunpack.c.l.b16 %v952
  %v958 = vpack.c.b16 %v955, %v955
  %v959 = vpack.c.b16 %v956, %v956
  %v960 = vpack.c.b16 %v957, %v957
  %961 = vrot.lane.b32.xlu0 %v958, 122
  %v962 = vpop.permute.xlu0 %961
  %963 = vrot.lane.b32.xlu0 %v959, 122
  %v964 = vpop.permute.xlu0 %963
  %965 = vrot.lane.b32.xlu0 %v960, 122
  %v966 = vpop.permute.xlu0 %965
  %vm967 = vcmask 998400
  %v968 = vsel %vm967, %v962, %v964
  %v969 = vsel %vm967, %v964, %v966
  %v971 = vsel %vm596, %v950, 0
  %v974 = vsel %vm600, %v968, 0
  %v977 = vsel %vm600, %v969, 0
  %979 = vmatpush.bf16.msra.mxu0 0
  %980 = vmatpush.bf16.msra.mxu0 0
  %981 = vmatpush.bf16.msra.mxu0 0
  %982 = vmatpush.bf16.msra.mxu0 0
  %983 = vmatpush.bf16.msra.mxu0 0
  %984 = vmatpush.bf16.msra.mxu0 0
  %985 = vmatpush.bf16.msra.mxu0 0
  %986 = vmatpush.bf16.msra.mxu0 %v974
  %987 = vmatmul.bf16.gmra.mxu0 %v971
  %v988 = vpop.f32.mrf.mxu0
  %v989 = vadd.f32 0.0, %v988
  %v990 = vpop.f32.mrf.mxu0
  %991 = vdwg.mxu0
  %992 = vmatpush.bf16.msra.mxu0 0
  %993 = vmatpush.bf16.msra.mxu0 0
  %994 = vmatpush.bf16.msra.mxu0 0
  %995 = vmatpush.bf16.msra.mxu0 0
  %996 = vmatpush.bf16.msra.mxu0 0
  %997 = vmatpush.bf16.msra.mxu0 0
  %998 = vmatpush.bf16.msra.mxu0 0
  %999 = vmatpush.bf16.msra.mxu0 %v977
  %1000 = vmatmul.bf16.gmra.mxu0 %v971
  %v1001 = vpop.f32.mrf.mxu0
  %v1002 = vadd.f32 0.0, %v1001
  %v1003 = vpop.f32.mrf.mxu0
  %1004 = vdwg.mxu0
  %v1005 = vadd.f32 %v947, %v989
  %v1006 = vadd.f32 %v948, %v1002
  %1007 = vst [vmem:[#allocation3] sm:$0xff] %v1005
  %1008 = vst [vmem:[#allocation3 + $0x8] sm:$0xff] %v1006
  %v1009 = vld [vmem:[#allocation3] sm:$0xff]
  %v1010 = vld [vmem:[#allocation3 + $0x8] sm:$0xff]
  %s1011 = scalar_lea.vmem %s3, 28
  %v1012 = vld [vmem:[%s1011] sm:$0xf]
  %v1013 = vld [vmem:[#allocation2] sm:$0xff]
  %v1014 = vld [vmem:[#allocation2 + $0x8] sm:$0xf]
  %v1017 = vunpack.c.l.b16 %v1013
  %v1018 = vunpack.c.h.b16 %v1013
  %v1019 = vunpack.c.l.b16 %v1014
  %v1020 = vpack.c.b16 %v1017, %v1017
  %v1021 = vpack.c.b16 %v1018, %v1018
  %v1022 = vpack.c.b16 %v1019, %v1019
  %1023 = vrot.lane.b32.xlu0 %v1020, 121
  %v1024 = vpop.permute.xlu0 %1023
  %1025 = vrot.lane.b32.xlu0 %v1021, 121
  %v1026 = vpop.permute.xlu0 %1025
  %1027 = vrot.lane.b32.xlu0 %v1022, 121
  %v1028 = vpop.permute.xlu0 %1027
  %vm1029 = vcmask 990208
  %v1030 = vsel %vm1029, %v1024, %v1026
  %v1031 = vsel %vm1029, %v1026, %v1028
  %v1033 = vsel %vm596, %v1012, 0
  %v1036 = vsel %vm600, %v1030, 0
  %v1039 = vsel %vm600, %v1031, 0
  %1041 = vmatpush.bf16.msra.mxu0 0
  %1042 = vmatpush.bf16.msra.mxu0 0
  %1043 = vmatpush.bf16.msra.mxu0 0
  %1044 = vmatpush.bf16.msra.mxu0 0
  %1045 = vmatpush.bf16.msra.mxu0 0
  %1046 = vmatpush.bf16.msra.mxu0 0
  %1047 = vmatpush.bf16.msra.mxu0 0
  %1048 = vmatpush.bf16.msra.mxu0 %v1036
  %1049 = vmatmul.bf16.gmra.mxu0 %v1033
  %v1050 = vpop.f32.mrf.mxu0
  %v1051 = vadd.f32 0.0, %v1050
  %v1052 = vpop.f32.mrf.mxu0
  %1053 = vdwg.mxu0
  %1054 = vmatpush.bf16.msra.mxu0 0
  %1055 = vmatpush.bf16.msra.mxu0 0
  %1056 = vmatpush.bf16.msra.mxu0 0
  %1057 = vmatpush.bf16.msra.mxu0 0
  %1058 = vmatpush.bf16.msra.mxu0 0
  %1059 = vmatpush.bf16.msra.mxu0 0
  %1060 = vmatpush.bf16.msra.mxu0 0
  %1061 = vmatpush.bf16.msra.mxu0 %v1039
  %1062 = vmatmul.bf16.gmra.mxu0 %v1033
  %v1063 = vpop.f32.mrf.mxu0
  %v1064 = vadd.f32 0.0, %v1063
  %v1065 = vpop.f32.mrf.mxu0
  %1066 = vdwg.mxu0
  %v1067 = vadd.f32 %v1009, %v1051
  %v1068 = vadd.f32 %v1010, %v1064
  %1069 = vst [vmem:[#allocation3] sm:$0xff] %v1067
  %1070 = vst [vmem:[#allocation3 + $0x8] sm:$0xff] %v1068
  %v1071 = vld [vmem:[#allocation3] sm:$0xff]
  %v1072 = vld [vmem:[#allocation3 + $0x8] sm:$0xff]
  %s1073 = scalar_lea.vmem %s3, 32
  %v1074 = vld [vmem:[%s1073] sm:$0xf]
  %v1075 = vld [vmem:[#allocation2] sm:$0xff]
  %v1076 = vld [vmem:[#allocation2 + $0x8] sm:$0xf]
  %v1079 = vunpack.c.l.b16 %v1075
  %v1080 = vunpack.c.h.b16 %v1075
  %v1081 = vunpack.c.l.b16 %v1076
  %v1082 = vpack.c.b16 %v1079, %v1079
  %v1083 = vpack.c.b16 %v1080, %v1080
  %v1084 = vpack.c.b16 %v1081, %v1081
  %1085 = vrot.lane.b32.xlu0 %v1082, 120
  %v1086 = vpop.permute.xlu0 %1085
  %1087 = vrot.lane.b32.xlu0 %v1083, 120
  %v1088 = vpop.permute.xlu0 %1087
  %1089 = vrot.lane.b32.xlu0 %v1084, 120
  %v1090 = vpop.permute.xlu0 %1089
  %vm1091 = vcmask 982016
  %v1092 = vsel %vm1091, %v1086, %v1088
  %v1093 = vsel %vm1091, %v1088, %v1090
  %v1095 = vsel %vm596, %v1074, 0
  %v1098 = vsel %vm600, %v1092, 0
  %v1101 = vsel %vm600, %v1093, 0
  %1103 = vmatpush.bf16.msra.mxu0 0
  %1104 = vmatpush.bf16.msra.mxu0 0
  %1105 = vmatpush.bf16.msra.mxu0 0
  %1106 = vmatpush.bf16.msra.mxu0 0
  %1107 = vmatpush.bf16.msra.mxu0 0
  %1108 = vmatpush.bf16.msra.mxu0 0
  %1109 = vmatpush.bf16.msra.mxu0 0
  %1110 = vmatpush.bf16.msra.mxu0 %v1098
  %1111 = vmatmul.bf16.gmra.mxu0 %v1095
  %v1112 = vpop.f32.mrf.mxu0
  %v1113 = vadd.f32 0.0, %v1112
  %v1114 = vpop.f32.mrf.mxu0
  %1115 = vdwg.mxu0
  %1116 = vmatpush.bf16.msra.mxu0 0
  %1117 = vmatpush.bf16.msra.mxu0 0
  %1118 = vmatpush.bf16.msra.mxu0 0
  %1119 = vmatpush.bf16.msra.mxu0 0
  %1120 = vmatpush.bf16.msra.mxu0 0
  %1121 = vmatpush.bf16.msra.mxu0 0
  %1122 = vmatpush.bf16.msra.mxu0 0
  %1123 = vmatpush.bf16.msra.mxu0 %v1101
  %1124 = vmatmul.bf16.gmra.mxu0 %v1095
  %v1125 = vpop.f32.mrf.mxu0
  %v1126 = vadd.f32 0.0, %v1125
  %v1127 = vpop.f32.mrf.mxu0
  %1128 = vdwg.mxu0
  %v1129 = vadd.f32 %v1071, %v1113
  %v1130 = vadd.f32 %v1072, %v1126
  %1131 = vst [vmem:[#allocation3] sm:$0xff] %v1129
  %1132 = vst [vmem:[#allocation3 + $0x8] sm:$0xff] %v1130
  %v1133 = vld [vmem:[#allocation3] sm:$0xff]
  %v1134 = vld [vmem:[#allocation3 + $0x8] sm:$0xff]
  %s1135 = scalar_lea.vmem %s3, 36
  %v1136 = vld [vmem:[%s1135] sm:$0xf]
  %v1137 = vld [vmem:[#allocation2] sm:$0xff]
  %v1138 = vld [vmem:[#allocation2 + $0x8] sm:$0xf]
  %v1141 = vunpack.c.l.b16 %v1137
  %v1142 = vunpack.c.h.b16 %v1137
  %v1143 = vunpack.c.l.b16 %v1138
  %v1144 = vpack.c.b16 %v1141, %v1141
  %v1145 = vpack.c.b16 %v1142, %v1142
  %v1146 = vpack.c.b16 %v1143, %v1143
  %1147 = vrot.lane.b32.xlu0 %v1144, 119
  %v1148 = vpop.permute.xlu0 %1147
  %1149 = vrot.lane.b32.xlu0 %v1145, 119
  %v1150 = vpop.permute.xlu0 %1149
  %1151 = vrot.lane.b32.xlu0 %v1146, 119
  %v1152 = vpop.permute.xlu0 %1151
  %vm1153 = vcmask 973824
  %v1154 = vsel %vm1153, %v1148, %v1150
  %v1155 = vsel %vm1153, %v1150, %v1152
  %v1157 = vsel %vm596, %v1136, 0
  %v1160 = vsel %vm600, %v1154, 0
  %v1163 = vsel %vm600, %v1155, 0
  %1165 = vmatpush.bf16.msra.mxu0 0
  %1166 = vmatpush.bf16.msra.mxu0 0
  %1167 = vmatpush.bf16.msra.mxu0 0
  %1168 = vmatpush.bf16.msra.mxu0 0
  %1169 = vmatpush.bf16.msra.mxu0 0
  %1170 = vmatpush.bf16.msra.mxu0 0
  %1171 = vmatpush.bf16.msra.mxu0 0
  %1172 = vmatpush.bf16.msra.mxu0 %v1160
  %1173 = vmatmul.bf16.gmra.mxu0 %v1157
  %v1174 = vpop.f32.mrf.mxu0
  %v1175 = vadd.f32 0.0, %v1174
  %v1176 = vpop.f32.mrf.mxu0
  %1177 = vdwg.mxu0
  %1178 = vmatpush.bf16.msra.mxu0 0
  %1179 = vmatpush.bf16.msra.mxu0 0
  %1180 = vmatpush.bf16.msra.mxu0 0
  %1181 = vmatpush.bf16.msra.mxu0 0
  %1182 = vmatpush.bf16.msra.mxu0 0
  %1183 = vmatpush.bf16.msra.mxu0 0
  %1184 = vmatpush.bf16.msra.mxu0 0
  %1185 = vmatpush.bf16.msra.mxu0 %v1163
  %1186 = vmatmul.bf16.gmra.mxu0 %v1157
  %v1187 = vpop.f32.mrf.mxu0
  %v1188 = vadd.f32 0.0, %v1187
  %v1189 = vpop.f32.mrf.mxu0
  %1190 = vdwg.mxu0
  %v1191 = vadd.f32 %v1133, %v1175
  %v1192 = vadd.f32 %v1134, %v1188
  %1193 = vst [vmem:[#allocation3] sm:$0xff] %v1191
  %1194 = vst [vmem:[#allocation3 + $0x8] sm:$0xff] %v1192
  %v1195 = vld [vmem:[#allocation3] sm:$0xff]
  %v1196 = vld [vmem:[#allocation3 + $0x8] sm:$0xff]
  %s1197 = scalar_lea.vmem %s3, 40
  %v1198 = vld [vmem:[%s1197] sm:$0xf]
  %v1199 = vld [vmem:[#allocation2] sm:$0xff]
  %v1200 = vld [vmem:[#allocation2 + $0x8] sm:$0xf]
  %v1203 = vunpack.c.l.b16 %v1199
  %v1204 = vunpack.c.h.b16 %v1199
  %v1205 = vunpack.c.l.b16 %v1200
  %v1206 = vpack.c.b16 %v1203, %v1203
  %v1207 = vpack.c.b16 %v1204, %v1204
  %v1208 = vpack.c.b16 %v1205, %v1205
  %1209 = vrot.lane.b32.xlu0 %v1206, 118
  %v1210 = vpop.permute.xlu0 %1209
  %1211 = vrot.lane.b32.xlu0 %v1207, 118
  %v1212 = vpop.permute.xlu0 %1211
  %1213 = vrot.lane.b32.xlu0 %v1208, 118
  %v1214 = vpop.permute.xlu0 %1213
  %vm1215 = vcmask 965632
  %v1216 = vsel %vm1215, %v1210, %v1212
  %v1217 = vsel %vm1215, %v1212, %v1214
  %v1219 = vsel %vm596, %v1198, 0
  %v1222 = vsel %vm600, %v1216, 0
  %v1225 = vsel %vm600, %v1217, 0
  %1227 = vmatpush.bf16.msra.mxu0 0
  %1228 = vmatpush.bf16.msra.mxu0 0
  %1229 = vmatpush.bf16.msra.mxu0 0
  %1230 = vmatpush.bf16.msra.mxu0 0
  %1231 = vmatpush.bf16.msra.mxu0 0
  %1232 = vmatpush.bf16.msra.mxu0 0
  %1233 = vmatpush.bf16.msra.mxu0 0
  %1234 = vmatpush.bf16.msra.mxu0 %v1222
  %1235 = vmatmul.bf16.gmra.mxu0 %v1219
  %v1236 = vpop.f32.mrf.mxu0
  %v1237 = vadd.f32 0.0, %v1236
  %v1238 = vpop.f32.mrf.mxu0
  %1239 = vdwg.mxu0
  %1240 = vmatpush.bf16.msra.mxu0 0
  %1241 = vmatpush.bf16.msra.mxu0 0
  %1242 = vmatpush.bf16.msra.mxu0 0
  %1243 = vmatpush.bf16.msra.mxu0 0
  %1244 = vmatpush.bf16.msra.mxu0 0
  %1245 = vmatpush.bf16.msra.mxu0 0
  %1246 = vmatpush.bf16.msra.mxu0 0
  %1247 = vmatpush.bf16.msra.mxu0 %v1225
  %1248 = vmatmul.bf16.gmra.mxu0 %v1219
  %v1249 = vpop.f32.mrf.mxu0
  %v1250 = vadd.f32 0.0, %v1249
  %v1251 = vpop.f32.mrf.mxu0
  %1252 = vdwg.mxu0
  %v1253 = vadd.f32 %v1195, %v1237
  %v1254 = vadd.f32 %v1196, %v1250
  %1255 = vst [vmem:[#allocation3] sm:$0xff] %v1253
  %1256 = vst [vmem:[#allocation3 + $0x8] sm:$0xff] %v1254
  %v1257 = vld [vmem:[#allocation3] sm:$0xff]
  %v1258 = vld [vmem:[#allocation3 + $0x8] sm:$0xff]
  %s1259 = scalar_lea.vmem %s3, 44
  %v1260 = vld [vmem:[%s1259] sm:$0xf]
  %v1261 = vld [vmem:[#allocation2] sm:$0xff]
  %v1262 = vld [vmem:[#allocation2 + $0x8] sm:$0xf]
  %v1265 = vunpack.c.l.b16 %v1261
  %v1266 = vunpack.c.h.b16 %v1261
  %v1267 = vunpack.c.l.b16 %v1262
  %v1268 = vpack.c.b16 %v1265, %v1265
  %v1269 = vpack.c.b16 %v1266, %v1266
  %v1270 = vpack.c.b16 %v1267, %v1267
  %1271 = vrot.lane.b32.xlu0 %v1268, 117
  %v1272 = vpop.permute.xlu0 %1271
  %1273 = vrot.lane.b32.xlu0 %v1269, 117
  %v1274 = vpop.permute.xlu0 %1273
  %1275 = vrot.lane.b32.xlu0 %v1270, 117
  %v1276 = vpop.permute.xlu0 %1275
  %vm1277 = vcmask 957440
  %v1278 = vsel %vm1277, %v1272, %v1274
  %v1279 = vsel %vm1277, %v1274, %v1276
  %v1281 = vsel %vm596, %v1260, 0
  %v1284 = vsel %vm600, %v1278, 0
  %v1287 = vsel %vm600, %v1279, 0
  %1289 = vmatpush.bf16.msra.mxu0 0
  %1290 = vmatpush.bf16.msra.mxu0 0
  %1291 = vmatpush.bf16.msra.mxu0 0
  %1292 = vmatpush.bf16.msra.mxu0 0
  %1293 = vmatpush.bf16.msra.mxu0 0
  %1294 = vmatpush.bf16.msra.mxu0 0
  %1295 = vmatpush.bf16.msra.mxu0 0
  %1296 = vmatpush.bf16.msra.mxu0 %v1284
  %1297 = vmatmul.bf16.gmra.mxu0 %v1281
  %v1298 = vpop.f32.mrf.mxu0
  %v1299 = vadd.f32 0.0, %v1298
  %v1300 = vpop.f32.mrf.mxu0
  %1301 = vdwg.mxu0
  %1302 = vmatpush.bf16.msra.mxu0 0
  %1303 = vmatpush.bf16.msra.mxu0 0
  %1304 = vmatpush.bf16.msra.mxu0 0
  %1305 = vmatpush.bf16.msra.mxu0 0
  %1306 = vmatpush.bf16.msra.mxu0 0
  %1307 = vmatpush.bf16.msra.mxu0 0
  %1308 = vmatpush.bf16.msra.mxu0 0
  %1309 = vmatpush.bf16.msra.mxu0 %v1287
  %1310 = vmatmul.bf16.gmra.mxu0 %v1281
  %v1311 = vpop.f32.mrf.mxu0
  %v1312 = vadd.f32 0.0, %v1311
  %v1313 = vpop.f32.mrf.mxu0
  %1314 = vdwg.mxu0
  %v1315 = vadd.f32 %v1257, %v1299
  %v1316 = vadd.f32 %v1258, %v1312
  %1317 = vst [vmem:[#allocation3] sm:$0xff] %v1315
  %1318 = vst [vmem:[#allocation3 + $0x8] sm:$0xff] %v1316
  %v1319 = vld [vmem:[#allocation3] sm:$0xff]
  %v1320 = vld [vmem:[#allocation3 + $0x8] sm:$0xff]
  %s1321 = scalar_lea.vmem %s3, 48
  %v1322 = vld [vmem:[%s1321] sm:$0xf]
  %v1323 = vld [vmem:[#allocation2] sm:$0xff]
  %v1324 = vld [vmem:[#allocation2 + $0x8] sm:$0xf]
  %v1327 = vunpack.c.l.b16 %v1323
  %v1328 = vunpack.c.h.b16 %v1323
  %v1329 = vunpack.c.l.b16 %v1324
  %v1330 = vpack.c.b16 %v1327, %v1327
  %v1331 = vpack.c.b16 %v1328, %v1328
  %v1332 = vpack.c.b16 %v1329, %v1329
  %1333 = vrot.lane.b32.xlu0 %v1330, 116
  %v1334 = vpop.permute.xlu0 %1333
  %1335 = vrot.lane.b32.xlu0 %v1331, 116
  %v1336 = vpop.permute.xlu0 %1335
  %1337 = vrot.lane.b32.xlu0 %v1332, 116
  %v1338 = vpop.permute.xlu0 %1337
  %vm1339 = vcmask 949248
  %v1340 = vsel %vm1339, %v1334, %v1336
  %v1341 = vsel %vm1339, %v1336, %v1338
  %v1343 = vsel %vm596, %v1322, 0
  %v1346 = vsel %vm600, %v1340, 0
  %v1349 = vsel %vm600, %v1341, 0
  %1351 = vmatpush.bf16.msra.mxu0 0
  %1352 = vmatpush.bf16.msra.mxu0 0
  %1353 = vmatpush.bf16.msra.mxu0 0
  %1354 = vmatpush.bf16.msra.mxu0 0
  %1355 = vmatpush.bf16.msra.mxu0 0
  %1356 = vmatpush.bf16.msra.mxu0 0
  %1357 = vmatpush.bf16.msra.mxu0 0
  %1358 = vmatpush.bf16.msra.mxu0 %v1346
  %1359 = vmatmul.bf16.gmra.mxu0 %v1343
  %v1360 = vpop.f32.mrf.mxu0
  %v1361 = vadd.f32 0.0, %v1360
  %v1362 = vpop.f32.mrf.mxu0
  %1363 = vdwg.mxu0
  %1364 = vmatpush.bf16.msra.mxu0 0
  %1365 = vmatpush.bf16.msra.mxu0 0
  %1366 = vmatpush.bf16.msra.mxu0 0
  %1367 = vmatpush.bf16.msra.mxu0 0
  %1368 = vmatpush.bf16.msra.mxu0 0
  %1369 = vmatpush.bf16.msra.mxu0 0
  %1370 = vmatpush.bf16.msra.mxu0 0
  %1371 = vmatpush.bf16.msra.mxu0 %v1349
  %1372 = vmatmul.bf16.gmra.mxu0 %v1343
  %v1373 = vpop.f32.mrf.mxu0
  %v1374 = vadd.f32 0.0, %v1373
  %v1375 = vpop.f32.mrf.mxu0
  %1376 = vdwg.mxu0
  %v1377 = vadd.f32 %v1319, %v1361
  %v1378 = vadd.f32 %v1320, %v1374
  %1379 = vst [vmem:[#allocation3] sm:$0xff] %v1377
  %1380 = vst [vmem:[#allocation3 + $0x8] sm:$0xff] %v1378
  %v1381 = vld [vmem:[#allocation3] sm:$0xff]
  %v1382 = vld [vmem:[#allocation3 + $0x8] sm:$0xff]
  %s1383 = scalar_lea.vmem %s3, 52
  %v1384 = vld [vmem:[%s1383] sm:$0xf]
  %v1385 = vld [vmem:[#allocation2] sm:$0xff]
  %v1386 = vld [vmem:[#allocation2 + $0x8] sm:$0xf]
  %v1389 = vunpack.c.l.b16 %v1385
  %v1390 = vunpack.c.h.b16 %v1385
  %v1391 = vunpack.c.l.b16 %v1386
  %v1392 = vpack.c.b16 %v1389, %v1389
  %v1393 = vpack.c.b16 %v1390, %v1390
  %v1394 = vpack.c.b16 %v1391, %v1391
  %1395 = vrot.lane.b32.xlu0 %v1392, 115
  %v1396 = vpop.permute.xlu0 %1395
  %1397 = vrot.lane.b32.xlu0 %v1393, 115
  %v1398 = vpop.permute.xlu0 %1397
  %1399 = vrot.lane.b32.xlu0 %v1394, 115
  %v1400 = vpop.permute.xlu0 %1399
  %vm1401 = vcmask 941056
  %v1402 = vsel %vm1401, %v1396, %v1398
  %v1403 = vsel %vm1401, %v1398, %v1400
  %v1405 = vsel %vm596, %v1384, 0
  %v1408 = vsel %vm600, %v1402, 0
  %v1411 = vsel %vm600, %v1403, 0
  %1413 = vmatpush.bf16.msra.mxu0 0
  %1414 = vmatpush.bf16.msra.mxu0 0
  %1415 = vmatpush.bf16.msra.mxu0 0
  %1416 = vmatpush.bf16.msra.mxu0 0
  %1417 = vmatpush.bf16.msra.mxu0 0
  %1418 = vmatpush.bf16.msra.mxu0 0
  %1419 = vmatpush.bf16.msra.mxu0 0
  %1420 = vmatpush.bf16.msra.mxu0 %v1408
  %1421 = vmatmul.bf16.gmra.mxu0 %v1405
  %v1422 = vpop.f32.mrf.mxu0
  %v1423 = vadd.f32 0.0, %v1422
  %v1424 = vpop.f32.mrf.mxu0
  %1425 = vdwg.mxu0
  %1426 = vmatpush.bf16.msra.mxu0 0
  %1427 = vmatpush.bf16.msra.mxu0 0
  %1428 = vmatpush.bf16.msra.mxu0 0
  %1429 = vmatpush.bf16.msra.mxu0 0
  %1430 = vmatpush.bf16.msra.mxu0 0
  %1431 = vmatpush.bf16.msra.mxu0 0
  %1432 = vmatpush.bf16.msra.mxu0 0
  %1433 = vmatpush.bf16.msra.mxu0 %v1411
  %1434 = vmatmul.bf16.gmra.mxu0 %v1405
  %v1435 = vpop.f32.mrf.mxu0
  %v1436 = vadd.f32 0.0, %v1435
  %v1437 = vpop.f32.mrf.mxu0
  %1438 = vdwg.mxu0
  %v1439 = vadd.f32 %v1381, %v1423
  %v1440 = vadd.f32 %v1382, %v1436
  %1441 = vst [vmem:[#allocation3] sm:$0xff] %v1439
  %1442 = vst [vmem:[#allocation3 + $0x8] sm:$0xff] %v1440
  %v1443 = vld [vmem:[#allocation3] sm:$0xff]
  %v1444 = vld [vmem:[#allocation3 + $0x8] sm:$0xff]
  %s1445 = scalar_lea.vmem %s3, 56
  %v1446 = vld [vmem:[%s1445] sm:$0xf]
  %v1447 = vld [vmem:[#allocation2] sm:$0xff]
  %v1448 = vld [vmem:[#allocation2 + $0x8] sm:$0xf]
  %v1451 = vunpack.c.l.b16 %v1447
  %v1452 = vunpack.c.h.b16 %v1447
  %v1453 = vunpack.c.l.b16 %v1448
  %v1454 = vpack.c.b16 %v1451, %v1451
  %v1455 = vpack.c.b16 %v1452, %v1452
  %v1456 = vpack.c.b16 %v1453, %v1453
  %1457 = vrot.lane.b32.xlu0 %v1454, 114
  %v1458 = vpop.permute.xlu0 %1457
  %1459 = vrot.lane.b32.xlu0 %v1455, 114
  %v1460 = vpop.permute.xlu0 %1459
  %1461 = vrot.lane.b32.xlu0 %v1456, 114
  %v1462 = vpop.permute.xlu0 %1461
  %vm1463 = vcmask 932864
  %v1464 = vsel %vm1463, %v1458, %v1460
  %v1465 = vsel %vm1463, %v1460, %v1462
  %v1467 = vsel %vm596, %v1446, 0
  %v1470 = vsel %vm600, %v1464, 0
  %v1473 = vsel %vm600, %v1465, 0
  %1475 = vmatpush.bf16.msra.mxu0 0
  %1476 = vmatpush.bf16.msra.mxu0 0
  %1477 = vmatpush.bf16.msra.mxu0 0
  %1478 = vmatpush.bf16.msra.mxu0 0
  %1479 = vmatpush.bf16.msra.mxu0 0
  %1480 = vmatpush.bf16.msra.mxu0 0
  %1481 = vmatpush.bf16.msra.mxu0 0
  %1482 = vmatpush.bf16.msra.mxu0 %v1470
  %1483 = vmatmul.bf16.gmra.mxu0 %v1467
  %v1484 = vpop.f32.mrf.mxu0
  %v1485 = vadd.f32 0.0, %v1484
  %v1486 = vpop.f32.mrf.mxu0
  %1487 = vdwg.mxu0
  %1488 = vmatpush.bf16.msra.mxu0 0
  %1489 = vmatpush.bf16.msra.mxu0 0
  %1490 = vmatpush.bf16.msra.mxu0 0
  %1491 = vmatpush.bf16.msra.mxu0 0
  %1492 = vmatpush.bf16.msra.mxu0 0
  %1493 = vmatpush.bf16.msra.mxu0 0
  %1494 = vmatpush.bf16.msra.mxu0 0
  %1495 = vmatpush.bf16.msra.mxu0 %v1473
  %1496 = vmatmul.bf16.gmra.mxu0 %v1467
  %v1497 = vpop.f32.mrf.mxu0
  %v1498 = vadd.f32 0.0, %v1497
  %v1499 = vpop.f32.mrf.mxu0
  %1500 = vdwg.mxu0
  %v1501 = vadd.f32 %v1443, %v1485
  %v1502 = vadd.f32 %v1444, %v1498
  %1503 = vst [vmem:[#allocation3] sm:$0xff] %v1501
  %1504 = vst [vmem:[#allocation3 + $0x8] sm:$0xff] %v1502
  %v1505 = vld [vmem:[#allocation3] sm:$0xff]
  %v1506 = vld [vmem:[#allocation3 + $0x8] sm:$0xff]
  %s1507 = scalar_lea.vmem %s3, 60
  %v1508 = vld [vmem:[%s1507] sm:$0xf]
  %v1509 = vld [vmem:[#allocation2] sm:$0xff]
  %v1510 = vld [vmem:[#allocation2 + $0x8] sm:$0xf]
  %v1513 = vunpack.c.l.b16 %v1509
  %v1514 = vunpack.c.h.b16 %v1509
  %v1515 = vunpack.c.l.b16 %v1510
  %v1516 = vpack.c.b16 %v1513, %v1513
  %v1517 = vpack.c.b16 %v1514, %v1514
  %v1518 = vpack.c.b16 %v1515, %v1515
  %1519 = vrot.lane.b32.xlu0 %v1516, 113
  %v1520 = vpop.permute.xlu0 %1519
  %1521 = vrot.lane.b32.xlu0 %v1517, 113
  %v1522 = vpop.permute.xlu0 %1521
  %1523 = vrot.lane.b32.xlu0 %v1518, 113
  %v1524 = vpop.permute.xlu0 %1523
  %vm1525 = vcmask 924672
  %v1526 = vsel %vm1525, %v1520, %v1522
  %v1527 = vsel %vm1525, %v1522, %v1524
  %v1529 = vsel %vm596, %v1508, 0
  %v1532 = vsel %vm600, %v1526, 0
  %v1535 = vsel %vm600, %v1527, 0
  %1537 = vmatpush.bf16.msra.mxu0 0
  %1538 = vmatpush.bf16.msra.mxu0 0
  %1539 = vmatpush.bf16.msra.mxu0 0
  %1540 = vmatpush.bf16.msra.mxu0 0
  %1541 = vmatpush.bf16.msra.mxu0 0
  %1542 = vmatpush.bf16.msra.mxu0 0
  %1543 = vmatpush.bf16.msra.mxu0 0
  %1544 = vmatpush.bf16.msra.mxu0 %v1532
  %1545 = vmatmul.bf16.gmra.mxu0 %v1529
  %v1546 = vpop.f32.mrf.mxu0
  %v1547 = vadd.f32 0.0, %v1546
  %v1548 = vpop.f32.mrf.mxu0
  %1549 = vdwg.mxu0
  %1550 = vmatpush.bf16.msra.mxu0 0
  %1551 = vmatpush.bf16.msra.mxu0 0
  %1552 = vmatpush.bf16.msra.mxu0 0
  %1553 = vmatpush.bf16.msra.mxu0 0
  %1554 = vmatpush.bf16.msra.mxu0 0
  %1555 = vmatpush.bf16.msra.mxu0 0
  %1556 = vmatpush.bf16.msra.mxu0 0
  %1557 = vmatpush.bf16.msra.mxu0 %v1535
  %1558 = vmatmul.bf16.gmra.mxu0 %v1529
  %v1559 = vpop.f32.mrf.mxu0
  %v1560 = vadd.f32 0.0, %v1559
  %v1561 = vpop.f32.mrf.mxu0
  %1562 = vdwg.mxu0
  %v1563 = vadd.f32 %v1505, %v1547
  %v1564 = vadd.f32 %v1506, %v1560
  %1565 = vst [vmem:[#allocation3] sm:$0xff] %v1563
  %1566 = vst [vmem:[#allocation3 + $0x8] sm:$0xff] %v1564
  %v1567 = vld [vmem:[#allocation3] sm:$0xff]
  %v1568 = vld [vmem:[#allocation3 + $0x8] sm:$0xff]
  %s1569 = scalar_lea.vmem %s3, 64
  %v1570 = vld [vmem:[%s1569] sm:$0xf]
  %v1571 = vld [vmem:[#allocation2] sm:$0xff]
  %v1572 = vld [vmem:[#allocation2 + $0x8] sm:$0xf]
  %v1575 = vunpack.c.l.b16 %v1571
  %v1576 = vunpack.c.h.b16 %v1571
  %v1577 = vunpack.c.l.b16 %v1572
  %v1578 = vpack.c.b16 %v1575, %v1575
  %v1579 = vpack.c.b16 %v1576, %v1576
  %v1580 = vpack.c.b16 %v1577, %v1577
  %1581 = vrot.lane.b32.xlu0 %v1578, 112
  %v1582 = vpop.permute.xlu0 %1581
  %1583 = vrot.lane.b32.xlu0 %v1579, 112
  %v1584 = vpop.permute.xlu0 %1583
  %1585 = vrot.lane.b32.xlu0 %v1580, 112
  %v1586 = vpop.permute.xlu0 %1585
  %vm1587 = vcmask 916480
  %v1588 = vsel %vm1587, %v1582, %v1584
  %v1589 = vsel %vm1587, %v1584, %v1586
  %v1591 = vsel %vm596, %v1570, 0
  %v1594 = vsel %vm600, %v1588, 0
  %v1597 = vsel %vm600, %v1589, 0
  %1599 = vmatpush.bf16.msra.mxu0 0
  %1600 = vmatpush.bf16.msra.mxu0 0
  %1601 = vmatpush.bf16.msra.mxu0 0
  %1602 = vmatpush.bf16.msra.mxu0 0
  %1603 = vmatpush.bf16.msra.mxu0 0
  %1604 = vmatpush.bf16.msra.mxu0 0
  %1605 = vmatpush.bf16.msra.mxu0 0
  %1606 = vmatpush.bf16.msra.mxu0 %v1594
  %1607 = vmatmul.bf16.gmra.mxu0 %v1591
  %v1608 = vpop.f32.mrf.mxu0
  %v1609 = vadd.f32 0.0, %v1608
  %v1610 = vpop.f32.mrf.mxu0
  %1611 = vdwg.mxu0
  %1612 = vmatpush.bf16.msra.mxu0 0
  %1613 = vmatpush.bf16.msra.mxu0 0
  %1614 = vmatpush.bf16.msra.mxu0 0
  %1615 = vmatpush.bf16.msra.mxu0 0
  %1616 = vmatpush.bf16.msra.mxu0 0
  %1617 = vmatpush.bf16.msra.mxu0 0
  %1618 = vmatpush.bf16.msra.mxu0 0
  %1619 = vmatpush.bf16.msra.mxu0 %v1597
  %1620 = vmatmul.bf16.gmra.mxu0 %v1591
  %v1621 = vpop.f32.mrf.mxu0
  %v1622 = vadd.f32 0.0, %v1621
  %v1623 = vpop.f32.mrf.mxu0
  %1624 = vdwg.mxu0
  %v1625 = vadd.f32 %v1567, %v1609
  %v1626 = vadd.f32 %v1568, %v1622
  %1627 = vst [vmem:[#allocation3] sm:$0xff] %v1625
  %1628 = vst [vmem:[#allocation3 + $0x8] sm:$0xff] %v1626
  %v1629 = vld [vmem:[#allocation3] sm:$0xff]
  %v1630 = vld [vmem:[#allocation3 + $0x8] sm:$0xff]
  %s1631 = scalar_lea.vmem %s3, 68
  %v1632 = vld [vmem:[%s1631] sm:$0xf]
  %v1633 = vld [vmem:[#allocation2] sm:$0xff]
  %v1634 = vld [vmem:[#allocation2 + $0x8] sm:$0xf]
  %v1637 = vunpack.c.l.b16 %v1633
  %v1638 = vunpack.c.h.b16 %v1633
  %v1639 = vunpack.c.l.b16 %v1634
  %v1640 = vpack.c.b16 %v1637, %v1637
  %v1641 = vpack.c.b16 %v1638, %v1638
  %v1642 = vpack.c.b16 %v1639, %v1639
  %1643 = vrot.lane.b32.xlu0 %v1640, 111
  %v1644 = vpop.permute.xlu0 %1643
  %1645 = vrot.lane.b32.xlu0 %v1641, 111
  %v1646 = vpop.permute.xlu0 %1645
  %1647 = vrot.lane.b32.xlu0 %v1642, 111
  %v1648 = vpop.permute.xlu0 %1647
  %vm1649 = vcmask 908288
  %v1650 = vsel %vm1649, %v1644, %v1646
  %v1651 = vsel %vm1649, %v1646, %v1648
  %v1653 = vsel %vm596, %v1632, 0
  %v1656 = vsel %vm600, %v1650, 0
  %v1659 = vsel %vm600, %v1651, 0
  %1661 = vmatpush.bf16.msra.mxu0 0
  %1662 = vmatpush.bf16.msra.mxu0 0
  %1663 = vmatpush.bf16.msra.mxu0 0
  %1664 = vmatpush.bf16.msra.mxu0 0
  %1665 = vmatpush.bf16.msra.mxu0 0
  %1666 = vmatpush.bf16.msra.mxu0 0
  %1667 = vmatpush.bf16.msra.mxu0 0
  %1668 = vmatpush.bf16.msra.mxu0 %v1656
  %1669 = vmatmul.bf16.gmra.mxu0 %v1653
  %v1670 = vpop.f32.mrf.mxu0
  %v1671 = vadd.f32 0.0, %v1670
  %v1672 = vpop.f32.mrf.mxu0
  %1673 = vdwg.mxu0
  %1674 = vmatpush.bf16.msra.mxu0 0
  %1675 = vmatpush.bf16.msra.mxu0 0
  %1676 = vmatpush.bf16.msra.mxu0 0
  %1677 = vmatpush.bf16.msra.mxu0 0
  %1678 = vmatpush.bf16.msra.mxu0 0
  %1679 = vmatpush.bf16.msra.mxu0 0
  %1680 = vmatpush.bf16.msra.mxu0 0
  %1681 = vmatpush.bf16.msra.mxu0 %v1659
  %1682 = vmatmul.bf16.gmra.mxu0 %v1653
  %v1683 = vpop.f32.mrf.mxu0
  %v1684 = vadd.f32 0.0, %v1683
  %v1685 = vpop.f32.mrf.mxu0
  %1686 = vdwg.mxu0
  %v1687 = vadd.f32 %v1629, %v1671
  %v1688 = vadd.f32 %v1630, %v1684
  %1689 = vst [vmem:[#allocation3] sm:$0xff] %v1687
  %1690 = vst [vmem:[#allocation3 + $0x8] sm:$0xff] %v1688
  %v1691 = vld [vmem:[#allocation3] sm:$0xff]
  %v1692 = vld [vmem:[#allocation3 + $0x8] sm:$0xff]
  %s1693 = scalar_lea.vmem %s3, 72
  %v1694 = vld [vmem:[%s1693] sm:$0xf]
  %v1695 = vld [vmem:[#allocation2] sm:$0xff]
  %v1696 = vld [vmem:[#allocation2 + $0x8] sm:$0xf]
  %v1699 = vunpack.c.l.b16 %v1695
  %v1700 = vunpack.c.h.b16 %v1695
  %v1701 = vunpack.c.l.b16 %v1696
  %v1702 = vpack.c.b16 %v1699, %v1699
  %v1703 = vpack.c.b16 %v1700, %v1700
  %v1704 = vpack.c.b16 %v1701, %v1701
  %1705 = vrot.lane.b32.xlu0 %v1702, 110
  %v1706 = vpop.permute.xlu0 %1705
  %1707 = vrot.lane.b32.xlu0 %v1703, 110
  %v1708 = vpop.permute.xlu0 %1707
  %1709 = vrot.lane.b32.xlu0 %v1704, 110
  %v1710 = vpop.permute.xlu0 %1709
  %vm1711 = vcmask 900096
  %v1712 = vsel %vm1711, %v1706, %v1708
  %v1713 = vsel %vm1711, %v1708, %v1710
  %v1715 = vsel %vm596, %v1694, 0
  %v1718 = vsel %vm600, %v1712, 0
  %v1721 = vsel %vm600, %v1713, 0
  %1723 = vmatpush.bf16.msra.mxu0 0
  %1724 = vmatpush.bf16.msra.mxu0 0
  %1725 = vmatpush.bf16.msra.mxu0 0
  %1726 = vmatpush.bf16.msra.mxu0 0
  %1727 = vmatpush.bf16.msra.mxu0 0
  %1728 = vmatpush.bf16.msra.mxu0 0
  %1729 = vmatpush.bf16.msra.mxu0 0
  %1730 = vmatpush.bf16.msra.mxu0 %v1718
  %1731 = vmatmul.bf16.gmra.mxu0 %v1715
  %v1732 = vpop.f32.mrf.mxu0
  %v1733 = vadd.f32 0.0, %v1732
  %v1734 = vpop.f32.mrf.mxu0
  %1735 = vdwg.mxu0
  %1736 = vmatpush.bf16.msra.mxu0 0
  %1737 = vmatpush.bf16.msra.mxu0 0
  %1738 = vmatpush.bf16.msra.mxu0 0
  %1739 = vmatpush.bf16.msra.mxu0 0
  %1740 = vmatpush.bf16.msra.mxu0 0
  %1741 = vmatpush.bf16.msra.mxu0 0
  %1742 = vmatpush.bf16.msra.mxu0 0
  %1743 = vmatpush.bf16.msra.mxu0 %v1721
  %1744 = vmatmul.bf16.gmra.mxu0 %v1715
  %v1745 = vpop.f32.mrf.mxu0
  %v1746 = vadd.f32 0.0, %v1745
  %v1747 = vpop.f32.mrf.mxu0
  %1748 = vdwg.mxu0
  %v1749 = vadd.f32 %v1691, %v1733
  %v1750 = vadd.f32 %v1692, %v1746
  %1751 = vst [vmem:[#allocation3] sm:$0xff] %v1749
  %1752 = vst [vmem:[#allocation3 + $0x8] sm:$0xff] %v1750
  %v1753 = vld [vmem:[#allocation3] sm:$0xff]
  %v1754 = vld [vmem:[#allocation3 + $0x8] sm:$0xff]
  %s1755 = scalar_lea.vmem %s3, 76
  %v1756 = vld [vmem:[%s1755] sm:$0xf]
  %v1757 = vld [vmem:[#allocation2] sm:$0xff]
  %v1758 = vld [vmem:[#allocation2 + $0x8] sm:$0xf]
  %v1761 = vunpack.c.l.b16 %v1757
  %v1762 = vunpack.c.h.b16 %v1757
  %v1763 = vunpack.c.l.b16 %v1758
  %v1764 = vpack.c.b16 %v1761, %v1761
  %v1765 = vpack.c.b16 %v1762, %v1762
  %v1766 = vpack.c.b16 %v1763, %v1763
  %1767 = vrot.lane.b32.xlu0 %v1764, 109
  %v1768 = vpop.permute.xlu0 %1767
  %1769 = vrot.lane.b32.xlu0 %v1765, 109
  %v1770 = vpop.permute.xlu0 %1769
  %1771 = vrot.lane.b32.xlu0 %v1766, 109
  %v1772 = vpop.permute.xlu0 %1771
  %vm1773 = vcmask 891904
  %v1774 = vsel %vm1773, %v1768, %v1770
  %v1775 = vsel %vm1773, %v1770, %v1772
  %v1777 = vsel %vm596, %v1756, 0
  %v1780 = vsel %vm600, %v1774, 0
  %v1783 = vsel %vm600, %v1775, 0
  %1785 = vmatpush.bf16.msra.mxu0 0
  %1786 = vmatpush.bf16.msra.mxu0 0
  %1787 = vmatpush.bf16.msra.mxu0 0
  %1788 = vmatpush.bf16.msra.mxu0 0
  %1789 = vmatpush.bf16.msra.mxu0 0
  %1790 = vmatpush.bf16.msra.mxu0 0
  %1791 = vmatpush.bf16.msra.mxu0 0
  %1792 = vmatpush.bf16.msra.mxu0 %v1780
  %1793 = vmatmul.bf16.gmra.mxu0 %v1777
  %v1794 = vpop.f32.mrf.mxu0
  %v1795 = vadd.f32 0.0, %v1794
  %v1796 = vpop.f32.mrf.mxu0
  %1797 = vdwg.mxu0
  %1798 = vmatpush.bf16.msra.mxu0 0
  %1799 = vmatpush.bf16.msra.mxu0 0
  %1800 = vmatpush.bf16.msra.mxu0 0
  %1801 = vmatpush.bf16.msra.mxu0 0
  %1802 = vmatpush.bf16.msra.mxu0 0
  %1803 = vmatpush.bf16.msra.mxu0 0
  %1804 = vmatpush.bf16.msra.mxu0 0
  %1805 = vmatpush.bf16.msra.mxu0 %v1783
  %1806 = vmatmul.bf16.gmra.mxu0 %v1777
  %v1807 = vpop.f32.mrf.mxu0
  %v1808 = vadd.f32 0.0, %v1807
  %v1809 = vpop.f32.mrf.mxu0
  %1810 = vdwg.mxu0
  %v1811 = vadd.f32 %v1753, %v1795
  %v1812 = vadd.f32 %v1754, %v1808
  %1813 = vst [vmem:[#allocation3] sm:$0xff] %v1811
  %1814 = vst [vmem:[#allocation3 + $0x8] sm:$0xff] %v1812
  %v1815 = vld [vmem:[#allocation3] sm:$0xff]
  %v1816 = vld [vmem:[#allocation3 + $0x8] sm:$0xff]
  %s1817 = scalar_lea.vmem %s3, 80
  %v1818 = vld [vmem:[%s1817] sm:$0xf]
  %v1819 = vld [vmem:[#allocation2] sm:$0xff]
  %v1820 = vld [vmem:[#allocation2 + $0x8] sm:$0xf]
  %v1823 = vunpack.c.l.b16 %v1819
  %v1824 = vunpack.c.h.b16 %v1819
  %v1825 = vunpack.c.l.b16 %v1820
  %v1826 = vpack.c.b16 %v1823, %v1823
  %v1827 = vpack.c.b16 %v1824, %v1824
  %v1828 = vpack.c.b16 %v1825, %v1825
  %1829 = vrot.lane.b32.xlu0 %v1826, 108
  %v1830 = vpop.permute.xlu0 %1829
  %1831 = vrot.lane.b32.xlu0 %v1827, 108
  %v1832 = vpop.permute.xlu0 %1831
  %1833 = vrot.lane.b32.xlu0 %v1828, 108
  %v1834 = vpop.permute.xlu0 %1833
  %vm1835 = vcmask 883712
  %v1836 = vsel %vm1835, %v1830, %v1832
  %v1837 = vsel %vm1835, %v1832, %v1834
  %v1839 = vsel %vm596, %v1818, 0
  %v1842 = vsel %vm600, %v1836, 0
  %v1845 = vsel %vm600, %v1837, 0
  %1847 = vmatpush.bf16.msra.mxu0 0
  %1848 = vmatpush.bf16.msra.mxu0 0
  %1849 = vmatpush.bf16.msra.mxu0 0
  %1850 = vmatpush.bf16.msra.mxu0 0
  %1851 = vmatpush.bf16.msra.mxu0 0
  %1852 = vmatpush.bf16.msra.mxu0 0
  %1853 = vmatpush.bf16.msra.mxu0 0
  %1854 = vmatpush.bf16.msra.mxu0 %v1842
  %1855 = vmatmul.bf16.gmra.mxu0 %v1839
  %v1856 = vpop.f32.mrf.mxu0
  %v1857 = vadd.f32 0.0, %v1856
  %v1858 = vpop.f32.mrf.mxu0
  %1859 = vdwg.mxu0
  %1860 = vmatpush.bf16.msra.mxu0 0
  %1861 = vmatpush.bf16.msra.mxu0 0
  %1862 = vmatpush.bf16.msra.mxu0 0
  %1863 = vmatpush.bf16.msra.mxu0 0
  %1864 = vmatpush.bf16.msra.mxu0 0
  %1865 = vmatpush.bf16.msra.mxu0 0
  %1866 = vmatpush.bf16.msra.mxu0 0
  %1867 = vmatpush.bf16.msra.mxu0 %v1845
  %1868 = vmatmul.bf16.gmra.mxu0 %v1839
  %v1869 = vpop.f32.mrf.mxu0
  %v1870 = vadd.f32 0.0, %v1869
  %v1871 = vpop.f32.mrf.mxu0
  %1872 = vdwg.mxu0
  %v1873 = vadd.f32 %v1815, %v1857
  %v1874 = vadd.f32 %v1816, %v1870
  %1875 = vst [vmem:[#allocation3] sm:$0xff] %v1873
  %1876 = vst [vmem:[#allocation3 + $0x8] sm:$0xff] %v1874
  %v1877 = vld [vmem:[#allocation3] sm:$0xff]
  %v1878 = vld [vmem:[#allocation3 + $0x8] sm:$0xff]
  %s1879 = scalar_lea.vmem %s3, 84
  %v1880 = vld [vmem:[%s1879] sm:$0xf]
  %v1881 = vld [vmem:[#allocation2] sm:$0xff]
  %v1882 = vld [vmem:[#allocation2 + $0x8] sm:$0xf]
  %v1885 = vunpack.c.l.b16 %v1881
  %v1886 = vunpack.c.h.b16 %v1881
  %v1887 = vunpack.c.l.b16 %v1882
  %v1888 = vpack.c.b16 %v1885, %v1885
  %v1889 = vpack.c.b16 %v1886, %v1886
  %v1890 = vpack.c.b16 %v1887, %v1887
  %1891 = vrot.lane.b32.xlu0 %v1888, 107
  %v1892 = vpop.permute.xlu0 %1891
  %1893 = vrot.lane.b32.xlu0 %v1889, 107
  %v1894 = vpop.permute.xlu0 %1893
  %1895 = vrot.lane.b32.xlu0 %v1890, 107
  %v1896 = vpop.permute.xlu0 %1895
  %vm1897 = vcmask 875520
  %v1898 = vsel %vm1897, %v1892, %v1894
  %v1899 = vsel %vm1897, %v1894, %v1896
  %v1901 = vsel %vm596, %v1880, 0
  %v1904 = vsel %vm600, %v1898, 0
  %v1907 = vsel %vm600, %v1899, 0
  %1909 = vmatpush.bf16.msra.mxu0 0
  %1910 = vmatpush.bf16.msra.mxu0 0
  %1911 = vmatpush.bf16.msra.mxu0 0
  %1912 = vmatpush.bf16.msra.mxu0 0
  %1913 = vmatpush.bf16.msra.mxu0 0
  %1914 = vmatpush.bf16.msra.mxu0 0
  %1915 = vmatpush.bf16.msra.mxu0 0
  %1916 = vmatpush.bf16.msra.mxu0 %v1904
  %1917 = vmatmul.bf16.gmra.mxu0 %v1901
  %v1918 = vpop.f32.mrf.mxu0
  %v1919 = vadd.f32 0.0, %v1918
  %v1920 = vpop.f32.mrf.mxu0
  %1921 = vdwg.mxu0
  %1922 = vmatpush.bf16.msra.mxu0 0
  %1923 = vmatpush.bf16.msra.mxu0 0
  %1924 = vmatpush.bf16.msra.mxu0 0
  %1925 = vmatpush.bf16.msra.mxu0 0
  %1926 = vmatpush.bf16.msra.mxu0 0
  %1927 = vmatpush.bf16.msra.mxu0 0
  %1928 = vmatpush.bf16.msra.mxu0 0
  %1929 = vmatpush.bf16.msra.mxu0 %v1907
  %1930 = vmatmul.bf16.gmra.mxu0 %v1901
  %v1931 = vpop.f32.mrf.mxu0
  %v1932 = vadd.f32 0.0, %v1931
  %v1933 = vpop.f32.mrf.mxu0
  %1934 = vdwg.mxu0
  %v1935 = vadd.f32 %v1877, %v1919
  %v1936 = vadd.f32 %v1878, %v1932
  %1937 = vst [vmem:[#allocation3] sm:$0xff] %v1935
  %1938 = vst [vmem:[#allocation3 + $0x8] sm:$0xff] %v1936
  %v1939 = vld [vmem:[#allocation3] sm:$0xff]
  %v1940 = vld [vmem:[#allocation3 + $0x8] sm:$0xff]
  %s1941 = scalar_lea.vmem %s3, 88
  %v1942 = vld [vmem:[%s1941] sm:$0xf]
  %v1943 = vld [vmem:[#allocation2] sm:$0xff]
  %v1944 = vld [vmem:[#allocation2 + $0x8] sm:$0xf]
  %v1947 = vunpack.c.l.b16 %v1943
  %v1948 = vunpack.c.h.b16 %v1943
  %v1949 = vunpack.c.l.b16 %v1944
  %v1950 = vpack.c.b16 %v1947, %v1947
  %v1951 = vpack.c.b16 %v1948, %v1948
  %v1952 = vpack.c.b16 %v1949, %v1949
  %1953 = vrot.lane.b32.xlu0 %v1950, 106
  %v1954 = vpop.permute.xlu0 %1953
  %1955 = vrot.lane.b32.xlu0 %v1951, 106
  %v1956 = vpop.permute.xlu0 %1955
  %1957 = vrot.lane.b32.xlu0 %v1952, 106
  %v1958 = vpop.permute.xlu0 %1957
  %vm1959 = vcmask 867328
  %v1960 = vsel %vm1959, %v1954, %v1956
  %v1961 = vsel %vm1959, %v1956, %v1958
  %v1963 = vsel %vm596, %v1942, 0
  %v1966 = vsel %vm600, %v1960, 0
  %v1969 = vsel %vm600, %v1961, 0
  %1971 = vmatpush.bf16.msra.mxu0 0
  %1972 = vmatpush.bf16.msra.mxu0 0
  %1973 = vmatpush.bf16.msra.mxu0 0
  %1974 = vmatpush.bf16.msra.mxu0 0
  %1975 = vmatpush.bf16.msra.mxu0 0
  %1976 = vmatpush.bf16.msra.mxu0 0
  %1977 = vmatpush.bf16.msra.mxu0 0
  %1978 = vmatpush.bf16.msra.mxu0 %v1966
  %1979 = vmatmul.bf16.gmra.mxu0 %v1963
  %v1980 = vpop.f32.mrf.mxu0
  %v1981 = vadd.f32 0.0, %v1980
  %v1982 = vpop.f32.mrf.mxu0
  %1983 = vdwg.mxu0
  %1984 = vmatpush.bf16.msra.mxu0 0
  %1985 = vmatpush.bf16.msra.mxu0 0
  %1986 = vmatpush.bf16.msra.mxu0 0
  %1987 = vmatpush.bf16.msra.mxu0 0
  %1988 = vmatpush.bf16.msra.mxu0 0
  %1989 = vmatpush.bf16.msra.mxu0 0
  %1990 = vmatpush.bf16.msra.mxu0 0
  %1991 = vmatpush.bf16.msra.mxu0 %v1969
  %1992 = vmatmul.bf16.gmra.mxu0 %v1963
  %v1993 = vpop.f32.mrf.mxu0
  %v1994 = vadd.f32 0.0, %v1993
  %v1995 = vpop.f32.mrf.mxu0
  %1996 = vdwg.mxu0
  %v1997 = vadd.f32 %v1939, %v1981
  %v1998 = vadd.f32 %v1940, %v1994
  %1999 = vst [vmem:[#allocation3] sm:$0xff] %v1997
  %2000 = vst [vmem:[#allocation3 + $0x8] sm:$0xff] %v1998
  %v2001 = vld [vmem:[#allocation3] sm:$0xff]
  %v2002 = vld [vmem:[#allocation3 + $0x8] sm:$0xff]
  %s2003 = scalar_lea.vmem %s3, 92
  %v2004 = vld [vmem:[%s2003] sm:$0xf]
  %v2005 = vld [vmem:[#allocation2] sm:$0xff]
  %v2006 = vld [vmem:[#allocation2 + $0x8] sm:$0xf]
  %v2009 = vunpack.c.l.b16 %v2005
  %v2010 = vunpack.c.h.b16 %v2005
  %v2011 = vunpack.c.l.b16 %v2006
  %v2012 = vpack.c.b16 %v2009, %v2009
  %v2013 = vpack.c.b16 %v2010, %v2010
  %v2014 = vpack.c.b16 %v2011, %v2011
  %2015 = vrot.lane.b32.xlu0 %v2012, 105
  %v2016 = vpop.permute.xlu0 %2015
  %2017 = vrot.lane.b32.xlu0 %v2013, 105
  %v2018 = vpop.permute.xlu0 %2017
  %2019 = vrot.lane.b32.xlu0 %v2014, 105
  %v2020 = vpop.permute.xlu0 %2019
  %vm2021 = vcmask 859136
  %v2022 = vsel %vm2021, %v2016, %v2018
  %v2023 = vsel %vm2021, %v2018, %v2020
  %v2025 = vsel %vm596, %v2004, 0
  %v2028 = vsel %vm600, %v2022, 0
  %v2031 = vsel %vm600, %v2023, 0
  %2033 = vmatpush.bf16.msra.mxu0 0
  %2034 = vmatpush.bf16.msra.mxu0 0
  %2035 = vmatpush.bf16.msra.mxu0 0
  %2036 = vmatpush.bf16.msra.mxu0 0
  %2037 = vmatpush.bf16.msra.mxu0 0
  %2038 = vmatpush.bf16.msra.mxu0 0
  %2039 = vmatpush.bf16.msra.mxu0 0
  %2040 = vmatpush.bf16.msra.mxu0 %v2028
  %2041 = vmatmul.bf16.gmra.mxu0 %v2025
  %v2042 = vpop.f32.mrf.mxu0
  %v2043 = vadd.f32 0.0, %v2042
  %v2044 = vpop.f32.mrf.mxu0
  %2045 = vdwg.mxu0
  %2046 = vmatpush.bf16.msra.mxu0 0
  %2047 = vmatpush.bf16.msra.mxu0 0
  %2048 = vmatpush.bf16.msra.mxu0 0
  %2049 = vmatpush.bf16.msra.mxu0 0
  %2050 = vmatpush.bf16.msra.mxu0 0
  %2051 = vmatpush.bf16.msra.mxu0 0
  %2052 = vmatpush.bf16.msra.mxu0 0
  %2053 = vmatpush.bf16.msra.mxu0 %v2031
  %2054 = vmatmul.bf16.gmra.mxu0 %v2025
  %v2055 = vpop.f32.mrf.mxu0
  %v2056 = vadd.f32 0.0, %v2055
  %v2057 = vpop.f32.mrf.mxu0
  %2058 = vdwg.mxu0
  %v2059 = vadd.f32 %v2001, %v2043
  %v2060 = vadd.f32 %v2002, %v2056
  %2061 = vst [vmem:[#allocation3] sm:$0xff] %v2059
  %2062 = vst [vmem:[#allocation3 + $0x8] sm:$0xff] %v2060
  %v2063 = vld [vmem:[#allocation3] sm:$0xff]
  %v2064 = vld [vmem:[#allocation3 + $0x8] sm:$0xff]
  %s2065 = scalar_lea.vmem %s3, 96
  %v2066 = vld [vmem:[%s2065] sm:$0xf]
  %v2067 = vld [vmem:[#allocation2] sm:$0xff]
  %v2068 = vld [vmem:[#allocation2 + $0x8] sm:$0xf]
  %v2071 = vunpack.c.l.b16 %v2067
  %v2072 = vunpack.c.h.b16 %v2067
  %v2073 = vunpack.c.l.b16 %v2068
  %v2074 = vpack.c.b16 %v2071, %v2071
  %v2075 = vpack.c.b16 %v2072, %v2072
  %v2076 = vpack.c.b16 %v2073, %v2073
  %2077 = vrot.lane.b32.xlu0 %v2074, 104
  %v2078 = vpop.permute.xlu0 %2077
  %2079 = vrot.lane.b32.xlu0 %v2075, 104
  %v2080 = vpop.permute.xlu0 %2079
  %2081 = vrot.lane.b32.xlu0 %v2076, 104
  %v2082 = vpop.permute.xlu0 %2081
  %vm2083 = vcmask 850944
  %v2084 = vsel %vm2083, %v2078, %v2080
  %v2085 = vsel %vm2083, %v2080, %v2082
  %v2087 = vsel %vm596, %v2066, 0
  %v2090 = vsel %vm600, %v2084, 0
  %v2093 = vsel %vm600, %v2085, 0
  %2095 = vmatpush.bf16.msra.mxu0 0
  %2096 = vmatpush.bf16.msra.mxu0 0
  %2097 = vmatpush.bf16.msra.mxu0 0
  %2098 = vmatpush.bf16.msra.mxu0 0
  %2099 = vmatpush.bf16.msra.mxu0 0
  %2100 = vmatpush.bf16.msra.mxu0 0
  %2101 = vmatpush.bf16.msra.mxu0 0
  %2102 = vmatpush.bf16.msra.mxu0 %v2090
  %2103 = vmatmul.bf16.gmra.mxu0 %v2087
  %v2104 = vpop.f32.mrf.mxu0
  %v2105 = vadd.f32 0.0, %v2104
  %v2106 = vpop.f32.mrf.mxu0
  %2107 = vdwg.mxu0
  %2108 = vmatpush.bf16.msra.mxu0 0
  %2109 = vmatpush.bf16.msra.mxu0 0
  %2110 = vmatpush.bf16.msra.mxu0 0
  %2111 = vmatpush.bf16.msra.mxu0 0
  %2112 = vmatpush.bf16.msra.mxu0 0
  %2113 = vmatpush.bf16.msra.mxu0 0
  %2114 = vmatpush.bf16.msra.mxu0 0
  %2115 = vmatpush.bf16.msra.mxu0 %v2093
  %2116 = vmatmul.bf16.gmra.mxu0 %v2087
  %v2117 = vpop.f32.mrf.mxu0
  %v2118 = vadd.f32 0.0, %v2117
  %v2119 = vpop.f32.mrf.mxu0
  %2120 = vdwg.mxu0
  %v2121 = vadd.f32 %v2063, %v2105
  %v2122 = vadd.f32 %v2064, %v2118
  %2123 = vst [vmem:[#allocation3] sm:$0xff] %v2121
  %2124 = vst [vmem:[#allocation3 + $0x8] sm:$0xff] %v2122
  %v2125 = vld [vmem:[#allocation3] sm:$0xff]
  %v2126 = vld [vmem:[#allocation3 + $0x8] sm:$0xff]
  %s2127 = scalar_lea.vmem %s3, 100
  %v2128 = vld [vmem:[%s2127] sm:$0xf]
  %v2129 = vld [vmem:[#allocation2] sm:$0xff]
  %v2130 = vld [vmem:[#allocation2 + $0x8] sm:$0xf]
  %v2133 = vunpack.c.l.b16 %v2129
  %v2134 = vunpack.c.h.b16 %v2129
  %v2135 = vunpack.c.l.b16 %v2130
  %v2136 = vpack.c.b16 %v2133, %v2133
  %v2137 = vpack.c.b16 %v2134, %v2134
  %v2138 = vpack.c.b16 %v2135, %v2135
  %2139 = vrot.lane.b32.xlu0 %v2136, 103
  %v2140 = vpop.permute.xlu0 %2139
  %2141 = vrot.lane.b32.xlu0 %v2137, 103
  %v2142 = vpop.permute.xlu0 %2141
  %2143 = vrot.lane.b32.xlu0 %v2138, 103
  %v2144 = vpop.permute.xlu0 %2143
  %vm2145 = vcmask 842752
  %v2146 = vsel %vm2145, %v2140, %v2142
  %v2147 = vsel %vm2145, %v2142, %v2144
  %v2149 = vsel %vm596, %v2128, 0
  %v2152 = vsel %vm600, %v2146, 0
  %v2155 = vsel %vm600, %v2147, 0
  %2157 = vmatpush.bf16.msra.mxu0 0
  %2158 = vmatpush.bf16.msra.mxu0 0
  %2159 = vmatpush.bf16.msra.mxu0 0
  %2160 = vmatpush.bf16.msra.mxu0 0
  %2161 = vmatpush.bf16.msra.mxu0 0
  %2162 = vmatpush.bf16.msra.mxu0 0
  %2163 = vmatpush.bf16.msra.mxu0 0
  %2164 = vmatpush.bf16.msra.mxu0 %v2152
  %2165 = vmatmul.bf16.gmra.mxu0 %v2149
  %v2166 = vpop.f32.mrf.mxu0
  %v2167 = vadd.f32 0.0, %v2166
  %v2168 = vpop.f32.mrf.mxu0
  %2169 = vdwg.mxu0
  %2170 = vmatpush.bf16.msra.mxu0 0
  %2171 = vmatpush.bf16.msra.mxu0 0
  %2172 = vmatpush.bf16.msra.mxu0 0
  %2173 = vmatpush.bf16.msra.mxu0 0
  %2174 = vmatpush.bf16.msra.mxu0 0
  %2175 = vmatpush.bf16.msra.mxu0 0
  %2176 = vmatpush.bf16.msra.mxu0 0
  %2177 = vmatpush.bf16.msra.mxu0 %v2155
  %2178 = vmatmul.bf16.gmra.mxu0 %v2149
  %v2179 = vpop.f32.mrf.mxu0
  %v2180 = vadd.f32 0.0, %v2179
  %v2181 = vpop.f32.mrf.mxu0
  %2182 = vdwg.mxu0
  %v2183 = vadd.f32 %v2125, %v2167
  %v2184 = vadd.f32 %v2126, %v2180
  %2185 = vst [vmem:[#allocation3] sm:$0xff] %v2183
  %2186 = vst [vmem:[#allocation3 + $0x8] sm:$0xff] %v2184
  %v2187 = vld [vmem:[#allocation3] sm:$0xff]
  %v2188 = vld [vmem:[#allocation3 + $0x8] sm:$0xff]
  %s2189 = scalar_lea.vmem %s3, 104
  %v2190 = vld [vmem:[%s2189] sm:$0xf]
  %v2191 = vld [vmem:[#allocation2] sm:$0xff]
  %v2192 = vld [vmem:[#allocation2 + $0x8] sm:$0xf]
  %v2195 = vunpack.c.l.b16 %v2191
  %v2196 = vunpack.c.h.b16 %v2191
  %v2197 = vunpack.c.l.b16 %v2192
  %v2198 = vpack.c.b16 %v2195, %v2195
  %v2199 = vpack.c.b16 %v2196, %v2196
  %v2200 = vpack.c.b16 %v2197, %v2197
  %2201 = vrot.lane.b32.xlu0 %v2198, 102
  %v2202 = vpop.permute.xlu0 %2201
  %2203 = vrot.lane.b32.xlu0 %v2199, 102
  %v2204 = vpop.permute.xlu0 %2203
  %2205 = vrot.lane.b32.xlu0 %v2200, 102
  %v2206 = vpop.permute.xlu0 %2205
  %vm2207 = vcmask 834560
  %v2208 = vsel %vm2207, %v2202, %v2204
  %v2209 = vsel %vm2207, %v2204, %v2206
  %v2211 = vsel %vm596, %v2190, 0
  %v2214 = vsel %vm600, %v2208, 0
  %v2217 = vsel %vm600, %v2209, 0
  %2219 = vmatpush.bf16.msra.mxu0 0
  %2220 = vmatpush.bf16.msra.mxu0 0
  %2221 = vmatpush.bf16.msra.mxu0 0
  %2222 = vmatpush.bf16.msra.mxu0 0
  %2223 = vmatpush.bf16.msra.mxu0 0
  %2224 = vmatpush.bf16.msra.mxu0 0
  %2225 = vmatpush.bf16.msra.mxu0 0
  %2226 = vmatpush.bf16.msra.mxu0 %v2214
  %2227 = vmatmul.bf16.gmra.mxu0 %v2211
  %v2228 = vpop.f32.mrf.mxu0
  %v2229 = vadd.f32 0.0, %v2228
  %v2230 = vpop.f32.mrf.mxu0
  %2231 = vdwg.mxu0
  %2232 = vmatpush.bf16.msra.mxu0 0
  %2233 = vmatpush.bf16.msra.mxu0 0
  %2234 = vmatpush.bf16.msra.mxu0 0
  %2235 = vmatpush.bf16.msra.mxu0 0
  %2236 = vmatpush.bf16.msra.mxu0 0
  %2237 = vmatpush.bf16.msra.mxu0 0
  %2238 = vmatpush.bf16.msra.mxu0 0
  %2239 = vmatpush.bf16.msra.mxu0 %v2217
  %2240 = vmatmul.bf16.gmra.mxu0 %v2211
  %v2241 = vpop.f32.mrf.mxu0
  %v2242 = vadd.f32 0.0, %v2241
  %v2243 = vpop.f32.mrf.mxu0
  %2244 = vdwg.mxu0
  %v2245 = vadd.f32 %v2187, %v2229
  %v2246 = vadd.f32 %v2188, %v2242
  %2247 = vst [vmem:[#allocation3] sm:$0xff] %v2245
  %2248 = vst [vmem:[#allocation3 + $0x8] sm:$0xff] %v2246
  %v2249 = vld [vmem:[#allocation3] sm:$0xff]
  %v2250 = vld [vmem:[#allocation3 + $0x8] sm:$0xff]
  %s2251 = scalar_lea.vmem %s3, 108
  %v2252 = vld [vmem:[%s2251] sm:$0xf]
  %v2253 = vld [vmem:[#allocation2] sm:$0xff]
  %v2254 = vld [vmem:[#allocation2 + $0x8] sm:$0xf]
  %v2257 = vunpack.c.l.b16 %v2253
  %v2258 = vunpack.c.h.b16 %v2253
  %v2259 = vunpack.c.l.b16 %v2254
  %v2260 = vpack.c.b16 %v2257, %v2257
  %v2261 = vpack.c.b16 %v2258, %v2258
  %v2262 = vpack.c.b16 %v2259, %v2259
  %2263 = vrot.lane.b32.xlu0 %v2260, 101
  %v2264 = vpop.permute.xlu0 %2263
  %2265 = vrot.lane.b32.xlu0 %v2261, 101
  %v2266 = vpop.permute.xlu0 %2265
  %2267 = vrot.lane.b32.xlu0 %v2262, 101
  %v2268 = vpop.permute.xlu0 %2267
  %vm2269 = vcmask 826368
  %v2270 = vsel %vm2269, %v2264, %v2266
  %v2271 = vsel %vm2269, %v2266, %v2268
  %v2273 = vsel %vm596, %v2252, 0
  %v2276 = vsel %vm600, %v2270, 0
  %v2279 = vsel %vm600, %v2271, 0
  %2281 = vmatpush.bf16.msra.mxu0 0
  %2282 = vmatpush.bf16.msra.mxu0 0
  %2283 = vmatpush.bf16.msra.mxu0 0
  %2284 = vmatpush.bf16.msra.mxu0 0
  %2285 = vmatpush.bf16.msra.mxu0 0
  %2286 = vmatpush.bf16.msra.mxu0 0
  %2287 = vmatpush.bf16.msra.mxu0 0
  %2288 = vmatpush.bf16.msra.mxu0 %v2276
  %2289 = vmatmul.bf16.gmra.mxu0 %v2273
  %v2290 = vpop.f32.mrf.mxu0
  %v2291 = vadd.f32 0.0, %v2290
  %v2292 = vpop.f32.mrf.mxu0
  %2293 = vdwg.mxu0
  %2294 = vmatpush.bf16.msra.mxu0 0
  %2295 = vmatpush.bf16.msra.mxu0 0
  %2296 = vmatpush.bf16.msra.mxu0 0
  %2297 = vmatpush.bf16.msra.mxu0 0
  %2298 = vmatpush.bf16.msra.mxu0 0
  %2299 = vmatpush.bf16.msra.mxu0 0
  %2300 = vmatpush.bf16.msra.mxu0 0
  %2301 = vmatpush.bf16.msra.mxu0 %v2279
  %2302 = vmatmul.bf16.gmra.mxu0 %v2273
  %v2303 = vpop.f32.mrf.mxu0
  %v2304 = vadd.f32 0.0, %v2303
  %v2305 = vpop.f32.mrf.mxu0
  %2306 = vdwg.mxu0
  %v2307 = vadd.f32 %v2249, %v2291
  %v2308 = vadd.f32 %v2250, %v2304
  %2309 = vst [vmem:[#allocation3] sm:$0xff] %v2307
  %2310 = vst [vmem:[#allocation3 + $0x8] sm:$0xff] %v2308
  %v2311 = vld [vmem:[#allocation3] sm:$0xff]
  %v2312 = vld [vmem:[#allocation3 + $0x8] sm:$0xff]
  %s2313 = scalar_lea.vmem %s3, 112
  %v2314 = vld [vmem:[%s2313] sm:$0xf]
  %v2315 = vld [vmem:[#allocation2] sm:$0xff]
  %v2316 = vld [vmem:[#allocation2 + $0x8] sm:$0xf]
  %v2319 = vunpack.c.l.b16 %v2315
  %v2320 = vunpack.c.h.b16 %v2315
  %v2321 = vunpack.c.l.b16 %v2316
  %v2322 = vpack.c.b16 %v2319, %v2319
  %v2323 = vpack.c.b16 %v2320, %v2320
  %v2324 = vpack.c.b16 %v2321, %v2321
  %2325 = vrot.lane.b32.xlu0 %v2322, 100
  %v2326 = vpop.permute.xlu0 %2325
  %2327 = vrot.lane.b32.xlu0 %v2323, 100
  %v2328 = vpop.permute.xlu0 %2327
  %2329 = vrot.lane.b32.xlu0 %v2324, 100
  %v2330 = vpop.permute.xlu0 %2329
  %vm2331 = vcmask 818176
  %v2332 = vsel %vm2331, %v2326, %v2328
  %v2333 = vsel %vm2331, %v2328, %v2330
  %v2335 = vsel %vm596, %v2314, 0
  %v2338 = vsel %vm600, %v2332, 0
  %v2341 = vsel %vm600, %v2333, 0
  %2343 = vmatpush.bf16.msra.mxu0 0
  %2344 = vmatpush.bf16.msra.mxu0 0
  %2345 = vmatpush.bf16.msra.mxu0 0
  %2346 = vmatpush.bf16.msra.mxu0 0
  %2347 = vmatpush.bf16.msra.mxu0 0
  %2348 = vmatpush.bf16.msra.mxu0 0
  %2349 = vmatpush.bf16.msra.mxu0 0
  %2350 = vmatpush.bf16.msra.mxu0 %v2338
  %2351 = vmatmul.bf16.gmra.mxu0 %v2335
  %v2352 = vpop.f32.mrf.mxu0
  %v2353 = vadd.f32 0.0, %v2352
  %v2354 = vpop.f32.mrf.mxu0
  %2355 = vdwg.mxu0
  %2356 = vmatpush.bf16.msra.mxu0 0
  %2357 = vmatpush.bf16.msra.mxu0 0
  %2358 = vmatpush.bf16.msra.mxu0 0
  %2359 = vmatpush.bf16.msra.mxu0 0
  %2360 = vmatpush.bf16.msra.mxu0 0
  %2361 = vmatpush.bf16.msra.mxu0 0
  %2362 = vmatpush.bf16.msra.mxu0 0
  %2363 = vmatpush.bf16.msra.mxu0 %v2341
  %2364 = vmatmul.bf16.gmra.mxu0 %v2335
  %v2365 = vpop.f32.mrf.mxu0
  %v2366 = vadd.f32 0.0, %v2365
  %v2367 = vpop.f32.mrf.mxu0
  %2368 = vdwg.mxu0
  %v2369 = vadd.f32 %v2311, %v2353
  %v2370 = vadd.f32 %v2312, %v2366
  %2371 = vst [vmem:[#allocation3] sm:$0xff] %v2369
  %2372 = vst [vmem:[#allocation3 + $0x8] sm:$0xff] %v2370
  %v2373 = vld [vmem:[#allocation3] sm:$0xff]
  %v2374 = vld [vmem:[#allocation3 + $0x8] sm:$0xff]
  %s2375 = scalar_lea.vmem %s3, 116
  %v2376 = vld [vmem:[%s2375] sm:$0xf]
  %v2377 = vld [vmem:[#allocation2] sm:$0xff]
  %v2378 = vld [vmem:[#allocation2 + $0x8] sm:$0xf]
  %v2381 = vunpack.c.l.b16 %v2377
  %v2382 = vunpack.c.h.b16 %v2377
  %v2383 = vunpack.c.l.b16 %v2378
  %v2384 = vpack.c.b16 %v2381, %v2381
  %v2385 = vpack.c.b16 %v2382, %v2382
  %v2386 = vpack.c.b16 %v2383, %v2383
  %2387 = vrot.lane.b32.xlu0 %v2384, 99
  %v2388 = vpop.permute.xlu0 %2387
  %2389 = vrot.lane.b32.xlu0 %v2385, 99
  %v2390 = vpop.permute.xlu0 %2389
  %2391 = vrot.lane.b32.xlu0 %v2386, 99
  %v2392 = vpop.permute.xlu0 %2391
  %vm2393 = vcmask 809984
  %v2394 = vsel %vm2393, %v2388, %v2390
  %v2395 = vsel %vm2393, %v2390, %v2392
  %v2397 = vsel %vm596, %v2376, 0
  %v2400 = vsel %vm600, %v2394, 0
  %v2403 = vsel %vm600, %v2395, 0
  %2405 = vmatpush.bf16.msra.mxu0 0
  %2406 = vmatpush.bf16.msra.mxu0 0
  %2407 = vmatpush.bf16.msra.mxu0 0
  %2408 = vmatpush.bf16.msra.mxu0 0
  %2409 = vmatpush.bf16.msra.mxu0 0
  %2410 = vmatpush.bf16.msra.mxu0 0
  %2411 = vmatpush.bf16.msra.mxu0 0
  %2412 = vmatpush.bf16.msra.mxu0 %v2400
  %2413 = vmatmul.bf16.gmra.mxu0 %v2397
  %v2414 = vpop.f32.mrf.mxu0
  %v2415 = vadd.f32 0.0, %v2414
  %v2416 = vpop.f32.mrf.mxu0
  %2417 = vdwg.mxu0
  %2418 = vmatpush.bf16.msra.mxu0 0
  %2419 = vmatpush.bf16.msra.mxu0 0
  %2420 = vmatpush.bf16.msra.mxu0 0
  %2421 = vmatpush.bf16.msra.mxu0 0
  %2422 = vmatpush.bf16.msra.mxu0 0
  %2423 = vmatpush.bf16.msra.mxu0 0
  %2424 = vmatpush.bf16.msra.mxu0 0
  %2425 = vmatpush.bf16.msra.mxu0 %v2403
  %2426 = vmatmul.bf16.gmra.mxu0 %v2397
  %v2427 = vpop.f32.mrf.mxu0
  %v2428 = vadd.f32 0.0, %v2427
  %v2429 = vpop.f32.mrf.mxu0
  %2430 = vdwg.mxu0
  %v2431 = vadd.f32 %v2373, %v2415
  %v2432 = vadd.f32 %v2374, %v2428
  %2433 = vst [vmem:[#allocation3] sm:$0xff] %v2431
  %2434 = vst [vmem:[#allocation3 + $0x8] sm:$0xff] %v2432
  %v2435 = vld [vmem:[#allocation3] sm:$0xff]
  %v2436 = vld [vmem:[#allocation3 + $0x8] sm:$0xff]
  %s2437 = scalar_lea.vmem %s3, 120
  %v2438 = vld [vmem:[%s2437] sm:$0xf]
  %v2439 = vld [vmem:[#allocation2] sm:$0xff]
  %v2440 = vld [vmem:[#allocation2 + $0x8] sm:$0xf]
  %v2443 = vunpack.c.l.b16 %v2439
  %v2444 = vunpack.c.h.b16 %v2439
  %v2445 = vunpack.c.l.b16 %v2440
  %v2446 = vpack.c.b16 %v2443, %v2443
  %v2447 = vpack.c.b16 %v2444, %v2444
  %v2448 = vpack.c.b16 %v2445, %v2445
  %2449 = vrot.lane.b32.xlu0 %v2446, 98
  %v2450 = vpop.permute.xlu0 %2449
  %2451 = vrot.lane.b32.xlu0 %v2447, 98
  %v2452 = vpop.permute.xlu0 %2451
  %2453 = vrot.lane.b32.xlu0 %v2448, 98
  %v2454 = vpop.permute.xlu0 %2453
  %vm2455 = vcmask 801792
  %v2456 = vsel %vm2455, %v2450, %v2452
  %v2457 = vsel %vm2455, %v2452, %v2454
  %v2459 = vsel %vm596, %v2438, 0
  %v2462 = vsel %vm600, %v2456, 0
  %v2465 = vsel %vm600, %v2457, 0
  %2467 = vmatpush.bf16.msra.mxu0 0
  %2468 = vmatpush.bf16.msra.mxu0 0
  %2469 = vmatpush.bf16.msra.mxu0 0
  %2470 = vmatpush.bf16.msra.mxu0 0
  %2471 = vmatpush.bf16.msra.mxu0 0
  %2472 = vmatpush.bf16.msra.mxu0 0
  %2473 = vmatpush.bf16.msra.mxu0 0
  %2474 = vmatpush.bf16.msra.mxu0 %v2462
  %2475 = vmatmul.bf16.gmra.mxu0 %v2459
  %v2476 = vpop.f32.mrf.mxu0
  %v2477 = vadd.f32 0.0, %v2476
  %v2478 = vpop.f32.mrf.mxu0
  %2479 = vdwg.mxu0
  %2480 = vmatpush.bf16.msra.mxu0 0
  %2481 = vmatpush.bf16.msra.mxu0 0
  %2482 = vmatpush.bf16.msra.mxu0 0
  %2483 = vmatpush.bf16.msra.mxu0 0
  %2484 = vmatpush.bf16.msra.mxu0 0
  %2485 = vmatpush.bf16.msra.mxu0 0
  %2486 = vmatpush.bf16.msra.mxu0 0
  %2487 = vmatpush.bf16.msra.mxu0 %v2465
  %2488 = vmatmul.bf16.gmra.mxu0 %v2459
  %v2489 = vpop.f32.mrf.mxu0
  %v2490 = vadd.f32 0.0, %v2489
  %v2491 = vpop.f32.mrf.mxu0
  %2492 = vdwg.mxu0
  %v2493 = vadd.f32 %v2435, %v2477
  %v2494 = vadd.f32 %v2436, %v2490
  %2495 = vst [vmem:[#allocation3] sm:$0xff] %v2493
  %2496 = vst [vmem:[#allocation3 + $0x8] sm:$0xff] %v2494
  %v2497 = vld [vmem:[#allocation3] sm:$0xff]
  %v2498 = vld [vmem:[#allocation3 + $0x8] sm:$0xff]
  %s2499 = scalar_lea.vmem %s3, 124
  %v2500 = vld [vmem:[%s2499] sm:$0xf]
  %v2501 = vld [vmem:[#allocation2] sm:$0xff]
  %v2502 = vld [vmem:[#allocation2 + $0x8] sm:$0xf]
  %v2505 = vunpack.c.l.b16 %v2501
  %v2506 = vunpack.c.h.b16 %v2501
  %v2507 = vunpack.c.l.b16 %v2502
  %v2508 = vpack.c.b16 %v2505, %v2505
  %v2509 = vpack.c.b16 %v2506, %v2506
  %v2510 = vpack.c.b16 %v2507, %v2507
  %2511 = vrot.lane.b32.xlu0 %v2508, 97
  %v2512 = vpop.permute.xlu0 %2511
  %2513 = vrot.lane.b32.xlu0 %v2509, 97
  %v2514 = vpop.permute.xlu0 %2513
  %2515 = vrot.lane.b32.xlu0 %v2510, 97
  %v2516 = vpop.permute.xlu0 %2515
  %vm2517 = vcmask 793600
  %v2518 = vsel %vm2517, %v2512, %v2514
  %v2519 = vsel %vm2517, %v2514, %v2516
  %v2521 = vsel %vm596, %v2500, 0
  %v2524 = vsel %vm600, %v2518, 0
  %v2527 = vsel %vm600, %v2519, 0
  %2529 = vmatpush.bf16.msra.mxu0 0
  %2530 = vmatpush.bf16.msra.mxu0 0
  %2531 = vmatpush.bf16.msra.mxu0 0
  %2532 = vmatpush.bf16.msra.mxu0 0
  %2533 = vmatpush.bf16.msra.mxu0 0
  %2534 = vmatpush.bf16.msra.mxu0 0
  %2535 = vmatpush.bf16.msra.mxu0 0
  %2536 = vmatpush.bf16.msra.mxu0 %v2524
  %2537 = vmatmul.bf16.gmra.mxu0 %v2521
  %v2538 = vpop.f32.mrf.mxu0
  %v2539 = vadd.f32 0.0, %v2538
  %v2540 = vpop.f32.mrf.mxu0
  %2541 = vdwg.mxu0
  %2542 = vmatpush.bf16.msra.mxu0 0
  %2543 = vmatpush.bf16.msra.mxu0 0
  %2544 = vmatpush.bf16.msra.mxu0 0
  %2545 = vmatpush.bf16.msra.mxu0 0
  %2546 = vmatpush.bf16.msra.mxu0 0
  %2547 = vmatpush.bf16.msra.mxu0 0
  %2548 = vmatpush.bf16.msra.mxu0 0
  %2549 = vmatpush.bf16.msra.mxu0 %v2527
  %2550 = vmatmul.bf16.gmra.mxu0 %v2521
  %v2551 = vpop.f32.mrf.mxu0
  %v2552 = vadd.f32 0.0, %v2551
  %v2553 = vpop.f32.mrf.mxu0
  %2554 = vdwg.mxu0
  %v2555 = vadd.f32 %v2497, %v2539
  %v2556 = vadd.f32 %v2498, %v2552
  %2557 = vst [vmem:[#allocation3] sm:$0xff] %v2555
  %2558 = vst [vmem:[#allocation3 + $0x8] sm:$0xff] %v2556
  %v2559 = vld [vmem:[#allocation3] sm:$0xff]
  %v2560 = vld [vmem:[#allocation3 + $0x8] sm:$0xff]
  %s2561 = scalar_lea.vmem %s3, 128
  %v2562 = vld [vmem:[%s2561] sm:$0xf]
  %v2563 = vld [vmem:[#allocation2] sm:$0xff]
  %v2564 = vld [vmem:[#allocation2 + $0x8] sm:$0xf]
  %v2567 = vunpack.c.l.b16 %v2563
  %v2568 = vunpack.c.h.b16 %v2563
  %v2569 = vunpack.c.l.b16 %v2564
  %v2570 = vpack.c.b16 %v2567, %v2567
  %v2571 = vpack.c.b16 %v2568, %v2568
  %v2572 = vpack.c.b16 %v2569, %v2569
  %2573 = vrot.lane.b32.xlu0 %v2570, 96
  %v2574 = vpop.permute.xlu0 %2573
  %2575 = vrot.lane.b32.xlu0 %v2571, 96
  %v2576 = vpop.permute.xlu0 %2575
  %2577 = vrot.lane.b32.xlu0 %v2572, 96
  %v2578 = vpop.permute.xlu0 %2577
  %vm2579 = vcmask 785408
  %v2580 = vsel %vm2579, %v2574, %v2576
  %v2581 = vsel %vm2579, %v2576, %v2578
  %v2583 = vsel %vm596, %v2562, 0
  %v2586 = vsel %vm600, %v2580, 0
  %v2589 = vsel %vm600, %v2581, 0
  %2591 = vmatpush.bf16.msra.mxu0 0
  %2592 = vmatpush.bf16.msra.mxu0 0
  %2593 = vmatpush.bf16.msra.mxu0 0
  %2594 = vmatpush.bf16.msra.mxu0 0
  %2595 = vmatpush.bf16.msra.mxu0 0
  %2596 = vmatpush.bf16.msra.mxu0 0
  %2597 = vmatpush.bf16.msra.mxu0 0
  %2598 = vmatpush.bf16.msra.mxu0 %v2586
  %2599 = vmatmul.bf16.gmra.mxu0 %v2583
  %v2600 = vpop.f32.mrf.mxu0
  %v2601 = vadd.f32 0.0, %v2600
  %v2602 = vpop.f32.mrf.mxu0
  %2603 = vdwg.mxu0
  %2604 = vmatpush.bf16.msra.mxu0 0
  %2605 = vmatpush.bf16.msra.mxu0 0
  %2606 = vmatpush.bf16.msra.mxu0 0
  %2607 = vmatpush.bf16.msra.mxu0 0
  %2608 = vmatpush.bf16.msra.mxu0 0
  %2609 = vmatpush.bf16.msra.mxu0 0
  %2610 = vmatpush.bf16.msra.mxu0 0
  %2611 = vmatpush.bf16.msra.mxu0 %v2589
  %2612 = vmatmul.bf16.gmra.mxu0 %v2583
  %v2613 = vpop.f32.mrf.mxu0
  %v2614 = vadd.f32 0.0, %v2613
  %v2615 = vpop.f32.mrf.mxu0
  %2616 = vdwg.mxu0
  %v2617 = vadd.f32 %v2559, %v2601
  %v2618 = vadd.f32 %v2560, %v2614
  %2619 = vst [vmem:[#allocation3] sm:$0xff] %v2617
  %2620 = vst [vmem:[#allocation3 + $0x8] sm:$0xff] %v2618
  %v2621 = vld [vmem:[#allocation3] sm:$0xff]
  %v2622 = vld [vmem:[#allocation3 + $0x8] sm:$0xff]
  %s2623 = scalar_lea.vmem %s3, 132
  %v2624 = vld [vmem:[%s2623] sm:$0xf]
  %v2625 = vld [vmem:[#allocation2] sm:$0xff]
  %v2626 = vld [vmem:[#allocation2 + $0x8] sm:$0xf]
  %v2629 = vunpack.c.l.b16 %v2625
  %v2630 = vunpack.c.h.b16 %v2625
  %v2631 = vunpack.c.l.b16 %v2626
  %v2632 = vpack.c.b16 %v2629, %v2629
  %v2633 = vpack.c.b16 %v2630, %v2630
  %v2634 = vpack.c.b16 %v2631, %v2631
  %2635 = vrot.lane.b32.xlu0 %v2632, 95
  %v2636 = vpop.permute.xlu0 %2635
  %2637 = vrot.lane.b32.xlu0 %v2633, 95
  %v2638 = vpop.permute.xlu0 %2637
  %2639 = vrot.lane.b32.xlu0 %v2634, 95
  %v2640 = vpop.permute.xlu0 %2639
  %vm2641 = vcmask 777216
  %v2642 = vsel %vm2641, %v2636, %v2638
  %v2643 = vsel %vm2641, %v2638, %v2640
  %v2645 = vsel %vm596, %v2624, 0
  %v2648 = vsel %vm600, %v2642, 0
  %v2651 = vsel %vm600, %v2643, 0
  %2653 = vmatpush.bf16.msra.mxu0 0
  %2654 = vmatpush.bf16.msra.mxu0 0
  %2655 = vmatpush.bf16.msra.mxu0 0
  %2656 = vmatpush.bf16.msra.mxu0 0
  %2657 = vmatpush.bf16.msra.mxu0 0
  %2658 = vmatpush.bf16.msra.mxu0 0
  %2659 = vmatpush.bf16.msra.mxu0 0
  %2660 = vmatpush.bf16.msra.mxu0 %v2648
  %2661 = vmatmul.bf16.gmra.mxu0 %v2645
  %v2662 = vpop.f32.mrf.mxu0
  %v2663 = vadd.f32 0.0, %v2662
  %v2664 = vpop.f32.mrf.mxu0
  %2665 = vdwg.mxu0
  %2666 = vmatpush.bf16.msra.mxu0 0
  %2667 = vmatpush.bf16.msra.mxu0 0
  %2668 = vmatpush.bf16.msra.mxu0 0
  %2669 = vmatpush.bf16.msra.mxu0 0
  %2670 = vmatpush.bf16.msra.mxu0 0
  %2671 = vmatpush.bf16.msra.mxu0 0
  %2672 = vmatpush.bf16.msra.mxu0 0
  %2673 = vmatpush.bf16.msra.mxu0 %v2651
  %2674 = vmatmul.bf16.gmra.mxu0 %v2645
  %v2675 = vpop.f32.mrf.mxu0
  %v2676 = vadd.f32 0.0, %v2675
  %v2677 = vpop.f32.mrf.mxu0
  %2678 = vdwg.mxu0
  %v2679 = vadd.f32 %v2621, %v2663
  %v2680 = vadd.f32 %v2622, %v2676
  %2681 = vst [vmem:[#allocation3] sm:$0xff] %v2679
  %2682 = vst [vmem:[#allocation3 + $0x8] sm:$0xff] %v2680
  %v2683 = vld [vmem:[#allocation3] sm:$0xff]
  %v2684 = vld [vmem:[#allocation3 + $0x8] sm:$0xff]
  %s2685 = scalar_lea.vmem %s3, 136
  %v2686 = vld [vmem:[%s2685] sm:$0xf]
  %v2687 = vld [vmem:[#allocation2] sm:$0xff]
  %v2688 = vld [vmem:[#allocation2 + $0x8] sm:$0xf]
  %v2691 = vunpack.c.l.b16 %v2687
  %v2692 = vunpack.c.h.b16 %v2687
  %v2693 = vunpack.c.l.b16 %v2688
  %v2694 = vpack.c.b16 %v2691, %v2691
  %v2695 = vpack.c.b16 %v2692, %v2692
  %v2696 = vpack.c.b16 %v2693, %v2693
  %2697 = vrot.lane.b32.xlu0 %v2694, 94
  %v2698 = vpop.permute.xlu0 %2697
  %2699 = vrot.lane.b32.xlu0 %v2695, 94
  %v2700 = vpop.permute.xlu0 %2699
  %2701 = vrot.lane.b32.xlu0 %v2696, 94
  %v2702 = vpop.permute.xlu0 %2701
  %vm2703 = vcmask 769024
  %v2704 = vsel %vm2703, %v2698, %v2700
  %v2705 = vsel %vm2703, %v2700, %v2702
  %v2707 = vsel %vm596, %v2686, 0
  %v2710 = vsel %vm600, %v2704, 0
  %v2713 = vsel %vm600, %v2705, 0
  %2715 = vmatpush.bf16.msra.mxu0 0
  %2716 = vmatpush.bf16.msra.mxu0 0
  %2717 = vmatpush.bf16.msra.mxu0 0
  %2718 = vmatpush.bf16.msra.mxu0 0
  %2719 = vmatpush.bf16.msra.mxu0 0
  %2720 = vmatpush.bf16.msra.mxu0 0
  %2721 = vmatpush.bf16.msra.mxu0 0
  %2722 = vmatpush.bf16.msra.mxu0 %v2710
  %2723 = vmatmul.bf16.gmra.mxu0 %v2707
  %v2724 = vpop.f32.mrf.mxu0
  %v2725 = vadd.f32 0.0, %v2724
  %v2726 = vpop.f32.mrf.mxu0
  %2727 = vdwg.mxu0
  %2728 = vmatpush.bf16.msra.mxu0 0
  %2729 = vmatpush.bf16.msra.mxu0 0
  %2730 = vmatpush.bf16.msra.mxu0 0
  %2731 = vmatpush.bf16.msra.mxu0 0
  %2732 = vmatpush.bf16.msra.mxu0 0
  %2733 = vmatpush.bf16.msra.mxu0 0
  %2734 = vmatpush.bf16.msra.mxu0 0
  %2735 = vmatpush.bf16.msra.mxu0 %v2713
  %2736 = vmatmul.bf16.gmra.mxu0 %v2707
  %v2737 = vpop.f32.mrf.mxu0
  %v2738 = vadd.f32 0.0, %v2737
  %v2739 = vpop.f32.mrf.mxu0
  %2740 = vdwg.mxu0
  %v2741 = vadd.f32 %v2683, %v2725
  %v2742 = vadd.f32 %v2684, %v2738
  %2743 = vst [vmem:[#allocation3] sm:$0xff] %v2741
  %2744 = vst [vmem:[#allocation3 + $0x8] sm:$0xff] %v2742
  %v2745 = vld [vmem:[#allocation3] sm:$0xff]
  %v2746 = vld [vmem:[#allocation3 + $0x8] sm:$0xff]
  %s2747 = scalar_lea.vmem %s3, 140
  %v2748 = vld [vmem:[%s2747] sm:$0xf]
  %v2749 = vld [vmem:[#allocation2] sm:$0xff]
  %v2750 = vld [vmem:[#allocation2 + $0x8] sm:$0xf]
  %v2753 = vunpack.c.l.b16 %v2749
  %v2754 = vunpack.c.h.b16 %v2749
  %v2755 = vunpack.c.l.b16 %v2750
  %v2756 = vpack.c.b16 %v2753, %v2753
  %v2757 = vpack.c.b16 %v2754, %v2754
  %v2758 = vpack.c.b16 %v2755, %v2755
  %2759 = vrot.lane.b32.xlu0 %v2756, 93
  %v2760 = vpop.permute.xlu0 %2759
  %2761 = vrot.lane.b32.xlu0 %v2757, 93
  %v2762 = vpop.permute.xlu0 %2761
  %2763 = vrot.lane.b32.xlu0 %v2758, 93
  %v2764 = vpop.permute.xlu0 %2763
  %vm2765 = vcmask 760832
  %v2766 = vsel %vm2765, %v2760, %v2762
  %v2767 = vsel %vm2765, %v2762, %v2764
  %v2769 = vsel %vm596, %v2748, 0
  %v2772 = vsel %vm600, %v2766, 0
  %v2775 = vsel %vm600, %v2767, 0
  %2777 = vmatpush.bf16.msra.mxu0 0
  %2778 = vmatpush.bf16.msra.mxu0 0
  %2779 = vmatpush.bf16.msra.mxu0 0
  %2780 = vmatpush.bf16.msra.mxu0 0
  %2781 = vmatpush.bf16.msra.mxu0 0
  %2782 = vmatpush.bf16.msra.mxu0 0
  %2783 = vmatpush.bf16.msra.mxu0 0
  %2784 = vmatpush.bf16.msra.mxu0 %v2772
  %2785 = vmatmul.bf16.gmra.mxu0 %v2769
  %v2786 = vpop.f32.mrf.mxu0
  %v2787 = vadd.f32 0.0, %v2786
  %v2788 = vpop.f32.mrf.mxu0
  %2789 = vdwg.mxu0
  %2790 = vmatpush.bf16.msra.mxu0 0
  %2791 = vmatpush.bf16.msra.mxu0 0
  %2792 = vmatpush.bf16.msra.mxu0 0
  %2793 = vmatpush.bf16.msra.mxu0 0
  %2794 = vmatpush.bf16.msra.mxu0 0
  %2795 = vmatpush.bf16.msra.mxu0 0
  %2796 = vmatpush.bf16.msra.mxu0 0
  %2797 = vmatpush.bf16.msra.mxu0 %v2775
  %2798 = vmatmul.bf16.gmra.mxu0 %v2769
  %v2799 = vpop.f32.mrf.mxu0
  %v2800 = vadd.f32 0.0, %v2799
  %v2801 = vpop.f32.mrf.mxu0
  %2802 = vdwg.mxu0
  %v2803 = vadd.f32 %v2745, %v2787
  %v2804 = vadd.f32 %v2746, %v2800
  %2805 = vst [vmem:[#allocation3] sm:$0xff] %v2803
  %2806 = vst [vmem:[#allocation3 + $0x8] sm:$0xff] %v2804
  %v2807 = vld [vmem:[#allocation3] sm:$0xff]
  %v2808 = vld [vmem:[#allocation3 + $0x8] sm:$0xff]
  %s2809 = scalar_lea.vmem %s3, 144
  %v2810 = vld [vmem:[%s2809] sm:$0xf]
  %v2811 = vld [vmem:[#allocation2] sm:$0xff]
  %v2812 = vld [vmem:[#allocation2 + $0x8] sm:$0xf]
  %v2815 = vunpack.c.l.b16 %v2811
  %v2816 = vunpack.c.h.b16 %v2811
  %v2817 = vunpack.c.l.b16 %v2812
  %v2818 = vpack.c.b16 %v2815, %v2815
  %v2819 = vpack.c.b16 %v2816, %v2816
  %v2820 = vpack.c.b16 %v2817, %v2817
  %2821 = vrot.lane.b32.xlu0 %v2818, 92
  %v2822 = vpop.permute.xlu0 %2821
  %2823 = vrot.lane.b32.xlu0 %v2819, 92
  %v2824 = vpop.permute.xlu0 %2823
  %2825 = vrot.lane.b32.xlu0 %v2820, 92
  %v2826 = vpop.permute.xlu0 %2825
  %vm2827 = vcmask 752640
  %v2828 = vsel %vm2827, %v2822, %v2824
  %v2829 = vsel %vm2827, %v2824, %v2826
  %v2831 = vsel %vm596, %v2810, 0
  %v2834 = vsel %vm600, %v2828, 0
  %v2837 = vsel %vm600, %v2829, 0
  %2839 = vmatpush.bf16.msra.mxu0 0
  %2840 = vmatpush.bf16.msra.mxu0 0
  %2841 = vmatpush.bf16.msra.mxu0 0
  %2842 = vmatpush.bf16.msra.mxu0 0
  %2843 = vmatpush.bf16.msra.mxu0 0
  %2844 = vmatpush.bf16.msra.mxu0 0
  %2845 = vmatpush.bf16.msra.mxu0 0
  %2846 = vmatpush.bf16.msra.mxu0 %v2834
  %2847 = vmatmul.bf16.gmra.mxu0 %v2831
  %v2848 = vpop.f32.mrf.mxu0
  %v2849 = vadd.f32 0.0, %v2848
  %v2850 = vpop.f32.mrf.mxu0
  %2851 = vdwg.mxu0
  %2852 = vmatpush.bf16.msra.mxu0 0
  %2853 = vmatpush.bf16.msra.mxu0 0
  %2854 = vmatpush.bf16.msra.mxu0 0
  %2855 = vmatpush.bf16.msra.mxu0 0
  %2856 = vmatpush.bf16.msra.mxu0 0
  %2857 = vmatpush.bf16.msra.mxu0 0
  %2858 = vmatpush.bf16.msra.mxu0 0
  %2859 = vmatpush.bf16.msra.mxu0 %v2837
  %2860 = vmatmul.bf16.gmra.mxu0 %v2831
  %v2861 = vpop.f32.mrf.mxu0
  %v2862 = vadd.f32 0.0, %v2861
  %v2863 = vpop.f32.mrf.mxu0
  %2864 = vdwg.mxu0
  %v2865 = vadd.f32 %v2807, %v2849
  %v2866 = vadd.f32 %v2808, %v2862
  %2867 = vst [vmem:[#allocation3] sm:$0xff] %v2865
  %2868 = vst [vmem:[#allocation3 + $0x8] sm:$0xff] %v2866
  %v2869 = vld [vmem:[#allocation3] sm:$0xff]
  %v2870 = vld [vmem:[#allocation3 + $0x8] sm:$0xff]
  %s2871 = scalar_lea.vmem %s3, 148
  %v2872 = vld [vmem:[%s2871] sm:$0xf]
  %v2873 = vld [vmem:[#allocation2] sm:$0xff]
  %v2874 = vld [vmem:[#allocation2 + $0x8] sm:$0xf]
  %v2877 = vunpack.c.l.b16 %v2873
  %v2878 = vunpack.c.h.b16 %v2873
  %v2879 = vunpack.c.l.b16 %v2874
  %v2880 = vpack.c.b16 %v2877, %v2877
  %v2881 = vpack.c.b16 %v2878, %v2878
  %v2882 = vpack.c.b16 %v2879, %v2879
  %2883 = vrot.lane.b32.xlu0 %v2880, 91
  %v2884 = vpop.permute.xlu0 %2883
  %2885 = vrot.lane.b32.xlu0 %v2881, 91
  %v2886 = vpop.permute.xlu0 %2885
  %2887 = vrot.lane.b32.xlu0 %v2882, 91
  %v2888 = vpop.permute.xlu0 %2887
  %vm2889 = vcmask 744448
  %v2890 = vsel %vm2889, %v2884, %v2886
  %v2891 = vsel %vm2889, %v2886, %v2888
  %v2893 = vsel %vm596, %v2872, 0
  %v2896 = vsel %vm600, %v2890, 0
  %v2899 = vsel %vm600, %v2891, 0
  %2901 = vmatpush.bf16.msra.mxu0 0
  %2902 = vmatpush.bf16.msra.mxu0 0
  %2903 = vmatpush.bf16.msra.mxu0 0
  %2904 = vmatpush.bf16.msra.mxu0 0
  %2905 = vmatpush.bf16.msra.mxu0 0
  %2906 = vmatpush.bf16.msra.mxu0 0
  %2907 = vmatpush.bf16.msra.mxu0 0
  %2908 = vmatpush.bf16.msra.mxu0 %v2896
  %2909 = vmatmul.bf16.gmra.mxu0 %v2893
  %v2910 = vpop.f32.mrf.mxu0
  %v2911 = vadd.f32 0.0, %v2910
  %v2912 = vpop.f32.mrf.mxu0
  %2913 = vdwg.mxu0
  %2914 = vmatpush.bf16.msra.mxu0 0
  %2915 = vmatpush.bf16.msra.mxu0 0
  %2916 = vmatpush.bf16.msra.mxu0 0
  %2917 = vmatpush.bf16.msra.mxu0 0
  %2918 = vmatpush.bf16.msra.mxu0 0
  %2919 = vmatpush.bf16.msra.mxu0 0
  %2920 = vmatpush.bf16.msra.mxu0 0
  %2921 = vmatpush.bf16.msra.mxu0 %v2899
  %2922 = vmatmul.bf16.gmra.mxu0 %v2893
  %v2923 = vpop.f32.mrf.mxu0
  %v2924 = vadd.f32 0.0, %v2923
  %v2925 = vpop.f32.mrf.mxu0
  %2926 = vdwg.mxu0
  %v2927 = vadd.f32 %v2869, %v2911
  %v2928 = vadd.f32 %v2870, %v2924
  %2929 = vst [vmem:[#allocation3] sm:$0xff] %v2927
  %2930 = vst [vmem:[#allocation3 + $0x8] sm:$0xff] %v2928
  %v2931 = vld [vmem:[#allocation3] sm:$0xff]
  %v2932 = vld [vmem:[#allocation3 + $0x8] sm:$0xff]
  %s2933 = scalar_lea.vmem %s3, 152
  %v2934 = vld [vmem:[%s2933] sm:$0xf]
  %v2935 = vld [vmem:[#allocation2] sm:$0xff]
  %v2936 = vld [vmem:[#allocation2 + $0x8] sm:$0xf]
  %v2939 = vunpack.c.l.b16 %v2935
  %v2940 = vunpack.c.h.b16 %v2935
  %v2941 = vunpack.c.l.b16 %v2936
  %v2942 = vpack.c.b16 %v2939, %v2939
  %v2943 = vpack.c.b16 %v2940, %v2940
  %v2944 = vpack.c.b16 %v2941, %v2941
  %2945 = vrot.lane.b32.xlu0 %v2942, 90
  %v2946 = vpop.permute.xlu0 %2945
  %2947 = vrot.lane.b32.xlu0 %v2943, 90
  %v2948 = vpop.permute.xlu0 %2947
  %2949 = vrot.lane.b32.xlu0 %v2944, 90
  %v2950 = vpop.permute.xlu0 %2949
  %vm2951 = vcmask 736256
  %v2952 = vsel %vm2951, %v2946, %v2948
  %v2953 = vsel %vm2951, %v2948, %v2950
  %v2955 = vsel %vm596, %v2934, 0
  %v2958 = vsel %vm600, %v2952, 0
  %v2961 = vsel %vm600, %v2953, 0
  %2963 = vmatpush.bf16.msra.mxu0 0
  %2964 = vmatpush.bf16.msra.mxu0 0
  %2965 = vmatpush.bf16.msra.mxu0 0
  %2966 = vmatpush.bf16.msra.mxu0 0
  %2967 = vmatpush.bf16.msra.mxu0 0
  %2968 = vmatpush.bf16.msra.mxu0 0
  %2969 = vmatpush.bf16.msra.mxu0 0
  %2970 = vmatpush.bf16.msra.mxu0 %v2958
  %2971 = vmatmul.bf16.gmra.mxu0 %v2955
  %v2972 = vpop.f32.mrf.mxu0
  %v2973 = vadd.f32 0.0, %v2972
  %v2974 = vpop.f32.mrf.mxu0
  %2975 = vdwg.mxu0
  %2976 = vmatpush.bf16.msra.mxu0 0
  %2977 = vmatpush.bf16.msra.mxu0 0
  %2978 = vmatpush.bf16.msra.mxu0 0
  %2979 = vmatpush.bf16.msra.mxu0 0
  %2980 = vmatpush.bf16.msra.mxu0 0
  %2981 = vmatpush.bf16.msra.mxu0 0
  %2982 = vmatpush.bf16.msra.mxu0 0
  %2983 = vmatpush.bf16.msra.mxu0 %v2961
  %2984 = vmatmul.bf16.gmra.mxu0 %v2955
  %v2985 = vpop.f32.mrf.mxu0
  %v2986 = vadd.f32 0.0, %v2985
  %v2987 = vpop.f32.mrf.mxu0
  %2988 = vdwg.mxu0
  %v2989 = vadd.f32 %v2931, %v2973
  %v2990 = vadd.f32 %v2932, %v2986
  %2991 = vst [vmem:[#allocation3] sm:$0xff] %v2989
  %2992 = vst [vmem:[#allocation3 + $0x8] sm:$0xff] %v2990
  %v2993 = vld [vmem:[#allocation3] sm:$0xff]
  %v2994 = vld [vmem:[#allocation3 + $0x8] sm:$0xff]
  %s2995 = scalar_lea.vmem %s3, 156
  %v2996 = vld [vmem:[%s2995] sm:$0xf]
  %v2997 = vld [vmem:[#allocation2] sm:$0xff]
  %v2998 = vld [vmem:[#allocation2 + $0x8] sm:$0xf]
  %v3001 = vunpack.c.l.b16 %v2997
  %v3002 = vunpack.c.h.b16 %v2997
  %v3003 = vunpack.c.l.b16 %v2998
  %v3004 = vpack.c.b16 %v3001, %v3001
  %v3005 = vpack.c.b16 %v3002, %v3002
  %v3006 = vpack.c.b16 %v3003, %v3003
  %3007 = vrot.lane.b32.xlu0 %v3004, 89
  %v3008 = vpop.permute.xlu0 %3007
  %3009 = vrot.lane.b32.xlu0 %v3005, 89
  %v3010 = vpop.permute.xlu0 %3009
  %3011 = vrot.lane.b32.xlu0 %v3006, 89
  %v3012 = vpop.permute.xlu0 %3011
  %vm3013 = vcmask 728064
  %v3014 = vsel %vm3013, %v3008, %v3010
  %v3015 = vsel %vm3013, %v3010, %v3012
  %v3017 = vsel %vm596, %v2996, 0
  %v3020 = vsel %vm600, %v3014, 0
  %v3023 = vsel %vm600, %v3015, 0
  %3025 = vmatpush.bf16.msra.mxu0 0
  %3026 = vmatpush.bf16.msra.mxu0 0
  %3027 = vmatpush.bf16.msra.mxu0 0
  %3028 = vmatpush.bf16.msra.mxu0 0
  %3029 = vmatpush.bf16.msra.mxu0 0
  %3030 = vmatpush.bf16.msra.mxu0 0
  %3031 = vmatpush.bf16.msra.mxu0 0
  %3032 = vmatpush.bf16.msra.mxu0 %v3020
  %3033 = vmatmul.bf16.gmra.mxu0 %v3017
  %v3034 = vpop.f32.mrf.mxu0
  %v3035 = vadd.f32 0.0, %v3034
  %v3036 = vpop.f32.mrf.mxu0
  %3037 = vdwg.mxu0
  %3038 = vmatpush.bf16.msra.mxu0 0
  %3039 = vmatpush.bf16.msra.mxu0 0
  %3040 = vmatpush.bf16.msra.mxu0 0
  %3041 = vmatpush.bf16.msra.mxu0 0
  %3042 = vmatpush.bf16.msra.mxu0 0
  %3043 = vmatpush.bf16.msra.mxu0 0
  %3044 = vmatpush.bf16.msra.mxu0 0
  %3045 = vmatpush.bf16.msra.mxu0 %v3023
  %3046 = vmatmul.bf16.gmra.mxu0 %v3017
  %v3047 = vpop.f32.mrf.mxu0
  %v3048 = vadd.f32 0.0, %v3047
  %v3049 = vpop.f32.mrf.mxu0
  %3050 = vdwg.mxu0
  %v3051 = vadd.f32 %v2993, %v3035
  %v3052 = vadd.f32 %v2994, %v3048
  %3053 = vst [vmem:[#allocation3] sm:$0xff] %v3051
  %3054 = vst [vmem:[#allocation3 + $0x8] sm:$0xff] %v3052
  %v3055 = vld [vmem:[#allocation3] sm:$0xff]
  %v3056 = vld [vmem:[#allocation3 + $0x8] sm:$0xff]
  %v3057 = vmax.f32 %v3055, 0.0
  %v3058 = vmax.f32 %v3056, 0.0
  %3059 = vst [vmem:[%s5] sm:$0xff] %v3057
  %3060 = vst [vmem:[%s5 + $0x8] sm:$0xff] %v3058
  // Predicated region
  $region22: #{forward_pallas.1} parent=0 // pred_check
    _
  $region23: #{forward_pallas.1} parent=0 // pred_check_branch
    %3062 = sbr.rel (0) target = $region25
  $region24: #{forward_pallas.1} parent=0 // pred_region
    _
  $region25: #{forward_pallas.1} parent=0 // pred_fallthru
    _
  // Predicated region
  $region26: #{forward_pallas.1} parent=0 // pred_check
    _
  $region27: #{forward_pallas.1} parent=0 // pred_check_branch
    %3064 = sbr.rel (0) target = $region29
  $region28: #{forward_pallas.1} parent=0 // pred_region
    _
  $region29: #{forward_pallas.1} parent=0 // pred_fallthru
    _

</llo_original>
